<compile_context>
chip_gen: v7x
topology: tpu7x:2x2x1
jax: 0.10.0
libtpu: 0.0.40
codegen_flags: <defaults>
</compile_context>

<pallas_src>
import math
import numpy as np

import jax
import jax.numpy as jnp
from jax.experimental import pallas as pl
from jax.experimental.pallas import tpu as pltpu


# ---------------- small, deterministic configs ------------------------------------
NET_CFG = dict(
    enc_pos_density=dict(multires=4, input_dim=3),   # 3 * (1 + 2*4) = 27
    enc_dir_color=dict(multires=2, input_dim=3),     # 15
    enc_time_deform=dict(multires=4, input_dim=1),   # 9
    enc_pos_deform=dict(multires=4, input_dim=3),    # 27
    net_deform=dict(n_layers=3, hidden_dim=32, skips=(1,)),
    net_density=dict(n_layers=3, hidden_dim=32, skips=(1,)),
    net_color=dict(n_layers=2, hidden_dim=32, skips=()),
    geo_feat_dim=16,
    bound=1.5,             # frequency encoder ignores `bound` (torch-ngp convention)
    raw_noise_std=1.0,
    use_deform=True,
)

RENDER_CFG = dict(
    n_samples=8,
    n_importance=0,        # TODO(synk): importance sampling (torch.searchsorted gather) not ported
    perturb=False,
    use_depth_sampling=True,
    ray_chunk=1024,        # rays per lane tile (multiple of 128); 2048 is also VMEM-safe
)

N_SLAB_ROWS = 10           # [x(3), d(3), t(1), noise(1), z(1), dist*||rays_d[0]||(1)]


def _round_up(x, m):
    return ((x + m - 1) // m) * m


def _enc_dim(cfg):
    return cfg['input_dim'] * (1 + 2 * cfg['multires'])


# ---------------- packed parameter layout ------------------------------------------
def _weight_layout(net_cfg):
    """Static row layout of the packed (transposed, pre-split) weight / bias slabs."""
    in_xd = _enc_dim(net_cfg['enc_pos_deform'])
    in_t = _enc_dim(net_cfg['enc_time_deform'])
    in_xc = _enc_dim(net_cfg['enc_pos_density'])
    in_d = _enc_dim(net_cfg['enc_dir_color'])
    geo = net_cfg['geo_feat_dim']
    hd = net_cfg['net_deform']['hidden_dim']
    hs = net_cfg['net_density']['hidden_dim']
    hc = net_cfg['net_color']['hidden_dim']
    entries = [
        ('A0x', hd, in_xd), ('A0t', hd, in_t),                    # deform layer 0 (bias @ A0x)
        ('A1h', hd, hd), ('A1x', hd, in_xd), ('A1t', hd, in_t),   # deform skip layer (bias @ A1h)
        ('A2', 3, hd),                                            # deform output
        ('B0', hs, in_xc),                                        # density layer 0
        ('B1h', hs, hs), ('B1x', hs, in_xc),                      # density skip layer (bias @ B1h)
        ('B2', geo + 1, hs),                                      # density head: geo rows 0..geo-1, sigma row geo
        ('C0d', hc, in_d), ('C0g', hc, geo),                      # color layer 0 (bias @ C0d)
        ('C1', 3, hc),                                            # color output
    ]
    layout, off = {}, 0
    for name, r, c in entries:
        layout[name] = (off, r, c)
        off += _round_up(r, 8)                                    # keep every block 8-row aligned
    return layout, _round_up(off, 8), max(c for _, _, c in entries)


def _init_linear(key, in_dim, out_dim):
    """nn.Linear-style init, weight stored transposed as (out, in)."""
    kw, kb = jax.random.split(key)
    bound = 1.0 / math.sqrt(in_dim)
    w = jax.random.uniform(kw, (out_dim, in_dim), jnp.float32, -bound, bound)
    b = jax.random.uniform(kb, (out_dim, 1), jnp.float32, -bound, bound)
    return w, b


def init_dnerf_params_packed(key, net_cfg):
    """nn.Linear-style init, packed into two VMEM-resident slabs.  Weights are
    transposed (out, in) and pre-split at every concat boundary so the kernel never
    concatenates activations; the density head is reordered so sigma is the last
    (8-aligned) output row."""
    assert net_cfg['use_deform']
    assert net_cfg['net_deform']['n_layers'] == 3 and tuple(net_cfg['net_deform']['skips']) == (1,)
    assert net_cfg['net_density']['n_layers'] == 3 and tuple(net_cfg['net_density']['skips']) == (1,)
    assert net_cfg['net_color']['n_layers'] == 2 and tuple(net_cfg['net_color']['skips']) == ()
    in_xd = _enc_dim(net_cfg['enc_pos_deform'])
    in_t = _enc_dim(net_cfg['enc_time_deform'])
    in_xc = _enc_dim(net_cfg['enc_pos_density'])
    in_d = _enc_dim(net_cfg['enc_dir_color'])
    geo = net_cfg['geo_feat_dim']
    hd = net_cfg['net_deform']['hidden_dim']
    hs = net_cfg['net_density']['hidden_dim']
    hc = net_cfg['net_color']['hidden_dim']
    k = jax.random.split(key, 8)

    blocks, biases = {}, {}

    # deform net: input [enc(x)(27), enc(t)(9)], skip at layer 1
    W0, b0 = _init_linear(k[0], in_xd + in_t, hd)
    blocks['A0x'], blocks['A0t'], biases['A0x'] = W0[:, :in_xd], W0[:, in_xd:], b0
    W1, b1 = _init_linear(k[1], hd + in_xd + in_t, hd)
    blocks['A1h'] = W1[:, :hd]
    blocks['A1x'] = W1[:, hd:hd + in_xd]
    blocks['A1t'] = W1[:, hd + in_xd:]
    biases['A1h'] = b1
    W2, b2 = _init_linear(k[2], hd, 3)
    blocks['A2'], biases['A2'] = W2, b2

    # density net: input enc(x_c)(27), skip at layer 1, head -> [sigma(1), geo(16)]
    V0, c0 = _init_linear(k[3], in_xc, hs)
    blocks['B0'], biases['B0'] = V0, c0
    V1, c1 = _init_linear(k[4], hs + in_xc, hs)
    blocks['B1h'], blocks['B1x'], biases['B1h'] = V1[:, :hs], V1[:, hs:], c1
    V2, c2 = _init_linear(k[5], hs, 1 + geo)
    blocks['B2'] = jnp.concatenate([V2[1:], V2[:1]], axis=0)   # geo first, sigma last
    biases['B2'] = jnp.concatenate([c2[1:], c2[:1]], axis=0)

    # color net: input [enc(d)(15), geo(16)]
    U0, e0 = _init_linear(k[6], in_d + geo, hc)
    blocks['C0d'], blocks['C0g'], biases['C0d'] = U0[:, :in_d], U0[:, in_d:], e0
    U1, e1 = _init_linear(k[7], hc, 3)
    blocks['C1'], biases['C1'] = U1, e1

    layout, n_rows, n_cols = _weight_layout(net_cfg)
    w_slab = jnp.zeros((n_rows, n_cols), jnp.float32)
    b_slab = jnp.zeros((n_rows, 1), jnp.float32)
    for name, (off, r, c) in layout.items():
        w_slab = w_slab.at[off:off + r, :c].set(blocks[name])
        if name in biases:
            b_slab = b_slab.at[off:off + r, :].set(biases[name])
    return w_slab, b_slab


# ---------------- shared math (traced in the Pallas kernel AND the reference) ------
def _freq_enc_T(p, multires):
    """NeRF frequency encoding, feature-major: p (C, N) -> (C*(1+2*multires), N).
    One sin + one cos per element; octaves k>=1 via double-angle recurrences (VPU)."""
    feats = [p]
    s, c = jnp.sin(p), jnp.cos(p)
    feats += [s, c]
    for _ in range(1, multires):
        s, c = 2.0 * s * c, 1.0 - 2.0 * s * s
        feats += [s, c]
    return jnp.concatenate(feats, axis=0)


def _dnerf_compute_T(x, d, t, noise, W, B, net_cfg):
    """DNeRFNet.forward (training path), feature-major layout.  `W`/`B` may be jnp
    arrays or Pallas refs (only static slicing is used)."""
    layout, _, _ = _weight_layout(net_cfg)
    geo_dim = net_cfg['geo_feat_dim']

    def gw(name):
        off, r, c = layout[name]
        return W[off:off + r, 0:c]

    def gb(name):
        off, r, _ = layout[name]
        return B[off:off + r, :]

    def dot(w, a):
        return jnp.dot(w, a, preferred_element_type=jnp.float32)

    relu = lambda v: jnp.maximum(v, 0.0)

    # ---- deform net: x_c = x + deform(enc(x), enc(t))
    xe = _freq_enc_T(x, net_cfg['enc_pos_deform']['multires'])      # (27, N)
    te = _freq_enc_T(t, net_cfg['enc_time_deform']['multires'])     # (9, N)
    h = relu(dot(gw('A0x'), xe) + dot(gw('A0t'), te) + gb('A0x'))
    h = relu(dot(gw('A1h'), h) + dot(gw('A1x'), xe) + dot(gw('A1t'), te) + gb('A1h'))
    x_c = x + dot(gw('A2'), h) + gb('A2')

    # ---- density net: fused head -> rows 0..geo-1 = geo_feat, row geo = sigma
    xce = _freq_enc_T(x_c, net_cfg['enc_pos_density']['multires'])  # (27, N)
    h = relu(dot(gw('B0'), xce) + gb('B0'))
    h = relu(dot(gw('B1h'), h) + dot(gw('B1x'), xce) + gb('B1h'))
    hg = dot(gw('B2'), h) + gb('B2')                                # (geo+1, N)
    geo_feat = hg[0:geo_dim]
    sigma = hg[geo_dim:geo_dim + 1]
    density = relu(sigma + noise)                                   # noise-before-relu (training path)

    # ---- color net
    de = _freq_enc_T(d, net_cfg['enc_dir_color']['multires'])       # (15, N)
    h = relu(dot(gw('C0d'), de) + dot(gw('C0g'), geo_feat) + gb('C0d'))
    rgb = jax.nn.sigmoid(dot(gw('C1'), h) + gb('C1'))               # (3, N)
    return rgb, density


# ---------------- fused kernel: point MLP + incremental raw2outputs ----------------
def make_render_kernel(net_cfg):
    def kernel(slab_ref, rdn_ref, w_ref, b_ref, out_ref,
               trans_sc, rgb_sc, dep_sc, wsum_sc):
        s = pl.program_id(1)

        @pl.when(s == 0)
        def _init():
            trans_sc[...] = jnp.ones_like(trans_sc)
            rgb_sc[...] = jnp.zeros_like(rgb_sc)
            dep_sc[...] = jnp.zeros_like(dep_sc)
            wsum_sc[...] = jnp.zeros_like(wsum_sc)

        slab = slab_ref[...]                       # (10, tile): [x, d, t, noise, z, dist*d0]
        x, d = slab[0:3, :], slab[3:6, :]
        t, noise = slab[6:7, :], slab[7:8, :]
        z, dists = slab[8:9, :], slab[9:10, :]

        rgb, density = _dnerf_compute_T(x, d, t, noise, w_ref, b_ref, net_cfg)

        # incremental volume compositing over the (arbitrary) sample axis
        alpha = 1.0 - jnp.exp(-density * dists)    # (1, tile)
        w = alpha * trans_sc[...]
        trans_sc[...] = trans_sc[...] * (1.0 - alpha + 1e-10)
        rgb_sc[...] = rgb_sc[...] + w * rgb
        dep_sc[...] = dep_sc[...] + w * z
        wsum_sc[...] = wsum_sc[...] + w

        @pl.when(s == pl.num_programs(1) - 1)
        def _finish():
            depth0 = dep_sc[...] * rdn_ref[...]
            ratio = depth0 / (wsum_sc[...] + 1e-6)          # exact divides (numerics cleanup)
            disp = 1.0 / jnp.maximum(1e-10, ratio)
            depth = 1.0 / (disp + 1e-6)
            out_ref[...] = jnp.concatenate([rgb_sc[...], depth], axis=0)   # packed (4, tile)
    return kernel


def render_rays_pallas(slab, rdn, w_slab, b_slab, net_cfg, tile):
    S, F, n_rays = slab.shape
    assert F == N_SLAB_ROWS and tile % 128 == 0
    r_pad = _round_up(n_rays, tile)
    if r_pad != n_rays:
        pad = r_pad - n_rays
        slab = jnp.pad(slab, ((0, 0), (0, 0), (0, pad)))
        rdn = jnp.pad(rdn, ((0, 0), (0, pad)))
    grid = (r_pad // tile, S)                      # (parallel ray tiles, sample axis)
    out = pl.pallas_call(
        make_render_kernel(net_cfg),
        out_shape=jax.ShapeDtypeStruct((4, r_pad), jnp.float32),
        grid_spec=pltpu.PrefetchScalarGridSpec(
            num_scalar_prefetch=0, grid=grid,
            in_specs=[
                pl.BlockSpec((None, F, tile), lambda i, s: (s, 0, i)),    # point slab (sample s)
                pl.BlockSpec((1, tile), lambda i, s: (0, i)),             # ||rays_d|| per ray
                pl.BlockSpec(w_slab.shape, lambda i, s: (0, 0)),          # packed weights (VMEM-resident)
                pl.BlockSpec(b_slab.shape, lambda i, s: (0, 0)),          # packed biases
            ],
            out_specs=pl.BlockSpec((4, tile), lambda i, s: (0, i)),       # packed [rgb, depth]
            scratch_shapes=[pltpu.VMEM((1, tile), jnp.float32),           # transmittance
                            pltpu.VMEM((3, tile), jnp.float32),           # rgb accumulator
                            pltpu.VMEM((1, tile), jnp.float32),           # depth accumulator
                            pltpu.VMEM((1, tile), jnp.float32)]),         # weight-sum accumulator
        compiler_params=pltpu.CompilerParams(
            dimension_semantics=("parallel", "arbitrary")),
    )(slab, rdn, w_slab, b_slab)
    return out[:, :n_rays]


def _pick_ray_tile(n_rays, tile_cfg):
    r128 = _round_up(max(n_rays, 1), 128)
    tile = max(128, min(tile_cfg, r128))
    # prefer >=2 parallel grid steps so v7x's two TensorCores both get work
    if r128 // tile < 2 and r128 >= 256:
        tile = max(128, _round_up(r128 // 2, 128))
    return tile


# ---------------- renderer wrapper (glue in plain JAX) ------------------------------
class EndoNeRFRendererPallas:
    def __init__(self, render_cfg, net_cfg, key):
        self.render_cfg = dict(render_cfg)
        self.net_cfg = net_cfg
        self.w_slab, self.b_slab = init_dnerf_params_packed(key, net_cfg)
        self.n_samples = render_cfg['n_samples']
        self.n_importance = render_cfg['n_importance']
        self.perturb = render_cfg['perturb']
        self.use_depth_sampling = render_cfg['use_depth_sampling']
        self.ray_chunk = render_cfg.get('ray_chunk', 1024)

    def _prepare(self, rays, key):
        """z sampling + point-slab construction, built directly in the kernel's
        feature-major (S, 10, R) layout so no big wrapper transposes are needed."""
        n_rays = rays.shape[0]
        S = self.n_samples
        rays_o, rays_d = rays[:, 0:3], rays[:, 3:6]
        near_or_mean, far_or_std, time = rays[:, 6:7], rays[:, 7:8], rays[:, 8:9]
        rays_d_z = rays_d / (rays_d[:, 2:3] + 1e-5)
        kz, kn = jax.random.split(key)
        # use_depth_sampling=True path: z_vals = sort(Normal(mean, std)) along samples
        mean = jnp.broadcast_to(jnp.transpose(near_or_mean), (S, n_rays))
        std = jnp.broadcast_to(jnp.transpose(far_or_std), (S, n_rays))
        z = jnp.sort(mean + std * jax.random.normal(kz, (S, n_rays)), axis=0)       # (S, R)
        # TODO(synk): n_importance > 0 hierarchical sampling (torch.searchsorted gather) not ported.
        # TODO(synk): use_depth_sampling=False / perturb z-sampling branch not ported.
        d0 = jnp.sqrt(jnp.sum(rays_d[0] * rays_d[0]))       # torch: norm(rays_d[..., :1, :], dim=-1)
        dists = jnp.concatenate([z[1:] - z[:-1],
                                 jnp.full((1, n_rays), 1e10, jnp.float32)], axis=0) * d0
        pts = jnp.transpose(rays_o)[None] + jnp.transpose(rays_d_z)[None] * z[:, None, :]   # (S, 3, R)
        dirs = jnp.broadcast_to(jnp.transpose(rays_d)[None], (S, 3, n_rays))
        tt = jnp.broadcast_to(jnp.transpose(time)[None], (S, 1, n_rays))
        # training-path density noise (randn * raw_noise_std), folded into the slab
        noise = jax.random.normal(kn, (S, 1, n_rays)) * self.net_cfg['raw_noise_std']
        slab = jnp.concatenate([pts, dirs, tt, noise, z[:, None, :], dists[:, None, :]],
                               axis=1)                                               # (S, 10, R)
        rdn = jnp.sqrt(jnp.sum(rays_d * rays_d, axis=-1))[None, :]                   # (1, R)
        return slab, rdn

    def render_rays(self, rays, key):
        slab, rdn = self._prepare(rays, key)
        tile = _pick_ray_tile(rays.shape[0], self.ray_chunk)
        out4 = render_rays_pallas(slab, rdn, self.w_slab, self.b_slab, self.net_cfg, tile)
        return {'color_map': jnp.transpose(out4[0:3]),
                'depth_map': jnp.transpose(out4[3:4])}

    def __call__(self, rays, key):
        return self.render_rays(rays, key)
    # TODO(synk): eval=True path (d(density)/dx autograd normal maps) not ported.


# ---------------- pure-JAX reference (same math, no Pallas) -------------------------
def reference_render(w_slab, b_slab, slab, rdn, net_cfg):
    S, F, R = slab.shape
    feats = jnp.transpose(slab, (1, 0, 2)).reshape(F, S * R)
    x, d, t, noise = feats[0:3], feats[3:6], feats[6:7], feats[7:8]
    rgb, density = _dnerf_compute_T(x, d, t, noise, w_slab, b_slab, net_cfg)
    rgb = rgb.reshape(3, S, R)
    density = density.reshape(S, R)
    z = slab[:, 8, :]
    dists = slab[:, 9, :]                                  # already scaled by ||rays_d[0]||
    alpha = 1.0 - jnp.exp(-density * dists)
    trans = jnp.cumprod(jnp.concatenate([jnp.ones((1, R), jnp.float32),
                                         1.0 - alpha + 1e-10], axis=0), axis=0)[:-1]
    weights = alpha * trans
    rgb_map = jnp.sum(weights[None] * rgb, axis=1)                    # (3, R)
    depth0 = jnp.sum(weights * z, axis=0, keepdims=True) * rdn       # (1, R)
    ratio = depth0 / (jnp.sum(weights, axis=0, keepdims=True) + 1e-6)
    disp = 1.0 / jnp.maximum(1e-10, ratio)
    depth = 1.0 / (disp + 1e-6)
    return jnp.transpose(rgb_map), jnp.transpose(depth)


# ---------------- demo ---------------------------------------------------------------
if __name__ == "__main__":
    key = jax.random.PRNGKey(0)
    kp, kr, ks = jax.random.split(key, 3)
    n_rays = 512

    renderer = EndoNeRFRendererPallas(RENDER_CFG, NET_CFG, kp)

    # rays: [o(3), d(3), depth_mean(1), depth_std(1), time(1)]
    ko, kd, kt = jax.random.split(kr, 3)
    rays_o = jax.random.uniform(ko, (n_rays, 3), jnp.float32, -0.5, 0.5)
    rays_d = jax.random.normal(kd, (n_rays, 3), jnp.float32)
    rays_d = rays_d.at[:, 2].set(jnp.abs(rays_d[:, 2]) + 0.5)
    rays_d = rays_d / jnp.linalg.norm(rays_d, axis=-1, keepdims=True)
    depth_mean = jnp.full((n_rays, 1), 1.0, jnp.float32)
    depth_std = jnp.full((n_rays, 1), 0.1, jnp.float32)
    t = jax.random.uniform(kt, (n_rays, 1), jnp.float32, 0.0, 1.0)
    rays = jnp.concatenate([rays_o, rays_d, depth_mean, depth_std, t], axis=-1)

    out = renderer(rays, ks)
    out = jax.block_until_ready(out)

    assert out['color_map'].shape == (n_rays, 3)
    assert out['depth_map'].shape == (n_rays, 1)
    assert bool(jnp.all(jnp.isfinite(out['color_map'])))
    assert bool(jnp.all(jnp.isfinite(out['depth_map'])))

    # cross-check against the pure-JAX reference on the exact same prepared inputs
    slab, rdn = renderer._prepare(rays, ks)
    rgb_ref_, depth_ref_ = reference_render(renderer.w_slab, renderer.b_slab, slab, rdn, NET_CFG)
    np.testing.assert_allclose(np.asarray(out['color_map']), np.asarray(rgb_ref_),
                               rtol=5e-2, atol=5e-2)
    np.testing.assert_allclose(np.asarray(out['depth_map']), np.asarray(depth_ref_),
                               rtol=5e-2, atol=5e-2)

    print("KERNEL_OK")
</pallas_src>

<mosaic_0001>
module attributes {stable_mosaic.version = 11 : i64} {
  func.func @kernel(%arg0: i32, %arg1: i32, %arg2: memref<1x10x256xf32, #tpu.memory_space<vmem>>, %arg3: memref<1x256xf32, #tpu.memory_space<vmem>>, %arg4: memref<360x32xf32, #tpu.memory_space<vmem>>, %arg5: memref<360x1xf32, #tpu.memory_space<vmem>>, %arg6: memref<4x256xf32, #tpu.memory_space<vmem>>, %arg7: memref<1x256xf32, #tpu.memory_space<vmem>>, %arg8: memref<3x256xf32, #tpu.memory_space<vmem>>, %arg9: memref<1x256xf32, #tpu.memory_space<vmem>>, %arg10: memref<1x256xf32, #tpu.memory_space<vmem>>) attributes {dimension_semantics = [#tpu.dimension_semantics<parallel>, #tpu.dimension_semantics<arbitrary>], iteration_bounds = array<i64: 2, 8>, scalar_prefetch = 0 : i64, scratch_operands = 4 : i64, tpu.core_type = #tpu.core_type<tc>, window_params = [{transform_indices = @transform_0, window_bounds = array<i64: 1, 10, 256>}, {transform_indices = @transform_1, window_bounds = array<i64: 1, 256>}, {pipeline_mode = #tpu.pipeline_mode<synchronous>, transform_indices = @transform_2, window_bounds = array<i64: 360, 32>}, {pipeline_mode = #tpu.pipeline_mode<synchronous>, transform_indices = @transform_3, window_bounds = array<i64: 360, 1>}, {transform_indices = @transform_4, window_bounds = array<i64: 4, 256>}]} {
    %c0_i32 = arith.constant 0 : i32
    %0 = arith.cmpi eq, %arg1, %c0_i32 : i32
    %1 = arith.extui %0 : i1 to i32
    %c0_i32_0 = arith.constant 0 : i32
    %2 = arith.cmpi ne, %1, %c0_i32_0 : i32
    scf.if %2 {
      %cst_105 = arith.constant 1.000000e+00 : f32
      %209 = vector.broadcast %cst_105 : f32 to vector<1x256xf32>
      %c0_106 = arith.constant 0 : index
      %c0_107 = arith.constant 0 : index
      %210 = vector.load %arg7[%c0_106, %c0_107] : memref<1x256xf32, #tpu.memory_space<vmem>>, vector<1x256xf32>
      tpu.vector_store %arg7[%c0_106, %c0_107], %209 {strides = array<i32>} : memref<1x256xf32, #tpu.memory_space<vmem>>, vector<1x256xf32>,
      %cst_108 = arith.constant 0.000000e+00 : f32
      %211 = vector.broadcast %cst_108 : f32 to vector<3x256xf32>
      %c0_109 = arith.constant 0 : index
      %c0_110 = arith.constant 0 : index
      %212 = vector.load %arg8[%c0_109, %c0_110] : memref<3x256xf32, #tpu.memory_space<vmem>>, vector<3x256xf32>
      tpu.vector_store %arg8[%c0_109, %c0_110], %211 {strides = array<i32>} : memref<3x256xf32, #tpu.memory_space<vmem>>, vector<3x256xf32>,
      %cst_111 = arith.constant 0.000000e+00 : f32
      %213 = vector.broadcast %cst_111 : f32 to vector<1x256xf32>
      %c0_112 = arith.constant 0 : index
      %c0_113 = arith.constant 0 : index
      %214 = vector.load %arg9[%c0_112, %c0_113] : memref<1x256xf32, #tpu.memory_space<vmem>>, vector<1x256xf32>
      tpu.vector_store %arg9[%c0_112, %c0_113], %213 {strides = array<i32>} : memref<1x256xf32, #tpu.memory_space<vmem>>, vector<1x256xf32>,
      %cst_114 = arith.constant 0.000000e+00 : f32
      %215 = vector.broadcast %cst_114 : f32 to vector<1x256xf32>
      %c0_115 = arith.constant 0 : index
      %c0_116 = arith.constant 0 : index
      %216 = vector.load %arg10[%c0_115, %c0_116] : memref<1x256xf32, #tpu.memory_space<vmem>>, vector<1x256xf32>
      tpu.vector_store %arg10[%c0_115, %c0_116], %215 {strides = array<i32>} : memref<1x256xf32, #tpu.memory_space<vmem>>, vector<1x256xf32>,
    } else {
    }
    %c0 = arith.constant 0 : index
    %c0_1 = arith.constant 0 : index
    %c0_2 = arith.constant 0 : index
    %3 = vector.load %arg2[%c0, %c0_1, %c0_2] : memref<1x10x256xf32, #tpu.memory_space<vmem>>, vector<1x10x256xf32>
    %4 = vector.shape_cast %3 : vector<1x10x256xf32> to vector<10x256xf32>
    %5 = vector.extract_strided_slice %4 {offsets = [0, 0], sizes = [3, 256], strides = [1, 1]} : vector<10x256xf32> to vector<3x256xf32>
    %6 = vector.extract_strided_slice %4 {offsets = [3, 0], sizes = [3, 256], strides = [1, 1]} : vector<10x256xf32> to vector<3x256xf32>
    %7 = vector.extract_strided_slice %4 {offsets = [6, 0], sizes = [1, 256], strides = [1, 1]} : vector<10x256xf32> to vector<1x256xf32>
    %8 = vector.extract_strided_slice %4 {offsets = [7, 0], sizes = [1, 256], strides = [1, 1]} : vector<10x256xf32> to vector<1x256xf32>
    %9 = vector.extract_strided_slice %4 {offsets = [8, 0], sizes = [1, 256], strides = [1, 1]} : vector<10x256xf32> to vector<1x256xf32>
    %10 = vector.extract_strided_slice %4 {offsets = [9, 0], sizes = [1, 256], strides = [1, 1]} : vector<10x256xf32> to vector<1x256xf32>
    %11 = math.sin %5 : vector<3x256xf32>
    %12 = math.cos %5 : vector<3x256xf32>
    %cst = arith.constant 2.000000e+00 : f32
    %13 = vector.broadcast %cst : f32 to vector<3x256xf32>
    %14 = arith.mulf %13, %11 : vector<3x256xf32>
    %15 = arith.mulf %14, %12 : vector<3x256xf32>
    %cst_3 = arith.constant 2.000000e+00 : f32
    %16 = vector.broadcast %cst_3 : f32 to vector<3x256xf32>
    %17 = arith.mulf %16, %11 : vector<3x256xf32>
    %18 = arith.mulf %17, %11 : vector<3x256xf32>
    %cst_4 = arith.constant 1.000000e+00 : f32
    %19 = vector.broadcast %cst_4 : f32 to vector<3x256xf32>
    %20 = arith.subf %19, %18 : vector<3x256xf32>
    %cst_5 = arith.constant 2.000000e+00 : f32
    %21 = vector.broadcast %cst_5 : f32 to vector<3x256xf32>
    %22 = arith.mulf %21, %15 : vector<3x256xf32>
    %23 = arith.mulf %22, %20 : vector<3x256xf32>
    %cst_6 = arith.constant 2.000000e+00 : f32
    %24 = vector.broadcast %cst_6 : f32 to vector<3x256xf32>
    %25 = arith.mulf %24, %15 : vector<3x256xf32>
    %26 = arith.mulf %25, %15 : vector<3x256xf32>
    %cst_7 = arith.constant 1.000000e+00 : f32
    %27 = vector.broadcast %cst_7 : f32 to vector<3x256xf32>
    %28 = arith.subf %27, %26 : vector<3x256xf32>
    %cst_8 = arith.constant 2.000000e+00 : f32
    %29 = vector.broadcast %cst_8 : f32 to vector<3x256xf32>
    %30 = arith.mulf %29, %23 : vector<3x256xf32>
    %31 = arith.mulf %30, %28 : vector<3x256xf32>
    %cst_9 = arith.constant 2.000000e+00 : f32
    %32 = vector.broadcast %cst_9 : f32 to vector<3x256xf32>
    %33 = arith.mulf %32, %23 : vector<3x256xf32>
    %34 = arith.mulf %33, %23 : vector<3x256xf32>
    %cst_10 = arith.constant 1.000000e+00 : f32
    %35 = vector.broadcast %cst_10 : f32 to vector<3x256xf32>
    %36 = arith.subf %35, %34 : vector<3x256xf32>
    %37 = tpu.concatenate %5, %11, %12, %15, %20, %23, %28, %31, %36 in 0 : vector<3x256xf32>, vector<3x256xf32>, vector<3x256xf32>, vector<3x256xf32>, vector<3x256xf32>, vector<3x256xf32>, vector<3x256xf32>, vector<3x256xf32>, vector<3x256xf32> -> vector<27x256xf32>
    %38 = math.sin %7 : vector<1x256xf32>
    %39 = math.cos %7 : vector<1x256xf32>
    %cst_11 = arith.constant 2.000000e+00 : f32
    %40 = vector.broadcast %cst_11 : f32 to vector<1x256xf32>
    %41 = arith.mulf %40, %38 : vector<1x256xf32>
    %42 = arith.mulf %41, %39 : vector<1x256xf32>
    %cst_12 = arith.constant 2.000000e+00 : f32
    %43 = vector.broadcast %cst_12 : f32 to vector<1x256xf32>
    %44 = arith.mulf %43, %38 : vector<1x256xf32>
    %45 = arith.mulf %44, %38 : vector<1x256xf32>
    %cst_13 = arith.constant 1.000000e+00 : f32
    %46 = vector.broadcast %cst_13 : f32 to vector<1x256xf32>
    %47 = arith.subf %46, %45 : vector<1x256xf32>
    %cst_14 = arith.constant 2.000000e+00 : f32
    %48 = vector.broadcast %cst_14 : f32 to vector<1x256xf32>
    %49 = arith.mulf %48, %42 : vector<1x256xf32>
    %50 = arith.mulf %49, %47 : vector<1x256xf32>
    %cst_15 = arith.constant 2.000000e+00 : f32
    %51 = vector.broadcast %cst_15 : f32 to vector<1x256xf32>
    %52 = arith.mulf %51, %42 : vector<1x256xf32>
    %53 = arith.mulf %52, %42 : vector<1x256xf32>
    %cst_16 = arith.constant 1.000000e+00 : f32
    %54 = vector.broadcast %cst_16 : f32 to vector<1x256xf32>
    %55 = arith.subf %54, %53 : vector<1x256xf32>
    %cst_17 = arith.constant 2.000000e+00 : f32
    %56 = vector.broadcast %cst_17 : f32 to vector<1x256xf32>
    %57 = arith.mulf %56, %50 : vector<1x256xf32>
    %58 = arith.mulf %57, %55 : vector<1x256xf32>
    %cst_18 = arith.constant 2.000000e+00 : f32
    %59 = vector.broadcast %cst_18 : f32 to vector<1x256xf32>
    %60 = arith.mulf %59, %50 : vector<1x256xf32>
    %61 = arith.mulf %60, %50 : vector<1x256xf32>
    %cst_19 = arith.constant 1.000000e+00 : f32
    %62 = vector.broadcast %cst_19 : f32 to vector<1x256xf32>
    %63 = arith.subf %62, %61 : vector<1x256xf32>
    %64 = tpu.concatenate %7, %38, %39, %42, %47, %50, %55, %58, %63 in 0 : vector<1x256xf32>, vector<1x256xf32>, vector<1x256xf32>, vector<1x256xf32>, vector<1x256xf32>, vector<1x256xf32>, vector<1x256xf32>, vector<1x256xf32>, vector<1x256xf32> -> vector<9x256xf32>
    %c0_20 = arith.constant 0 : index
    %c0_21 = arith.constant 0 : index
    %65 = vector.load %arg4[%c0_20, %c0_21] : memref<360x32xf32, #tpu.memory_space<vmem>>, vector<32x27xf32>
    %cst_22 = arith.constant dense<0.000000e+00> : vector<32x256xf32>
    %66 = tpu.matmul %65, %37, %cst_22 {dimension_numbers = #tpu.dot_dimension_numbers<[1], [0], [0], [1], [0, 0, 1, 1], [], []>} : vector<32x27xf32>, vector<27x256xf32>, vector<32x256xf32> -> vector<32x256xf32>
    %c32 = arith.constant 32 : index
    %c0_23 = arith.constant 0 : index
    %67 = vector.load %arg4[%c32, %c0_23] : memref<360x32xf32, #tpu.memory_space<vmem>>, vector<32x9xf32>
    %cst_24 = arith.constant dense<0.000000e+00> : vector<32x256xf32>
    %68 = tpu.matmul %67, %64, %cst_24 {dimension_numbers = #tpu.dot_dimension_numbers<[1], [0], [0], [1], [0, 0, 1, 1], [], []>} : vector<32x9xf32>, vector<9x256xf32>, vector<32x256xf32> -> vector<32x256xf32>
    %69 = arith.addf %66, %68 : vector<32x256xf32>
    %c0_25 = arith.constant 0 : index
    %c0_26 = arith.constant 0 : index
    %70 = vector.load %arg5[%c0_25, %c0_26] : memref<360x1xf32, #tpu.memory_space<vmem>>, vector<32x1xf32>
    %71 = vector.broadcast %70 : vector<32x1xf32> to vector<32x256xf32>
    %72 = arith.addf %69, %71 : vector<32x256xf32>
    %cst_27 = arith.constant 0.000000e+00 : f32
    %73 = vector.broadcast %cst_27 : f32 to vector<32x256xf32>
    %74 = arith.maximumf %72, %73 : vector<32x256xf32>
    %c64 = arith.constant 64 : index
    %c0_28 = arith.constant 0 : index
    %75 = vector.load %arg4[%c64, %c0_28] : memref<360x32xf32, #tpu.memory_space<vmem>>, vector<32x32xf32>
    %cst_29 = arith.constant dense<0.000000e+00> : vector<32x256xf32>
    %76 = tpu.matmul %75, %74, %cst_29 {dimension_numbers = #tpu.dot_dimension_numbers<[1], [0], [0], [1], [0, 0, 1, 1], [], []>} : vector<32x32xf32>, vector<32x256xf32>, vector<32x256xf32> -> vector<32x256xf32>
    %c96 = arith.constant 96 : index
    %c0_30 = arith.constant 0 : index
    %77 = vector.load %arg4[%c96, %c0_30] : memref<360x32xf32, #tpu.memory_space<vmem>>, vector<32x27xf32>
    %cst_31 = arith.constant dense<0.000000e+00> : vector<32x256xf32>
    %78 = tpu.matmul %77, %37, %cst_31 {dimension_numbers = #tpu.dot_dimension_numbers<[1], [0], [0], [1], [0, 0, 1, 1], [], []>} : vector<32x27xf32>, vector<27x256xf32>, vector<32x256xf32> -> vector<32x256xf32>
    %79 = arith.addf %76, %78 : vector<32x256xf32>
    %c128 = arith.constant 128 : index
    %c0_32 = arith.constant 0 : index
    %80 = vector.load %arg4[%c128, %c0_32] : memref<360x32xf32, #tpu.memory_space<vmem>>, vector<32x9xf32>
    %cst_33 = arith.constant dense<0.000000e+00> : vector<32x256xf32>
    %81 = tpu.matmul %80, %64, %cst_33 {dimension_numbers = #tpu.dot_dimension_numbers<[1], [0], [0], [1], [0, 0, 1, 1], [], []>} : vector<32x9xf32>, vector<9x256xf32>, vector<32x256xf32> -> vector<32x256xf32>
    %82 = arith.addf %79, %81 : vector<32x256xf32>
    %c64_34 = arith.constant 64 : index
    %c0_35 = arith.constant 0 : index
    %83 = vector.load %arg5[%c64_34, %c0_35] : memref<360x1xf32, #tpu.memory_space<vmem>>, vector<32x1xf32>
    %84 = vector.broadcast %83 : vector<32x1xf32> to vector<32x256xf32>
    %85 = arith.addf %82, %84 : vector<32x256xf32>
    %cst_36 = arith.constant 0.000000e+00 : f32
    %86 = vector.broadcast %cst_36 : f32 to vector<32x256xf32>
    %87 = arith.maximumf %85, %86 : vector<32x256xf32>
    %c160 = arith.constant 160 : index
    %c0_37 = arith.constant 0 : index
    %88 = vector.load %arg4[%c160, %c0_37] : memref<360x32xf32, #tpu.memory_space<vmem>>, vector<3x32xf32>
    %cst_38 = arith.constant dense<0.000000e+00> : vector<3x256xf32>
    %89 = tpu.matmul %88, %87, %cst_38 {dimension_numbers = #tpu.dot_dimension_numbers<[1], [0], [0], [1], [0, 0, 1, 1], [], []>} : vector<3x32xf32>, vector<32x256xf32>, vector<3x256xf32> -> vector<3x256xf32>
    %90 = arith.addf %5, %89 : vector<3x256xf32>
    %c160_39 = arith.constant 160 : index
    %c0_40 = arith.constant 0 : index
    %91 = vector.load %arg5[%c160_39, %c0_40] : memref<360x1xf32, #tpu.memory_space<vmem>>, vector<3x1xf32>
    %92 = vector.broadcast %91 : vector<3x1xf32> to vector<3x256xf32>
    %93 = arith.addf %90, %92 : vector<3x256xf32>
    %94 = math.sin %93 : vector<3x256xf32>
    %95 = math.cos %93 : vector<3x256xf32>
    %cst_41 = arith.constant 2.000000e+00 : f32
    %96 = vector.broadcast %cst_41 : f32 to vector<3x256xf32>
    %97 = arith.mulf %96, %94 : vector<3x256xf32>
    %98 = arith.mulf %97, %95 : vector<3x256xf32>
    %cst_42 = arith.constant 2.000000e+00 : f32
    %99 = vector.broadcast %cst_42 : f32 to vector<3x256xf32>
    %100 = arith.mulf %99, %94 : vector<3x256xf32>
    %101 = arith.mulf %100, %94 : vector<3x256xf32>
    %cst_43 = arith.constant 1.000000e+00 : f32
    %102 = vector.broadcast %cst_43 : f32 to vector<3x256xf32>
    %103 = arith.subf %102, %101 : vector<3x256xf32>
    %cst_44 = arith.constant 2.000000e+00 : f32
    %104 = vector.broadcast %cst_44 : f32 to vector<3x256xf32>
    %105 = arith.mulf %104, %98 : vector<3x256xf32>
    %106 = arith.mulf %105, %103 : vector<3x256xf32>
    %cst_45 = arith.constant 2.000000e+00 : f32
    %107 = vector.broadcast %cst_45 : f32 to vector<3x256xf32>
    %108 = arith.mulf %107, %98 : vector<3x256xf32>
    %109 = arith.mulf %108, %98 : vector<3x256xf32>
    %cst_46 = arith.constant 1.000000e+00 : f32
    %110 = vector.broadcast %cst_46 : f32 to vector<3x256xf32>
    %111 = arith.subf %110, %109 : vector<3x256xf32>
    %cst_47 = arith.constant 2.000000e+00 : f32
    %112 = vector.broadcast %cst_47 : f32 to vector<3x256xf32>
    %113 = arith.mulf %112, %106 : vector<3x256xf32>
    %114 = arith.mulf %113, %111 : vector<3x256xf32>
    %cst_48 = arith.constant 2.000000e+00 : f32
    %115 = vector.broadcast %cst_48 : f32 to vector<3x256xf32>
    %116 = arith.mulf %115, %106 : vector<3x256xf32>
    %117 = arith.mulf %116, %106 : vector<3x256xf32>
    %cst_49 = arith.constant 1.000000e+00 : f32
    %118 = vector.broadcast %cst_49 : f32 to vector<3x256xf32>
    %119 = arith.subf %118, %117 : vector<3x256xf32>
    %120 = tpu.concatenate %93, %94, %95, %98, %103, %106, %111, %114, %119 in 0 : vector<3x256xf32>, vector<3x256xf32>, vector<3x256xf32>, vector<3x256xf32>, vector<3x256xf32>, vector<3x256xf32>, vector<3x256xf32>, vector<3x256xf32>, vector<3x256xf32> -> vector<27x256xf32>
    %c168 = arith.constant 168 : index
    %c0_50 = arith.constant 0 : index
    %121 = vector.load %arg4[%c168, %c0_50] : memref<360x32xf32, #tpu.memory_space<vmem>>, vector<32x27xf32>
    %cst_51 = arith.constant dense<0.000000e+00> : vector<32x256xf32>
    %122 = tpu.matmul %121, %120, %cst_51 {dimension_numbers = #tpu.dot_dimension_numbers<[1], [0], [0], [1], [0, 0, 1, 1], [], []>} : vector<32x27xf32>, vector<27x256xf32>, vector<32x256xf32> -> vector<32x256xf32>
    %c168_52 = arith.constant 168 : index
    %c0_53 = arith.constant 0 : index
    %123 = vector.load %arg5[%c168_52, %c0_53] : memref<360x1xf32, #tpu.memory_space<vmem>>, vector<32x1xf32>
    %124 = vector.broadcast %123 : vector<32x1xf32> to vector<32x256xf32>
    %125 = arith.addf %122, %124 : vector<32x256xf32>
    %cst_54 = arith.constant 0.000000e+00 : f32
    %126 = vector.broadcast %cst_54 : f32 to vector<32x256xf32>
    %127 = arith.maximumf %125, %126 : vector<32x256xf32>
    %c200 = arith.constant 200 : index
    %c0_55 = arith.constant 0 : index
    %128 = vector.load %arg4[%c200, %c0_55] : memref<360x32xf32, #tpu.memory_space<vmem>>, vector<32x32xf32>
    %cst_56 = arith.constant dense<0.000000e+00> : vector<32x256xf32>
    %129 = tpu.matmul %128, %127, %cst_56 {dimension_numbers = #tpu.dot_dimension_numbers<[1], [0], [0], [1], [0, 0, 1, 1], [], []>} : vector<32x32xf32>, vector<32x256xf32>, vector<32x256xf32> -> vector<32x256xf32>
    %c232 = arith.constant 232 : index
    %c0_57 = arith.constant 0 : index
    %130 = vector.load %arg4[%c232, %c0_57] : memref<360x32xf32, #tpu.memory_space<vmem>>, vector<32x27xf32>
    %cst_58 = arith.constant dense<0.000000e+00> : vector<32x256xf32>
    %131 = tpu.matmul %130, %120, %cst_58 {dimension_numbers = #tpu.dot_dimension_numbers<[1], [0], [0], [1], [0, 0, 1, 1], [], []>} : vector<32x27xf32>, vector<27x256xf32>, vector<32x256xf32> -> vector<32x256xf32>
    %132 = arith.addf %129, %131 : vector<32x256xf32>
    %c200_59 = arith.constant 200 : index
    %c0_60 = arith.constant 0 : index
    %133 = vector.load %arg5[%c200_59, %c0_60] : memref<360x1xf32, #tpu.memory_space<vmem>>, vector<32x1xf32>
    %134 = vector.broadcast %133 : vector<32x1xf32> to vector<32x256xf32>
    %135 = arith.addf %132, %134 : vector<32x256xf32>
    %cst_61 = arith.constant 0.000000e+00 : f32
    %136 = vector.broadcast %cst_61 : f32 to vector<32x256xf32>
    %137 = arith.maximumf %135, %136 : vector<32x256xf32>
    %c264 = arith.constant 264 : index
    %c0_62 = arith.constant 0 : index
    %138 = vector.load %arg4[%c264, %c0_62] : memref<360x32xf32, #tpu.memory_space<vmem>>, vector<17x32xf32>
    %cst_63 = arith.constant dense<0.000000e+00> : vector<17x256xf32>
    %139 = tpu.matmul %138, %137, %cst_63 {dimension_numbers = #tpu.dot_dimension_numbers<[1], [0], [0], [1], [0, 0, 1, 1], [], []>} : vector<17x32xf32>, vector<32x256xf32>, vector<17x256xf32> -> vector<17x256xf32>
    %c264_64 = arith.constant 264 : index
    %c0_65 = arith.constant 0 : index
    %140 = vector.load %arg5[%c264_64, %c0_65] : memref<360x1xf32, #tpu.memory_space<vmem>>, vector<17x1xf32>
    %141 = vector.broadcast %140 : vector<17x1xf32> to vector<17x256xf32>
    %142 = arith.addf %139, %141 : vector<17x256xf32>
    %143 = vector.extract_strided_slice %142 {offsets = [0, 0], sizes = [16, 256], strides = [1, 1]} : vector<17x256xf32> to vector<16x256xf32>
    %144 = vector.extract_strided_slice %142 {offsets = [16, 0], sizes = [1, 256], strides = [1, 1]} : vector<17x256xf32> to vector<1x256xf32>
    %145 = arith.addf %144, %8 : vector<1x256xf32>
    %cst_66 = arith.constant 0.000000e+00 : f32
    %146 = vector.broadcast %cst_66 : f32 to vector<1x256xf32>
    %147 = arith.maximumf %145, %146 : vector<1x256xf32>
    %148 = math.sin %6 : vector<3x256xf32>
    %149 = math.cos %6 : vector<3x256xf32>
    %cst_67 = arith.constant 2.000000e+00 : f32
    %150 = vector.broadcast %cst_67 : f32 to vector<3x256xf32>
    %151 = arith.mulf %150, %148 : vector<3x256xf32>
    %152 = arith.mulf %151, %149 : vector<3x256xf32>
    %cst_68 = arith.constant 2.000000e+00 : f32
    %153 = vector.broadcast %cst_68 : f32 to vector<3x256xf32>
    %154 = arith.mulf %153, %148 : vector<3x256xf32>
    %155 = arith.mulf %154, %148 : vector<3x256xf32>
    %cst_69 = arith.constant 1.000000e+00 : f32
    %156 = vector.broadcast %cst_69 : f32 to vector<3x256xf32>
    %157 = arith.subf %156, %155 : vector<3x256xf32>
    %158 = tpu.concatenate %6, %148, %149, %152, %157 in 0 : vector<3x256xf32>, vector<3x256xf32>, vector<3x256xf32>, vector<3x256xf32>, vector<3x256xf32> -> vector<15x256xf32>
    %c288 = arith.constant 288 : index
    %c0_70 = arith.constant 0 : index
    %159 = vector.load %arg4[%c288, %c0_70] : memref<360x32xf32, #tpu.memory_space<vmem>>, vector<32x15xf32>
    %cst_71 = arith.constant dense<0.000000e+00> : vector<32x256xf32>
    %160 = tpu.matmul %159, %158, %cst_71 {dimension_numbers = #tpu.dot_dimension_numbers<[1], [0], [0], [1], [0, 0, 1, 1], [], []>} : vector<32x15xf32>, vector<15x256xf32>, vector<32x256xf32> -> vector<32x256xf32>
    %c320 = arith.constant 320 : index
    %c0_72 = arith.constant 0 : index
    %161 = vector.load %arg4[%c320, %c0_72] : memref<360x32xf32, #tpu.memory_space<vmem>>, vector<32x16xf32>
    %cst_73 = arith.constant dense<0.000000e+00> : vector<32x256xf32>
    %162 = tpu.matmul %161, %143, %cst_73 {dimension_numbers = #tpu.dot_dimension_numbers<[1], [0], [0], [1], [0, 0, 1, 1], [], []>} : vector<32x16xf32>, vector<16x256xf32>, vector<32x256xf32> -> vector<32x256xf32>
    %163 = arith.addf %160, %162 : vector<32x256xf32>
    %c288_74 = arith.constant 288 : index
    %c0_75 = arith.constant 0 : index
    %164 = vector.load %arg5[%c288_74, %c0_75] : memref<360x1xf32, #tpu.memory_space<vmem>>, vector<32x1xf32>
    %165 = vector.broadcast %164 : vector<32x1xf32> to vector<32x256xf32>
    %166 = arith.addf %163, %165 : vector<32x256xf32>
    %cst_76 = arith.constant 0.000000e+00 : f32
    %167 = vector.broadcast %cst_76 : f32 to vector<32x256xf32>
    %168 = arith.maximumf %166, %167 : vector<32x256xf32>
    %c352 = arith.constant 352 : index
    %c0_77 = arith.constant 0 : index
    %169 = vector.load %arg4[%c352, %c0_77] : memref<360x32xf32, #tpu.memory_space<vmem>>, vector<3x32xf32>
    %cst_78 = arith.constant dense<0.000000e+00> : vector<3x256xf32>
    %170 = tpu.matmul %169, %168, %cst_78 {dimension_numbers = #tpu.dot_dimension_numbers<[1], [0], [0], [1], [0, 0, 1, 1], [], []>} : vector<3x32xf32>, vector<32x256xf32>, vector<3x256xf32> -> vector<3x256xf32>
    %c352_79 = arith.constant 352 : index
    %c0_80 = arith.constant 0 : index
    %171 = vector.load %arg5[%c352_79, %c0_80] : memref<360x1xf32, #tpu.memory_space<vmem>>, vector<3x1xf32>
    %172 = vector.broadcast %171 : vector<3x1xf32> to vector<3x256xf32>
    %173 = arith.addf %170, %172 : vector<3x256xf32>
    %174 = arith.negf %173 : vector<3x256xf32>
    %175 = math.exp %174 : vector<3x256xf32>
    %cst_81 = arith.constant 1.000000e+00 : f32
    %176 = vector.broadcast %cst_81 : f32 to vector<3x256xf32>
    %177 = arith.addf %176, %175 : vector<3x256xf32>
    %178 = arith.divf %176, %177 : vector<3x256xf32>
    %cst_82 = arith.constant 0.000000e+00 : f32
    %179 = vector.broadcast %cst_82 : f32 to vector<1x256xf32>
    %180 = arith.subf %179, %147 : vector<1x256xf32>
    %181 = arith.mulf %180, %10 : vector<1x256xf32>
    %182 = math.exp %181 : vector<1x256xf32>
    %cst_83 = arith.constant 1.000000e+00 : f32
    %183 = vector.broadcast %cst_83 : f32 to vector<1x256xf32>
    %184 = arith.subf %183, %182 : vector<1x256xf32>
    %c0_84 = arith.constant 0 : index
    %c0_85 = arith.constant 0 : index
    %185 = vector.load %arg7[%c0_84, %c0_85] : memref<1x256xf32, #tpu.memory_space<vmem>>, vector<1x256xf32>
    %186 = arith.mulf %184, %185 : vector<1x256xf32>
    %c0_86 = arith.constant 0 : index
    %c0_87 = arith.constant 0 : index
    %187 = vector.load %arg7[%c0_86, %c0_87] : memref<1x256xf32, #tpu.memory_space<vmem>>, vector<1x256xf32>
    %cst_88 = arith.constant 1.000000e+00 : f32
    %188 = vector.broadcast %cst_88 : f32 to vector<1x256xf32>
    %189 = arith.subf %188, %184 : vector<1x256xf32>
    %cst_89 = arith.constant 1.000000e-10 : f32
    %190 = vector.broadcast %cst_89 : f32 to vector<1x256xf32>
    %191 = arith.addf %189, %190 : vector<1x256xf32>
    %192 = arith.mulf %187, %191 : vector<1x256xf32>
    %c0_90 = arith.constant 0 : index
    %c0_91 = arith.constant 0 : index
    %193 = vector.load %arg7[%c0_90, %c0_91] : memref<1x256xf32, #tpu.memory_space<vmem>>, vector<1x256xf32>
    tpu.vector_store %arg7[%c0_90, %c0_91], %192 {strides = array<i32>} : memref<1x256xf32, #tpu.memory_space<vmem>>, vector<1x256xf32>,
    %c0_92 = arith.constant 0 : index
    %c0_93 = arith.constant 0 : index
    %194 = vector.load %arg8[%c0_92, %c0_93] : memref<3x256xf32, #tpu.memory_space<vmem>>, vector<3x256xf32>
    %195 = vector.broadcast %186 : vector<1x256xf32> to vector<3x256xf32>
    %196 = arith.mulf %195, %178 : vector<3x256xf32>
    %197 = arith.addf %194, %196 : vector<3x256xf32>
    %c0_94 = arith.constant 0 : index
    %c0_95 = arith.constant 0 : index
    %198 = vector.load %arg8[%c0_94, %c0_95] : memref<3x256xf32, #tpu.memory_space<vmem>>, vector<3x256xf32>
    tpu.vector_store %arg8[%c0_94, %c0_95], %197 {strides = array<i32>} : memref<3x256xf32, #tpu.memory_space<vmem>>, vector<3x256xf32>,
    %c0_96 = arith.constant 0 : index
    %c0_97 = arith.constant 0 : index
    %199 = vector.load %arg9[%c0_96, %c0_97] : memref<1x256xf32, #tpu.memory_space<vmem>>, vector<1x256xf32>
    %200 = arith.mulf %186, %9 : vector<1x256xf32>
    %201 = arith.addf %199, %200 : vector<1x256xf32>
    %c0_98 = arith.constant 0 : index
    %c0_99 = arith.constant 0 : index
    %202 = vector.load %arg9[%c0_98, %c0_99] : memref<1x256xf32, #tpu.memory_space<vmem>>, vector<1x256xf32>
    tpu.vector_store %arg9[%c0_98, %c0_99], %201 {strides = array<i32>} : memref<1x256xf32, #tpu.memory_space<vmem>>, vector<1x256xf32>,
    %c0_100 = arith.constant 0 : index
    %c0_101 = arith.constant 0 : index
    %203 = vector.load %arg10[%c0_100, %c0_101] : memref<1x256xf32, #tpu.memory_space<vmem>>, vector<1x256xf32>
    %204 = arith.addf %203, %186 : vector<1x256xf32>
    %c0_102 = arith.constant 0 : index
    %c0_103 = arith.constant 0 : index
    %205 = vector.load %arg10[%c0_102, %c0_103] : memref<1x256xf32, #tpu.memory_space<vmem>>, vector<1x256xf32>
    tpu.vector_store %arg10[%c0_102, %c0_103], %204 {strides = array<i32>} : memref<1x256xf32, #tpu.memory_space<vmem>>, vector<1x256xf32>,
    %c7_i32 = arith.constant 7 : i32
    %206 = arith.cmpi eq, %arg1, %c7_i32 : i32
    %207 = arith.extui %206 : i1 to i32
    %c0_i32_104 = arith.constant 0 : i32
    %208 = arith.cmpi ne, %207, %c0_i32_104 : i32
    scf.if %208 {
      %c0_105 = arith.constant 0 : index
      %c0_106 = arith.constant 0 : index
      %209 = vector.load %arg9[%c0_105, %c0_106] : memref<1x256xf32, #tpu.memory_space<vmem>>, vector<1x256xf32>
      %c0_107 = arith.constant 0 : index
      %c0_108 = arith.constant 0 : index
      %210 = vector.load %arg3[%c0_107, %c0_108] : memref<1x256xf32, #tpu.memory_space<vmem>>, vector<1x256xf32>
      %211 = arith.mulf %209, %210 : vector<1x256xf32>
      %c0_109 = arith.constant 0 : index
      %c0_110 = arith.constant 0 : index
      %212 = vector.load %arg10[%c0_109, %c0_110] : memref<1x256xf32, #tpu.memory_space<vmem>>, vector<1x256xf32>
      %cst_111 = arith.constant 9.99999997E-7 : f32
      %213 = vector.broadcast %cst_111 : f32 to vector<1x256xf32>
      %214 = arith.addf %212, %213 : vector<1x256xf32>
      %215 = arith.divf %211, %214 : vector<1x256xf32>
      %cst_112 = arith.constant 1.000000e-10 : f32
      %216 = vector.broadcast %cst_112 : f32 to vector<1x256xf32>
      %217 = arith.maximumf %216, %215 : vector<1x256xf32>
      %cst_113 = arith.constant 1.000000e+00 : f32
      %218 = vector.broadcast %cst_113 : f32 to vector<1x256xf32>
      %219 = arith.divf %218, %217 : vector<1x256xf32>
      %cst_114 = arith.constant 9.99999997E-7 : f32
      %220 = vector.broadcast %cst_114 : f32 to vector<1x256xf32>
      %221 = arith.addf %219, %220 : vector<1x256xf32>
      %cst_115 = arith.constant 1.000000e+00 : f32
      %222 = vector.broadcast %cst_115 : f32 to vector<1x256xf32>
      %223 = arith.divf %222, %221 : vector<1x256xf32>
      %c0_116 = arith.constant 0 : index
      %c0_117 = arith.constant 0 : index
      %224 = vector.load %arg8[%c0_116, %c0_117] : memref<3x256xf32, #tpu.memory_space<vmem>>, vector<3x256xf32>
      %225 = tpu.concatenate %224, %223 in 0 : vector<3x256xf32>, vector<1x256xf32> -> vector<4x256xf32>
      %c0_118 = arith.constant 0 : index
      %c0_119 = arith.constant 0 : index
      %226 = vector.load %arg6[%c0_118, %c0_119] : memref<4x256xf32, #tpu.memory_space<vmem>>, vector<4x256xf32>
      tpu.vector_store %arg6[%c0_118, %c0_119], %225 {strides = array<i32>} : memref<4x256xf32, #tpu.memory_space<vmem>>, vector<4x256xf32>,
    } else {
    }
    return
  }
  func.func @transform_0(%arg0: i32, %arg1: i32) -> (i32, i32, i32) {
    %c0_i32 = arith.constant 0 : i32
    %c0_i32_0 = arith.constant 0 : i32
    return %arg1, %c0_i32, %arg0 : i32, i32, i32
  }
  func.func @transform_1(%arg0: i32, %arg1: i32) -> (i32, i32) {
    %c0_i32 = arith.constant 0 : i32
    %c0_i32_0 = arith.constant 0 : i32
    return %c0_i32, %arg0 : i32, i32
  }
  func.func @transform_2(%arg0: i32, %arg1: i32) -> (i32, i32) {
    %c0_i32 = arith.constant 0 : i32
    %c0_i32_0 = arith.constant 0 : i32
    %c0_i32_1 = arith.constant 0 : i32
    return %c0_i32, %c0_i32_0 : i32, i32
  }
  func.func @transform_3(%arg0: i32, %arg1: i32) -> (i32, i32) {
    %c0_i32 = arith.constant 0 : i32
    %c0_i32_0 = arith.constant 0 : i32
    %c0_i32_1 = arith.constant 0 : i32
    return %c0_i32, %c0_i32_0 : i32, i32
  }
  func.func @transform_4(%arg0: i32, %arg1: i32) -> (i32, i32) {
    %c0_i32 = arith.constant 0 : i32
    %c0_i32_0 = arith.constant 0 : i32
    return %c0_i32, %arg0 : i32, i32
  }
}

</mosaic_0001>

<llo_original>
// kernel: tpu_custom_call.1
$region0: #{tpu_custom_call.1}
  #allocation0 [shape = 'u32[]', space=smem, size = 0x4, offset = 0x4, fixed_abs, tag = 'smem constant byte address 0x4 - core index']
  #allocation1 [shape = 'u32[144,128]{1,0:T(1,128)}', space=vmem, size = 0x12000, scoped, tag = 'internal scratch']
  #allocation2 [shape = 'f32[1,256]{1,0:T(1,128)}', space=vmem, size = 0x400, scoped, tag = 'scratch operand']
  #allocation3 [shape = 'f32[3,256]{1,0:T(4,128)}', space=vmem, size = 0x1000, scoped, tag = 'scratch operand']
  #allocation4 [shape = 'f32[1,256]{1,0:T(1,128)}', space=vmem, size = 0x400, scoped, tag = 'scratch operand']
  #allocation5 [shape = 'f32[1,256]{1,0:T(1,128)}', space=vmem, size = 0x400, scoped, tag = 'scratch operand']
  %s0 = inlined_call_operand.vmem [shape: f32[8,10,512], index: 0, kind: input, shape index: {}]
  %s1 = inlined_call_operand.vmem [shape: f32[1,512], index: 1, kind: input, shape index: {}]
  %s2 = inlined_call_operand.vmem [shape: f32[360,32], index: 2, kind: input, shape index: {}]
  %s3 = inlined_call_operand.vmem [shape: f32[360,1], index: 3, kind: input, shape index: {}]
  %s4 = inlined_call_operand.hbm [shape: f32[4,512], index: 4, kind: output, shape index: {}]
  %s5 = sld [smem:[#allocation0]]
  $region80: #{tpu_custom_call.1} parent=0
    _
  %s7 = ssub.s32 1, %s5
  %s8 = scalar_select 0, %s7, %s5
  $region1: #{tpu_custom_call.1} parent=0
    #allocation6 [shape = 'u8[32768]{0}', space=vmem, size = 0x8000, scoped, tag = 'input window, operand 0']
    #allocation7 [shape = 'u8[8192]{0}', space=vmem, size = 0x2000, scoped, tag = 'output window, operand 0']
    #allocation8 [shape = 's32[2]{0}', space=sflag, size = 0x8, scoped, tag = 'scoped memory for tpu_custom_call.1']
    %9 = vsyncpa [#allocation8], 0
    %s10 = scalar_lea.sflag [#allocation8], 1
    %11 = vsyncpa %s10, 0
    loop: start=0, step=1, limit=18
    $region2: #{tpu_custom_call.1} parent=1 // loop_pre_header
      _
    $region3: #{tpu_custom_call.1} parent=1 // loop_header
      %s13 = sphi 0, %s17
      %p14 = scmp.ge.s32.totalorder %s13, 18
      %s20 = sphi 0, %s32
      %s21 = sphi 0, %s28
      %s22 = sphi 0, %s20
      %s23 = sphi 0, %s21
      %s24 = sphi 0, %s22
      %s25 = sphi 0, %s23
      %s37 = sphi 0, %s39
      %s40 = sphi 0, %s37
      %s41 = sphi 0, %s40
      %s57 = sphi 0, %s41
      %s63 = sphi 0, %s65
      %s66 = sphi 0, %s63
      %s67 = sphi 0, %s66
      %s83 = sphi 0, %s67
      %s87 = sphi 0, %s87
      %s89 = sphi 0, %s87
      %s90 = sphi 0, %s89
      %s104 = sphi 0, %s90
      %s108 = sphi 0, %s108
      %s110 = sphi 0, %s108
      %s111 = sphi 0, %s110
      %s125 = sphi 0, %s111
      %s131 = sphi 0, %s133
      %s134 = sphi 0, %s131
      %s135 = sphi 0, %s134
      %s151 = sphi 0, %s135
    $region4: #{tpu_custom_call.1} parent=1 // loop_header_branch
      %16 = sbr.rel (%p14) target = $region8
    $region5: #{tpu_custom_call.1} parent=1 // loop_body
      %s18 = ssub.s32 %s13, 1
      %s19 = ssub.s32 %s13, 2
      %s26 = sadd.s32 1, %s21
      %p27 = scmp.ge.s32.totalorder %s26, 8
      %s28 = scalar_select %p27, 0, %s26
      %s29 = sadd.s32 1, %s20
      %s30 = scalar_select %p27, %s29, %s20
      %p31 = scmp.ge.s32.totalorder %s30, 2
      %s32 = scalar_select %p31, 0, %s30
      %s33 = ssub.s32 %s21, %s28
      %s34 = ssub.s32 %s20, %s32
      %s35 = sor.u32 %s33, %s34
      %p36 = scmp.eq.s32.totalorder %s35, 0
      %s38 = sadd.s32 %s37, 1
      %s39 = scalar_select %p36, %s37, %s38
      %p42 = pneg %p36
      %p43 = scmp.eq.s32.totalorder %s13, 15
      %p44 = por %p42, %p43
      %p45 = scmp.ne.s32.totalorder %s37, %s40
      %p46 = scmp.eq.s32.totalorder %s13, 0
      %p47 = por %p45, %p46
      %p48 = scmp.ne.s32.totalorder %s37, %s40
      %p49 = scmp.eq.s32.totalorder %s18, 15
      %p50 = por %p48, %p49
      %p51 = scmp.ne.s32.totalorder %s40, %s41
      %p52 = scmp.eq.s32.totalorder %s18, 0
      %p53 = por %p51, %p52
      %p54 = scmp.ne.s32.totalorder %s40, %s41
      %p55 = scmp.eq.s32.totalorder %s19, 15
      %p56 = por %p54, %p55
      %p58 = scmp.ne.s32.totalorder %s41, %s57
      %p59 = scmp.eq.s32.totalorder %s19, 0
      %p60 = por %p58, %p59
      %s61 = ssub.s32 %s20, %s32
      %p62 = scmp.eq.s32.totalorder %s61, 0
      %s64 = sadd.s32 %s63, 1
      %s65 = scalar_select %p62, %s63, %s64
      %p68 = pneg %p62
      %p69 = scmp.eq.s32.totalorder %s13, 15
      %p70 = por %p68, %p69
      %p71 = scmp.ne.s32.totalorder %s63, %s66
      %p72 = scmp.eq.s32.totalorder %s13, 0
      %p73 = por %p71, %p72
      %p74 = scmp.ne.s32.totalorder %s63, %s66
      %p75 = scmp.eq.s32.totalorder %s18, 15
      %p76 = por %p74, %p75
      %p77 = scmp.ne.s32.totalorder %s66, %s67
      %p78 = scmp.eq.s32.totalorder %s18, 0
      %p79 = por %p77, %p78
      %p80 = scmp.ne.s32.totalorder %s66, %s67
      %p81 = scmp.eq.s32.totalorder %s19, 15
      %p82 = por %p80, %p81
      %p84 = scmp.ne.s32.totalorder %s67, %s83
      %p85 = scmp.eq.s32.totalorder %s19, 0
      %p86 = por %p84, %p85
      %s88 = sadd.s32 %s87, 1
      %p91 = scmp.eq.s32.totalorder %s13, 15
      %p92 = scmp.ne.s32.totalorder %s87, %s89
      %p93 = scmp.eq.s32.totalorder %s13, 0
      %p94 = por %p92, %p93
      %p95 = scmp.ne.s32.totalorder %s87, %s89
      %p96 = scmp.eq.s32.totalorder %s18, 15
      %p97 = por %p95, %p96
      %p98 = scmp.ne.s32.totalorder %s89, %s90
      %p99 = scmp.eq.s32.totalorder %s18, 0
      %p100 = por %p98, %p99
      %p101 = scmp.ne.s32.totalorder %s89, %s90
      %p102 = scmp.eq.s32.totalorder %s19, 15
      %p103 = por %p101, %p102
      %p105 = scmp.ne.s32.totalorder %s90, %s104
      %p106 = scmp.eq.s32.totalorder %s19, 0
      %p107 = por %p105, %p106
      %s109 = sadd.s32 %s108, 1
      %p112 = scmp.eq.s32.totalorder %s13, 15
      %p113 = scmp.ne.s32.totalorder %s108, %s110
      %p114 = scmp.eq.s32.totalorder %s13, 0
      %p115 = por %p113, %p114
      %p116 = scmp.ne.s32.totalorder %s108, %s110
      %p117 = scmp.eq.s32.totalorder %s18, 15
      %p118 = por %p116, %p117
      %p119 = scmp.ne.s32.totalorder %s110, %s111
      %p120 = scmp.eq.s32.totalorder %s18, 0
      %p121 = por %p119, %p120
      %p122 = scmp.ne.s32.totalorder %s110, %s111
      %p123 = scmp.eq.s32.totalorder %s19, 15
      %p124 = por %p122, %p123
      %p126 = scmp.ne.s32.totalorder %s111, %s125
      %p127 = scmp.eq.s32.totalorder %s19, 0
      %p128 = por %p126, %p127
      %s129 = ssub.s32 %s20, %s32
      %p130 = scmp.eq.s32.totalorder %s129, 0
      %s132 = sadd.s32 %s131, 1
      %s133 = scalar_select %p130, %s131, %s132
      %p136 = pneg %p130
      %p137 = scmp.eq.s32.totalorder %s13, 15
      %p138 = por %p136, %p137
      %p139 = scmp.ne.s32.totalorder %s131, %s134
      %p140 = scmp.eq.s32.totalorder %s13, 0
      %p141 = por %p139, %p140
      %p142 = scmp.ne.s32.totalorder %s131, %s134
      %p143 = scmp.eq.s32.totalorder %s18, 15
      %p144 = por %p142, %p143
      %p145 = scmp.ne.s32.totalorder %s134, %s135
      %p146 = scmp.eq.s32.totalorder %s18, 0
      %p147 = por %p145, %p146
      %p148 = scmp.ne.s32.totalorder %s134, %s135
      %p149 = scmp.eq.s32.totalorder %s19, 15
      %p150 = por %p148, %p149
      %p152 = scmp.ne.s32.totalorder %s135, %s151
      %p153 = scmp.eq.s32.totalorder %s19, 0
      %p154 = por %p152, %p153
      %p155 = scmp.le.s32.totalorder 1, %s13
      %p156 = scmp.lt.s32.totalorder %s13, 17
      %p157 = pnand %p155, %p156
      %p158 = pneg %p157
      // Predicated region
      $region9: #{tpu_custom_call.1} parent=5 // pred_check
        _
      $region10: #{tpu_custom_call.1} parent=5 // pred_check_branch
        %160 = sbr.rel (%p157) target = $region12
      $region11: #{tpu_custom_call.1} parent=5 // pred_region
        %s161 = ssub.s32 %s13, 1
        // Predicated region
        $region13: #{tpu_custom_call.1} parent=11 // pred_check
          %p162 = pneg %p100
        $region14: #{tpu_custom_call.1} parent=11 // pred_check_branch
          %164 = sbr.rel (%p162) target = $region16
        $region15: #{tpu_custom_call.1} parent=11 // pred_region
          _
        $region16: #{tpu_custom_call.1} parent=11 // pred_fallthru
          _
        // Predicated region
        $region17: #{tpu_custom_call.1} parent=11 // pred_check
          %p165 = pneg %p121
        $region18: #{tpu_custom_call.1} parent=11 // pred_check_branch
          %167 = sbr.rel (%p165) target = $region20
        $region19: #{tpu_custom_call.1} parent=11 // pred_region
          _
        $region20: #{tpu_custom_call.1} parent=11 // pred_fallthru
          _
      $region12: #{tpu_custom_call.1} parent=5 // pred_fallthru
        _
      %p168 = scmp.lt.s32.totalorder %s13, 16
      // Predicated region
      $region21: #{tpu_custom_call.1} parent=5 // pred_check
        %p169 = pneg %p168
      $region22: #{tpu_custom_call.1} parent=5 // pred_check_branch
        %171 = sbr.rel (%p169) target = $region24
      $region23: #{tpu_custom_call.1} parent=5 // pred_region
        // Predicated region
        $region25: #{tpu_custom_call.1} parent=23 // pred_check
          %p172 = pneg %p47
        $region26: #{tpu_custom_call.1} parent=23 // pred_check_branch
          %174 = sbr.rel (%p172) target = $region28
        $region27: #{tpu_custom_call.1} parent=23 // pred_region
          %s175 = sand.u32 %s37, 1
          %s176 = sand.u32 %s37, 1
          %s177 = smul.addr %s176, 32
          %s178 = scalar_lea.vmem [#allocation6], %s177
          %s179 = smul.u32 2, %s20
          %s180 = smul.addr %s21, 8
          %s181 = sadd.s32 %s179, %s180
          %s182 = smul.addr %s181, 8
          %s183 = scalar_lea.vmem %s0, %s182
          // Predicated region
          $region29: #{tpu_custom_call.1} parent=27 // pred_check
            _
          $region30: #{tpu_custom_call.1} parent=27 // pred_check_branch
            %185 = sbr.rel (0) target = $region32
          $region31: #{tpu_custom_call.1} parent=27 // pred_region
            // Predicated region
            $region33: #{tpu_custom_call.1} parent=31 // pred_check
              _
            $region34: #{tpu_custom_call.1} parent=31 // pred_check_branch
              %187 = sbr.rel (0) target = $region36
            $region35: #{tpu_custom_call.1} parent=31 // pred_region
              loop: start=0, step=1, limit=1
              $region37: #{tpu_custom_call.1} parent=35 // loop_pre_header
                _
              $region38: #{tpu_custom_call.1} parent=35 // loop_header
                %s189 = sphi 0, %s193
                %p190 = scmp.ge.s32.totalorder %s189, 1
                %s194 = sphi %s183, %s183
                %s195 = sphi %s178, %s178
              $region39: #{tpu_custom_call.1} parent=35 // loop_header_branch
                %192 = sbr.rel (%p190) target = $region43
              $region40: #{tpu_custom_call.1} parent=35 // loop_body
                %v196 = vld [vmem:[%s194] sm:$0xff]
                %197 = vst [vmem:[%s195] sm:$0xff] %v196
                %v198 = vld [vmem:[%s194 + $0x8] sm:$0xff]
                %199 = vst [vmem:[%s195 + $0x8] sm:$0xff] %v198
                %v200 = vld [vmem:[%s194 + $0x20] sm:$0xff]
                %201 = vst [vmem:[%s195 + $0x10] sm:$0xff] %v200
                %v202 = vld [vmem:[%s194 + $0x28] sm:$0xff]
                %203 = vst [vmem:[%s195 + $0x18] sm:$0xff] %v202
              $region41: #{tpu_custom_call.1} parent=35 // loop_footer
                %s193 = sadd.s32 1, %s189
              $region42: #{tpu_custom_call.1} parent=35 // loop_footer_branch
                %188 = sbr.rel target = $region38
              $region43: #{tpu_custom_call.1} parent=35 // loop_exit
                _
            $region36: #{tpu_custom_call.1} parent=31 // pred_fallthru
              _
            // Predicated region
            $region44: #{tpu_custom_call.1} parent=31 // pred_check
              _
            $region45: #{tpu_custom_call.1} parent=31 // pred_check_branch
              %205 = sbr.rel target = $region47
            $region46: #{tpu_custom_call.1} parent=31 // pred_region
              _
            $region47: #{tpu_custom_call.1} parent=31 // pred_fallthru
              _
          $region32: #{tpu_custom_call.1} parent=27 // pred_fallthru
            _
          %206 = vnop
        $region28: #{tpu_custom_call.1} parent=23 // pred_fallthru
          _
        // Predicated region
        $region48: #{tpu_custom_call.1} parent=23 // pred_check
          %p207 = pneg %p73
        $region49: #{tpu_custom_call.1} parent=23 // pred_check_branch
          %209 = sbr.rel (%p207) target = $region51
        $region50: #{tpu_custom_call.1} parent=23 // pred_region
          %s210 = smul.u32 2, %s20
          %p211 = scmp.lt.s32.totalorder %s210, 3
          %s212 = scalar_select %p211, %s210, 3
          %s213 = scalar_lea.vmem %s1, %s212
          %s214 = smul.u32 2, %s20
        $region51: #{tpu_custom_call.1} parent=23 // pred_fallthru
          _
      $region24: #{tpu_custom_call.1} parent=5 // pred_fallthru
        _
      %p215 = scmp.le.s32.totalorder 1, %s13
      %p216 = scmp.lt.s32.totalorder %s13, 17
      %p217 = pnand %p215, %p216
      %p218 = pneg %p217
      // Predicated region
      $region52: #{tpu_custom_call.1} parent=5 // pred_check
        _
      $region53: #{tpu_custom_call.1} parent=5 // pred_check_branch
        %220 = sbr.rel (%p217) target = $region55
      $region54: #{tpu_custom_call.1} parent=5 // pred_region
        %s221 = ssub.s32 %s13, 1
        %s222 = sand.u32 %s40, 1
        %s223 = sand.u32 %s40, 1
        %s224 = smul.addr %s223, 32
        %s225 = scalar_lea.vmem [#allocation6], %s224
        // Predicated region
        $region56: #{tpu_custom_call.1} parent=54 // pred_check
          %p226 = pneg %p53
        $region57: #{tpu_custom_call.1} parent=54 // pred_check_branch
          %228 = sbr.rel (%p226) target = $region59
        $region58: #{tpu_custom_call.1} parent=54 // pred_region
          _
        $region59: #{tpu_custom_call.1} parent=54 // pred_fallthru
          _
        %s229 = sand.u32 %s40, 1
        %s230 = sand.u32 %s40, 1
        %s231 = smul.addr %s230, 32
        %s232 = scalar_lea.vmem [#allocation6], %s231
        %p233 = pneg %p53
        %p234 = pneg %p50
        %s235 = smul.u32 2, %s22
        %p236 = scmp.lt.s32.totalorder %s235, 3
        %s237 = scalar_select %p236, %s235, 3
        %s238 = scalar_lea.vmem %s1, %s237
        %p239 = pneg %p79
        %p240 = pneg %p76
        %p241 = pneg %p100
        %p242 = pneg %p97
        %p243 = pneg %p121
        %p244 = pneg %p118
        %p245 = pneg %p147
        %p246 = pneg %p144
        %s247 = sand.u32 %s134, 1
        %s248 = scalar_lea.sflag [#allocation8], %s247
        %s249 = sand.u32 %s134, 1
        %s250 = smul.addr %s249, 8
        %s251 = scalar_lea.vmem [#allocation7], %s250
        %s252 = smul.u32 2, %s22
        %s253 = smul.u32 2, %s22
        %p254 = scmp.lt.s32.totalorder %s253, 3
        %s255 = scalar_select %p254, %s253, 3
        %s256 = scalar_lea.vmem %s1, %s255
        %s257 = smul.u32 2, %s22
        %s258 = smul.u32 2, %s22
        %p259 = scmp.eq.s32.totalorder %s23, 0
        // Predicated region
        $region60: #{tpu_custom_call.1} parent=54 // pred_check
          %p260 = pneg %p259
        $region61: #{tpu_custom_call.1} parent=54 // pred_check_branch
          %262 = sbr.rel (%p260) target = $region63
        $region62: #{tpu_custom_call.1} parent=54 // pred_region
          %v263 = vlaneseq
          %vm264 = vcmp.ge.s32.totalorder %v263, 0
          %vm265 = vcmp.lt.s32.totalorder %v263, 256
          %vm266 = vmand %vm264, %vm265
          %267 = vst.msk [vmem:[#allocation2] sm:$0x3] %vm266, 1.0
          %268 = vst [vmem:[#allocation3] sm:$0x77] 0.0
          %269 = vst.msk [vmem:[#allocation4] sm:$0x3] %vm266, 0.0
          %270 = vst.msk [vmem:[#allocation5] sm:$0x3] %vm266, 0.0
        $region63: #{tpu_custom_call.1} parent=54 // pred_fallthru
          _
        %v271 = vld [vmem:[%s225] sm:$0xff]
        %v272 = vld [vmem:[%s225 + $0x8] sm:$0xff]
        %v273 = vld [vmem:[%s225 + $0x10] sm:$0x3]
        %v274 = vld [vmem:[%s225 + $0x18] sm:$0x3]
        %v275 = vand.u32 2147483647, %v271
        %vm276 = vcmp.le.f32.partialorder %v275, 0.7853982
        %vm277 = vcmp.lt.s32.totalorder %v271, 0
        %v278 = vand.u32 %v271, 2139095040
        %v279 = vshrl.u32 %v278, 23
        %v280 = vsub.s32 %v279, 127
        %v281 = vand.u32 2147483647, %v271
        %v282 = vand.u32 %v281, 8388607
        %v283 = vor.u32 %v282, 8388608
        %v284 = vsub.s32 0, %v283
        %v285 = vadd.s32 %v280, 1
        %vm286 = vcmp.gt.s32.totalorder %v285, 0
        %v287 = vsel %vm286, %v285, 0
        %v288 = vshrl.u32 %v287, 5
        %v289 = vand.u32 %v287, 31
        %v290 = vsub.s32 32, %v289
        %v291 = vshrl.u32 683565275, %v290
        %v292 = vshll.u32 683565275, %v289
        %v293 = vshrl.u32 2475754826, %v290
        %v294 = vor.u32 %v292, %v293
        %v295 = vshll.u32 2475754826, %v289
        %v296 = vshrl.u32 2131351028, %v290
        %v297 = vor.u32 %v295, %v296
        %v298 = vshll.u32 2131351028, %v289
        %v299 = vshrl.u32 2102212464, %v290
        %v300 = vor.u32 %v298, %v299
        %v301 = vshll.u32 2102212464, %v289
        %v302 = vshrl.u32 920167782, %v290
        %v303 = vor.u32 %v301, %v302
        %v304 = vshll.u32 920167782, %v289
        %v305 = vshrl.u32 1326507024, %v290
        %v306 = vor.u32 %v304, %v305
        %vm307 = vcmp.lt.s32.totalorder %v288, 1
        %vm308 = vcmp.lt.s32.totalorder %v288, 2
        %vm309 = vcmp.lt.s32.totalorder %v288, 3
        %vm310 = vcmp.lt.s32.totalorder %v288, 4
        %v311 = vsel %vm307, %v291, %v294
        %v312 = vsel %vm310, %v300, 2102212464
        %v313 = vsel %vm309, %v297, %v312
        %v314 = vsel %vm308, %v311, %v313
        %v315 = vsel %vm307, %v294, %v297
        %v316 = vsel %vm310, %v303, 920167782
        %v317 = vsel %vm309, %v300, %v316
        %v318 = vsel %vm308, %v315, %v317
        %v319 = vsel %vm307, %v297, %v300
        %v320 = vsel %vm310, %v306, 1326507024
        %v321 = vsel %vm309, %v303, %v320
        %v322 = vsel %vm308, %v319, %v321
        %v323 = vshll.u32 %v283, 8
        %v324 = vmul.u32.u64.compose %v323, %v322
        %v325 = vextract.low.u32 %v324
        %v326 = vextract.high.u32 %v324
        %v327 = vmul.u32.u64.compose %v323, %v318
        %v328 = vextract.low.u32 %v327
        %v329 = vextract.high.u32 %v327
        %v330 = vmul.u32 %v323, %v314
        %v331 = vadd.s32 %v326, %v328
        %vm332 = vc.u32 %v326, %v328
        %v333 = vadd.s32 %v329, 1
        %v334 = vsel %vm332, %v333, %v329
        %v335 = vadd.s32 %v330, %v334
        %v336 = vadd.s32 %v335, 536870912
        %v337 = vshrl.u32 %v336, 30
        %v338 = vshll.u32 %v337, 30
        %v339 = vsub.s32 %v335, %v338
        %vm340 = vcmp.lt.s32.totalorder %v339, 0
        %v341 = vsub.s32 0, %v339
        %v342 = vsel %vm340, %v341, %v339
        %v343 = vclz %v342
        %v344 = vsub.s32 %v343, 2
        %vm345 = vcmp.gt.s32.totalorder 0, %v344
        %v346 = vsel %vm345, 0, %v344
        %v347 = vsub.s32 32, %v346
        %v348 = vshll.u32 %v339, %v346
        %v349 = vshrl.u32 %v331, %v347
        %v350 = vor.u32 %v348, %v349
        %v351 = vsub.s32 4294967266, %v346
        %v352 = vadd.s32 %v351, 127
        %v353 = vshll.u32 %v352, 23
        %v354 = vor.u32 4788187, %v353
        %v355 = vand.u32 2147483647, %v354
        %v357 = vcvt.s32.f32 %v350
        %v358 = vmul.f32 %v357, %v355
        %v359 = vxor.u32 %v358, 2147483648
        %v360 = vsel %vm277, %v359, %v358
        %v361 = vsub.s32 4, %v337
        %v362 = vsel %vm277, %v361, %v337
        %v363 = vsel %vm276, %v271, %v360
        %v364 = vsel %vm276, 0, %v362
        %v365 = vcosq.f32.pop %v363
        %v366 = vsinq.f32.pop %v363
        %vm367 = vweird.f32 %v271
        %v368 = vadd.s32 %v364, 3
        %v369 = vand.u32 %v368, 3
        %vm370 = vcmp.lt.s32.totalorder %v369, 2
        %vm371 = vcmp.eq.s32.totalorder %v369, 0
        %v372 = vxor.u32 %v366, 2147483648
        %v373 = vsel %vm371, %v365, %v372
        %vm374 = vcmp.eq.s32.totalorder %v369, 2
        %v375 = vxor.u32 %v365, 2147483648
        %v376 = vsel %vm374, %v375, %v366
        %v377 = vsel %vm370, %v373, %v376
        %v378 = vsel %vm367, nan, %v377
        %v379 = vand.u32 2147483647, %v272
        %vm380 = vcmp.le.f32.partialorder %v379, 0.7853982
        %vm381 = vcmp.lt.s32.totalorder %v272, 0
        %v382 = vand.u32 %v272, 2139095040
        %v383 = vshrl.u32 %v382, 23
        %v384 = vsub.s32 %v383, 127
        %v385 = vand.u32 2147483647, %v272
        %v386 = vand.u32 %v385, 8388607
        %v387 = vor.u32 %v386, 8388608
        %v388 = vsub.s32 0, %v387
        %v389 = vadd.s32 %v384, 1
        %vm390 = vcmp.gt.s32.totalorder %v389, 0
        %v391 = vsel %vm390, %v389, 0
        %v392 = vshrl.u32 %v391, 5
        %v393 = vand.u32 %v391, 31
        %v394 = vsub.s32 32, %v393
        %v395 = vshrl.u32 683565275, %v394
        %v396 = vshll.u32 683565275, %v393
        %v397 = vshrl.u32 2475754826, %v394
        %v398 = vor.u32 %v396, %v397
        %v399 = vshll.u32 2475754826, %v393
        %v400 = vshrl.u32 2131351028, %v394
        %v401 = vor.u32 %v399, %v400
        %v402 = vshll.u32 2131351028, %v393
        %v403 = vshrl.u32 2102212464, %v394
        %v404 = vor.u32 %v402, %v403
        %v405 = vshll.u32 2102212464, %v393
        %v406 = vshrl.u32 920167782, %v394
        %v407 = vor.u32 %v405, %v406
        %v408 = vshll.u32 920167782, %v393
        %v409 = vshrl.u32 1326507024, %v394
        %v410 = vor.u32 %v408, %v409
        %vm411 = vcmp.lt.s32.totalorder %v392, 1
        %vm412 = vcmp.lt.s32.totalorder %v392, 2
        %vm413 = vcmp.lt.s32.totalorder %v392, 3
        %vm414 = vcmp.lt.s32.totalorder %v392, 4
        %v415 = vsel %vm411, %v395, %v398
        %v416 = vsel %vm414, %v404, 2102212464
        %v417 = vsel %vm413, %v401, %v416
        %v418 = vsel %vm412, %v415, %v417
        %v419 = vsel %vm411, %v398, %v401
        %v420 = vsel %vm414, %v407, 920167782
        %v421 = vsel %vm413, %v404, %v420
        %v422 = vsel %vm412, %v419, %v421
        %v423 = vsel %vm411, %v401, %v404
        %v424 = vsel %vm414, %v410, 1326507024
        %v425 = vsel %vm413, %v407, %v424
        %v426 = vsel %vm412, %v423, %v425
        %v427 = vshll.u32 %v387, 8
        %v428 = vmul.u32.u64.compose %v427, %v426
        %v429 = vextract.low.u32 %v428
        %v430 = vextract.high.u32 %v428
        %v431 = vmul.u32.u64.compose %v427, %v422
        %v432 = vextract.low.u32 %v431
        %v433 = vextract.high.u32 %v431
        %v434 = vmul.u32 %v427, %v418
        %v435 = vadd.s32 %v430, %v432
        %vm436 = vc.u32 %v430, %v432
        %v437 = vadd.s32 %v433, 1
        %v438 = vsel %vm436, %v437, %v433
        %v439 = vadd.s32 %v434, %v438
        %v440 = vadd.s32 %v439, 536870912
        %v441 = vshrl.u32 %v440, 30
        %v442 = vshll.u32 %v441, 30
        %v443 = vsub.s32 %v439, %v442
        %vm444 = vcmp.lt.s32.totalorder %v443, 0
        %v445 = vsub.s32 0, %v443
        %v446 = vsel %vm444, %v445, %v443
        %v447 = vclz %v446
        %v448 = vsub.s32 %v447, 2
        %vm449 = vcmp.gt.s32.totalorder 0, %v448
        %v450 = vsel %vm449, 0, %v448
        %v451 = vsub.s32 32, %v450
        %v452 = vshll.u32 %v443, %v450
        %v453 = vshrl.u32 %v435, %v451
        %v454 = vor.u32 %v452, %v453
        %v455 = vsub.s32 4294967266, %v450
        %v456 = vadd.s32 %v455, 127
        %v457 = vshll.u32 %v456, 23
        %v458 = vor.u32 4788187, %v457
        %v459 = vand.u32 2147483647, %v458
        %v461 = vcvt.s32.f32 %v454
        %v462 = vmul.f32 %v461, %v459
        %v463 = vxor.u32 %v462, 2147483648
        %v464 = vsel %vm381, %v463, %v462
        %v465 = vsub.s32 4, %v441
        %v466 = vsel %vm381, %v465, %v441
        %v467 = vsel %vm380, %v272, %v464
        %v468 = vsel %vm380, 0, %v466
        %v469 = vcosq.f32.pop %v467
        %v470 = vsinq.f32.pop %v467
        %vm471 = vweird.f32 %v272
        %v472 = vadd.s32 %v468, 3
        %v473 = vand.u32 %v472, 3
        %vm474 = vcmp.lt.s32.totalorder %v473, 2
        %vm475 = vcmp.eq.s32.totalorder %v473, 0
        %v476 = vxor.u32 %v470, 2147483648
        %v477 = vsel %vm475, %v469, %v476
        %vm478 = vcmp.eq.s32.totalorder %v473, 2
        %v479 = vxor.u32 %v469, 2147483648
        %v480 = vsel %vm478, %v479, %v470
        %v481 = vsel %vm474, %v477, %v480
        %v482 = vsel %vm471, nan, %v481
        %v483 = vand.u32 2147483647, %v271
        %vm484 = vcmp.le.f32.partialorder %v483, 0.7853982
        %vm485 = vcmp.lt.s32.totalorder %v271, 0
        %v486 = vand.u32 %v271, 2139095040
        %v487 = vshrl.u32 %v486, 23
        %v488 = vsub.s32 %v487, 127
        %v489 = vand.u32 2147483647, %v271
        %v490 = vand.u32 %v489, 8388607
        %v491 = vor.u32 %v490, 8388608
        %v492 = vsub.s32 0, %v491
        %v493 = vadd.s32 %v488, 1
        %vm494 = vcmp.gt.s32.totalorder %v493, 0
        %v495 = vsel %vm494, %v493, 0
        %v496 = vshrl.u32 %v495, 5
        %v497 = vand.u32 %v495, 31
        %v498 = vsub.s32 32, %v497
        %v499 = vshrl.u32 683565275, %v498
        %v500 = vshll.u32 683565275, %v497
        %v501 = vshrl.u32 2475754826, %v498
        %v502 = vor.u32 %v500, %v501
        %v503 = vshll.u32 2475754826, %v497
        %v504 = vshrl.u32 2131351028, %v498
        %v505 = vor.u32 %v503, %v504
        %v506 = vshll.u32 2131351028, %v497
        %v507 = vshrl.u32 2102212464, %v498
        %v508 = vor.u32 %v506, %v507
        %v509 = vshll.u32 2102212464, %v497
        %v510 = vshrl.u32 920167782, %v498
        %v511 = vor.u32 %v509, %v510
        %v512 = vshll.u32 920167782, %v497
        %v513 = vshrl.u32 1326507024, %v498
        %v514 = vor.u32 %v512, %v513
        %vm515 = vcmp.lt.s32.totalorder %v496, 1
        %vm516 = vcmp.lt.s32.totalorder %v496, 2
        %vm517 = vcmp.lt.s32.totalorder %v496, 3
        %vm518 = vcmp.lt.s32.totalorder %v496, 4
        %v519 = vsel %vm515, %v499, %v502
        %v520 = vsel %vm518, %v508, 2102212464
        %v521 = vsel %vm517, %v505, %v520
        %v522 = vsel %vm516, %v519, %v521
        %v523 = vsel %vm515, %v502, %v505
        %v524 = vsel %vm518, %v511, 920167782
        %v525 = vsel %vm517, %v508, %v524
        %v526 = vsel %vm516, %v523, %v525
        %v527 = vsel %vm515, %v505, %v508
        %v528 = vsel %vm518, %v514, 1326507024
        %v529 = vsel %vm517, %v511, %v528
        %v530 = vsel %vm516, %v527, %v529
        %v531 = vshll.u32 %v491, 8
        %v532 = vmul.u32.u64.compose %v531, %v530
        %v533 = vextract.low.u32 %v532
        %v534 = vextract.high.u32 %v532
        %v535 = vmul.u32.u64.compose %v531, %v526
        %v536 = vextract.low.u32 %v535
        %v537 = vextract.high.u32 %v535
        %v538 = vmul.u32 %v531, %v522
        %v539 = vadd.s32 %v534, %v536
        %vm540 = vc.u32 %v534, %v536
        %v541 = vadd.s32 %v537, 1
        %v542 = vsel %vm540, %v541, %v537
        %v543 = vadd.s32 %v538, %v542
        %v544 = vadd.s32 %v543, 536870912
        %v545 = vshrl.u32 %v544, 30
        %v546 = vshll.u32 %v545, 30
        %v547 = vsub.s32 %v543, %v546
        %vm548 = vcmp.lt.s32.totalorder %v547, 0
        %v549 = vsub.s32 0, %v547
        %v550 = vsel %vm548, %v549, %v547
        %v551 = vclz %v550
        %v552 = vsub.s32 %v551, 2
        %vm553 = vcmp.gt.s32.totalorder 0, %v552
        %v554 = vsel %vm553, 0, %v552
        %v555 = vsub.s32 32, %v554
        %v556 = vshll.u32 %v547, %v554
        %v557 = vshrl.u32 %v539, %v555
        %v558 = vor.u32 %v556, %v557
        %v559 = vsub.s32 4294967266, %v554
        %v560 = vadd.s32 %v559, 127
        %v561 = vshll.u32 %v560, 23
        %v562 = vor.u32 4788187, %v561
        %v563 = vand.u32 2147483647, %v562
        %v565 = vcvt.s32.f32 %v558
        %v566 = vmul.f32 %v565, %v563
        %v567 = vxor.u32 %v566, 2147483648
        %v568 = vsel %vm485, %v567, %v566
        %v569 = vsub.s32 4, %v545
        %v570 = vsel %vm485, %v569, %v545
        %v571 = vsel %vm484, %v271, %v568
        %v572 = vsel %vm484, 0, %v570
        %v573 = vcosq.f32.pop %v571
        %v574 = vsinq.f32.pop %v571
        %vm575 = vweird.f32 %v271
        %v576 = vand.u32 %v572, 3
        %vm577 = vcmp.lt.s32.totalorder %v576, 2
        %vm578 = vcmp.eq.s32.totalorder %v576, 0
        %v579 = vxor.u32 %v574, 2147483648
        %v580 = vsel %vm578, %v573, %v579
        %vm581 = vcmp.eq.s32.totalorder %v576, 2
        %v582 = vxor.u32 %v573, 2147483648
        %v583 = vsel %vm581, %v582, %v574
        %v584 = vsel %vm577, %v580, %v583
        %v585 = vsel %vm575, nan, %v584
        %v586 = vand.u32 2147483647, %v272
        %vm587 = vcmp.le.f32.partialorder %v586, 0.7853982
        %vm588 = vcmp.lt.s32.totalorder %v272, 0
        %v589 = vand.u32 %v272, 2139095040
        %v590 = vshrl.u32 %v589, 23
        %v591 = vsub.s32 %v590, 127
        %v592 = vand.u32 2147483647, %v272
        %v593 = vand.u32 %v592, 8388607
        %v594 = vor.u32 %v593, 8388608
        %v595 = vsub.s32 0, %v594
        %v596 = vadd.s32 %v591, 1
        %vm597 = vcmp.gt.s32.totalorder %v596, 0
        %v598 = vsel %vm597, %v596, 0
        %v599 = vshrl.u32 %v598, 5
        %v600 = vand.u32 %v598, 31
        %v601 = vsub.s32 32, %v600
        %v602 = vshrl.u32 683565275, %v601
        %v603 = vshll.u32 683565275, %v600
        %v604 = vshrl.u32 2475754826, %v601
        %v605 = vor.u32 %v603, %v604
        %v606 = vshll.u32 2475754826, %v600
        %v607 = vshrl.u32 2131351028, %v601
        %v608 = vor.u32 %v606, %v607
        %v609 = vshll.u32 2131351028, %v600
        %v610 = vshrl.u32 2102212464, %v601
        %v611 = vor.u32 %v609, %v610
        %v612 = vshll.u32 2102212464, %v600
        %v613 = vshrl.u32 920167782, %v601
        %v614 = vor.u32 %v612, %v613
        %v615 = vshll.u32 920167782, %v600
        %v616 = vshrl.u32 1326507024, %v601
        %v617 = vor.u32 %v615, %v616
        %vm618 = vcmp.lt.s32.totalorder %v599, 1
        %vm619 = vcmp.lt.s32.totalorder %v599, 2
        %vm620 = vcmp.lt.s32.totalorder %v599, 3
        %vm621 = vcmp.lt.s32.totalorder %v599, 4
        %v622 = vsel %vm618, %v602, %v605
        %v623 = vsel %vm621, %v611, 2102212464
        %v624 = vsel %vm620, %v608, %v623
        %v625 = vsel %vm619, %v622, %v624
        %v626 = vsel %vm618, %v605, %v608
        %v627 = vsel %vm621, %v614, 920167782
        %v628 = vsel %vm620, %v611, %v627
        %v629 = vsel %vm619, %v626, %v628
        %v630 = vsel %vm618, %v608, %v611
        %v631 = vsel %vm621, %v617, 1326507024
        %v632 = vsel %vm620, %v614, %v631
        %v633 = vsel %vm619, %v630, %v632
        %v634 = vshll.u32 %v594, 8
        %v635 = vmul.u32.u64.compose %v634, %v633
        %v636 = vextract.low.u32 %v635
        %v637 = vextract.high.u32 %v635
        %v638 = vmul.u32.u64.compose %v634, %v629
        %v639 = vextract.low.u32 %v638
        %v640 = vextract.high.u32 %v638
        %v641 = vmul.u32 %v634, %v625
        %v642 = vadd.s32 %v637, %v639
        %vm643 = vc.u32 %v637, %v639
        %v644 = vadd.s32 %v640, 1
        %v645 = vsel %vm643, %v644, %v640
        %v646 = vadd.s32 %v641, %v645
        %v647 = vadd.s32 %v646, 536870912
        %v648 = vshrl.u32 %v647, 30
        %v649 = vshll.u32 %v648, 30
        %v650 = vsub.s32 %v646, %v649
        %vm651 = vcmp.lt.s32.totalorder %v650, 0
        %v652 = vsub.s32 0, %v650
        %v653 = vsel %vm651, %v652, %v650
        %v654 = vclz %v653
        %v655 = vsub.s32 %v654, 2
        %vm656 = vcmp.gt.s32.totalorder 0, %v655
        %v657 = vsel %vm656, 0, %v655
        %v658 = vsub.s32 32, %v657
        %v659 = vshll.u32 %v650, %v657
        %v660 = vshrl.u32 %v642, %v658
        %v661 = vor.u32 %v659, %v660
        %v662 = vsub.s32 4294967266, %v657
        %v663 = vadd.s32 %v662, 127
        %v664 = vshll.u32 %v663, 23
        %v665 = vor.u32 4788187, %v664
        %v666 = vand.u32 2147483647, %v665
        %v668 = vcvt.s32.f32 %v661
        %v669 = vmul.f32 %v668, %v666
        %v670 = vxor.u32 %v669, 2147483648
        %v671 = vsel %vm588, %v670, %v669
        %v672 = vsub.s32 4, %v648
        %v673 = vsel %vm588, %v672, %v648
        %v674 = vsel %vm587, %v272, %v671
        %v675 = vsel %vm587, 0, %v673
        %v676 = vcosq.f32.pop %v674
        %v677 = vsinq.f32.pop %v674
        %vm678 = vweird.f32 %v272
        %v679 = vand.u32 %v675, 3
        %vm680 = vcmp.lt.s32.totalorder %v679, 2
        %vm681 = vcmp.eq.s32.totalorder %v679, 0
        %v682 = vxor.u32 %v677, 2147483648
        %v683 = vsel %vm681, %v676, %v682
        %vm684 = vcmp.eq.s32.totalorder %v679, 2
        %v685 = vxor.u32 %v676, 2147483648
        %v686 = vsel %vm684, %v685, %v677
        %v687 = vsel %vm680, %v683, %v686
        %v688 = vsel %vm678, nan, %v687
        %v689 = vmul.f32 %v378, 2.0
        %v690 = vmul.f32 %v482, 2.0
        %v691 = vmul.f32 %v689, %v585
        %v692 = vmul.f32 %v690, %v688
        %v693 = vmul.f32 %v689, %v378
        %v694 = vmul.f32 %v690, %v482
        %v695 = vsub.f32 1.0, %v693
        %v696 = vsub.f32 1.0, %v694
        %v697 = vmul.f32 %v691, 2.0
        %v698 = vmul.f32 %v692, 2.0
        %v699 = vmul.f32 %v697, %v695
        %v700 = vmul.f32 %v698, %v696
        %v701 = vmul.f32 %v697, %v691
        %v702 = vmul.f32 %v698, %v692
        %v703 = vsub.f32 1.0, %v701
        %v704 = vsub.f32 1.0, %v702
        %v705 = vmul.f32 %v699, 2.0
        %v706 = vmul.f32 %v700, 2.0
        %v707 = vmul.f32 %v705, %v703
        %v708 = vmul.f32 %v706, %v704
        %v709 = vmul.f32 %v705, %v699
        %v710 = vmul.f32 %v706, %v700
        %v711 = vsub.f32 1.0, %v709
        %v712 = vsub.f32 1.0, %v710
        %v715 = vrot.slane %v378, 5
        %v716 = vrot.slane %v482, 5
        %v721 = vrot.slane %v585, 2
        %v722 = vrot.slane %v688, 2
        %v727 = vrot.slane %v691, 7
        %v728 = vrot.slane %v692, 7
        %v733 = vrot.slane %v695, 4
        %v734 = vrot.slane %v696, 4
        %v739 = vrot.slane %v699, 1
        %v740 = vrot.slane %v700, 1
        %v745 = vrot.slane %v703, 6
        %v746 = vrot.slane %v704, 6
        %v751 = vrot.slane %v707, 3
        %v752 = vrot.slane %v708, 3
        %vm755 = vcmask 1042432
        %v756 = vsel %vm755, %v271, %v715
        %v757 = vsel %vm755, %v272, %v716
        %vm758 = vcmask 1045504
        %v759 = vsel %vm758, %v756, %v721
        %v760 = vsel %vm758, %v757, %v722
        %vm761 = vcmask 1040384
        %v762 = vsel %vm761, %v721, %v727
        %v763 = vsel %vm761, %v722, %v728
        %vm764 = vcmask 1043456
        %v765 = vsel %vm764, %v762, %v733
        %v766 = vsel %vm764, %v763, %v734
        %vm767 = vcmask 1046528
        %v768 = vsel %vm767, %v765, %v739
        %v769 = vsel %vm767, %v766, %v740
        %vm770 = vcmask 1041408
        %v771 = vsel %vm770, %v739, %v745
        %v772 = vsel %vm770, %v740, %v746
        %vm773 = vcmask 1044480
        %v774 = vsel %vm773, %v771, %v751
        %v775 = vsel %vm773, %v772, %v752
        %v778 = vrot.slane %v271, 6
        %v779 = vrot.slane %v272, 6
        %v782 = vrot.slane %v585, 4
        %v783 = vrot.slane %v688, 4
        %v786 = vrot.slane %v691, 3
        %v787 = vrot.slane %v692, 3
        %v790 = vrot.slane %v695, 2
        %v791 = vrot.slane %v696, 2
        %v794 = vrot.slane %v707, 7
        %v795 = vrot.slane %v708, 7
        %v800 = vrot.slane %v711, 6
        %v801 = vrot.slane %v712, 6
        %v802 = vsel %vm761, %v778, %v715
        %v803 = vsel %vm761, %v779, %v716
        %v804 = vsel %vm770, %v802, %v782
        %v805 = vsel %vm770, %v803, %v783
        %v806 = vsel %vm755, %v804, %v786
        %v807 = vsel %vm755, %v805, %v787
        %v808 = vsel %vm764, %v806, %v790
        %v809 = vsel %vm764, %v807, %v791
        %v810 = vsel %vm773, %v808, %v739
        %v811 = vsel %vm773, %v809, %v740
        %v812 = vsel %vm758, %v810, %v703
        %v813 = vsel %vm758, %v811, %v704
        %v814 = vsel %vm767, %v812, %v794
        %v815 = vsel %vm767, %v813, %v795
        %v816 = vld [vmem:[%s2] sm:$0xff]
        %v817 = vld [vmem:[%s2 + $0x8] sm:$0xff]
        %v818 = vld [vmem:[%s2 + $0x10] sm:$0xff]
        %v819 = vld [vmem:[%s2 + $0x18] sm:$0xff]
        %v820 = vld [vmem:[%s2 + $0x20] sm:$0xff]
        %v821 = vld [vmem:[%s2 + $0x28] sm:$0xff]
        %v822 = vld [vmem:[%s2 + $0x30] sm:$0xff]
        %v823 = vld [vmem:[%s2 + $0x38] sm:$0xff]
        %vm824 = vcmask 72704
        %v826 = vsel %vm824, %v820, 0
        %v829 = vsel %vm824, %v821, 0
        %v832 = vsel %vm824, %v822, 0
        %v835 = vsel %vm824, %v823, 0
        %v837 = vsel %vm761, %v800, 0
        %v839 = vsel %vm761, %v801, 0
        %841 = vmatprep.subr.mxu0 %v815
        %842 = vmatpush1.msra.mxu0 %v814
        %843 = vmatprep.subr.mxu0 %v839
        %844 = vmatpush1.msra.mxu0 %v837
        %845 = vmatprep.subr.mxu0 0.0
        %846 = vmatpush1.msra.mxu0 0.0
        %847 = vmatprep.subr.mxu0 0.0
        %848 = vmatpush1.msra.mxu0 0.0
        %849 = vmatprep.subr.mxu0 0.0
        %850 = vmatpush1.msra.mxu0 0.0
        %851 = vmatprep.subr.mxu0 0.0
        %852 = vmatpush1.msra.mxu0 0.0
        %853 = vmatprep.subr.mxu0 0.0
        %854 = vmatpush1.msra.mxu0 0.0
        %855 = vmatprep.subr.mxu0 0.0
        %856 = vmatpush1.msra.mxu0 0.0
        %857 = vmatprep.subr.mxu0 0.0
        %858 = vmatpush1.msra.mxu0 0.0
        %859 = vmatprep.subr.mxu0 0.0
        %860 = vmatpush1.msra.mxu0 0.0
        %861 = vmatprep.subr.mxu0 0.0
        %862 = vmatpush1.msra.mxu0 0.0
        %863 = vmatprep.subr.mxu0 0.0
        %864 = vmatpush1.msra.mxu0 0.0
        %865 = vmatprep.subr.mxu0 0.0
        %866 = vmatpush1.msra.mxu0 0.0
        %867 = vmatprep.subr.mxu0 0.0
        %868 = vmatpush1.msra.mxu0 0.0
        %869 = vmatprep.subr.mxu0 0.0
        %870 = vmatpush1.msra.mxu0 0.0
        %871 = vmatprep.subr.mxu0 0.0
        %872 = vmatpush1.msra.mxu0 0.0
        %873 = vmatprep.subr.mxu0 0.0
        %874 = vmatpush1.msra.mxu0 0.0
        %875 = vmatprep.subr.mxu0 0.0
        %876 = vmatpush1.msra.mxu0 0.0
        %877 = vmatprep.subr.mxu0 0.0
        %878 = vmatpush1.msra.mxu0 0.0
        %879 = vmatprep.subr.mxu0 0.0
        %880 = vmatpush1.msra.mxu0 0.0
        %881 = vmatprep.subr.mxu0 0.0
        %882 = vmatpush1.msra.mxu0 0.0
        %883 = vmatprep.subr.mxu0 0.0
        %884 = vmatpush1.msra.mxu0 0.0
        %885 = vmatprep.subr.mxu0 0.0
        %886 = vmatpush1.msra.mxu0 0.0
        %887 = vmatprep.subr.mxu0 0.0
        %888 = vmatpush1.msra.mxu0 0.0
        %889 = vmatprep.subr.mxu0 0.0
        %890 = vmatpush1.msra.mxu0 0.0
        %891 = vmatprep.subr.mxu0 0.0
        %892 = vmatpush1.msra.mxu0 0.0
        %893 = vmatprep.subr.mxu0 0.0
        %894 = vmatpush1.msra.mxu0 0.0
        %895 = vmatprep.subr.mxu0 0.0
        %896 = vmatpush1.msra.mxu0 0.0
        %897 = vmatprep.subr.mxu0 0.0
        %898 = vmatpush1.msra.mxu0 0.0
        %899 = vmatprep.subr.mxu0 0.0
        %900 = vmatpush1.msra.mxu0 0.0
        %901 = vmatprep.subr.mxu0 0.0
        %902 = vmatpush1.msra.mxu0 0.0
        %903 = vmatprep.subr.mxu0 0.0
        %904 = vmatpush1.msra.mxu0 0.0
        %905 = vmatprep.mubr.f32.mxu0 0.0
        %906 = vmatmul.mubr.f32.gmra.mrb[0].mxu0 %v826
        %v907 = vpop.f32.mrb[0].mxu0
        %v908 = vadd.f32 0.0, %v907
        %v909 = vpop.f32.mrb[0].mxu0
        %v910 = vadd.f32 0.0, %v909
        %911 = vmatprep.mubr.f32.mxu0 0.0
        %912 = vmatmul.mubr.f32.gmra.mrb[0].mxu0 %v829
        %v913 = vpop.f32.mrb[0].mxu0
        %v914 = vadd.f32 0.0, %v913
        %v915 = vpop.f32.mrb[0].mxu0
        %v916 = vadd.f32 0.0, %v915
        %917 = vmatprep.mubr.f32.mxu0 0.0
        %918 = vmatmul.mubr.f32.gmra.mrb[0].mxu0 %v832
        %v919 = vpop.f32.mrb[0].mxu0
        %v920 = vadd.f32 0.0, %v919
        %v921 = vpop.f32.mrb[0].mxu0
        %v922 = vadd.f32 0.0, %v921
        %923 = vmatprep.mubr.f32.mxu0 0.0
        %924 = vmatmul.mubr.f32.gmra.mrb[0].mxu0 %v835
        %v925 = vpop.f32.mrb[0].mxu0
        %v926 = vadd.f32 0.0, %v925
        %v927 = vpop.f32.mrb[0].mxu0
        %v928 = vadd.f32 0.0, %v927
        %929 = vdwg.mxu0
        %vm930 = vcmask 220160
        %v932 = vsel %vm930, %v816, 0
        %v935 = vsel %vm930, %v817, 0
        %v938 = vsel %vm930, %v818, 0
        %v941 = vsel %vm930, %v819, 0
        %v943 = vsel %vm755, %v711, 0
        %v945 = vsel %vm755, %v712, 0
        %947 = vmatprep.subr.mxu0 %v760
        %948 = vmatpush1.msra.mxu0 %v759
        %949 = vmatprep.subr.mxu0 %v769
        %950 = vmatpush1.msra.mxu0 %v768
        %951 = vmatprep.subr.mxu0 %v775
        %952 = vmatpush1.msra.mxu0 %v774
        %953 = vmatprep.subr.mxu0 %v945
        %954 = vmatpush1.msra.mxu0 %v943
        %955 = vmatprep.subr.mxu0 0.0
        %956 = vmatpush1.msra.mxu0 0.0
        %957 = vmatprep.subr.mxu0 0.0
        %958 = vmatpush1.msra.mxu0 0.0
        %959 = vmatprep.subr.mxu0 0.0
        %960 = vmatpush1.msra.mxu0 0.0
        %961 = vmatprep.subr.mxu0 0.0
        %962 = vmatpush1.msra.mxu0 0.0
        %963 = vmatprep.subr.mxu0 0.0
        %964 = vmatpush1.msra.mxu0 0.0
        %965 = vmatprep.subr.mxu0 0.0
        %966 = vmatpush1.msra.mxu0 0.0
        %967 = vmatprep.subr.mxu0 0.0
        %968 = vmatpush1.msra.mxu0 0.0
        %969 = vmatprep.subr.mxu0 0.0
        %970 = vmatpush1.msra.mxu0 0.0
        %971 = vmatprep.subr.mxu0 0.0
        %972 = vmatpush1.msra.mxu0 0.0
        %973 = vmatprep.subr.mxu0 0.0
        %974 = vmatpush1.msra.mxu0 0.0
        %975 = vmatprep.subr.mxu0 0.0
        %976 = vmatpush1.msra.mxu0 0.0
        %977 = vmatprep.subr.mxu0 0.0
        %978 = vmatpush1.msra.mxu0 0.0
        %979 = vmatprep.subr.mxu0 0.0
        %980 = vmatpush1.msra.mxu0 0.0
        %981 = vmatprep.subr.mxu0 0.0
        %982 = vmatpush1.msra.mxu0 0.0
        %983 = vmatprep.subr.mxu0 0.0
        %984 = vmatpush1.msra.mxu0 0.0
        %985 = vmatprep.subr.mxu0 0.0
        %986 = vmatpush1.msra.mxu0 0.0
        %987 = vmatprep.subr.mxu0 0.0
        %988 = vmatpush1.msra.mxu0 0.0
        %989 = vmatprep.subr.mxu0 0.0
        %990 = vmatpush1.msra.mxu0 0.0
        %991 = vmatprep.subr.mxu0 0.0
        %992 = vmatpush1.msra.mxu0 0.0
        %993 = vmatprep.subr.mxu0 0.0
        %994 = vmatpush1.msra.mxu0 0.0
        %995 = vmatprep.subr.mxu0 0.0
        %996 = vmatpush1.msra.mxu0 0.0
        %997 = vmatprep.subr.mxu0 0.0
        %998 = vmatpush1.msra.mxu0 0.0
        %999 = vmatprep.subr.mxu0 0.0
        %1000 = vmatpush1.msra.mxu0 0.0
        %1001 = vmatprep.subr.mxu0 0.0
        %1002 = vmatpush1.msra.mxu0 0.0
        %1003 = vmatprep.subr.mxu0 0.0
        %1004 = vmatpush1.msra.mxu0 0.0
        %1005 = vmatprep.subr.mxu0 0.0
        %1006 = vmatpush1.msra.mxu0 0.0
        %1007 = vmatprep.subr.mxu0 0.0
        %1008 = vmatpush1.msra.mxu0 0.0
        %1009 = vmatprep.subr.mxu0 0.0
        %1010 = vmatpush1.msra.mxu0 0.0
        %1011 = vmatprep.mubr.f32.mxu0 0.0
        %1012 = vmatmul.mubr.f32.gmra.mrb[0].mxu0 %v932
        %v1013 = vpop.f32.mrb[0].mxu0
        %v1014 = vadd.f32 %v908, %v1013
        %v1015 = vpop.f32.mrb[0].mxu0
        %v1016 = vadd.f32 %v910, %v1015
        %1017 = vmatprep.mubr.f32.mxu0 0.0
        %1018 = vmatmul.mubr.f32.gmra.mrb[0].mxu0 %v935
        %v1019 = vpop.f32.mrb[0].mxu0
        %v1020 = vadd.f32 %v914, %v1019
        %v1021 = vpop.f32.mrb[0].mxu0
        %v1022 = vadd.f32 %v916, %v1021
        %1023 = vmatprep.mubr.f32.mxu0 0.0
        %1024 = vmatmul.mubr.f32.gmra.mrb[0].mxu0 %v938
        %v1025 = vpop.f32.mrb[0].mxu0
        %v1026 = vadd.f32 %v920, %v1025
        %v1027 = vpop.f32.mrb[0].mxu0
        %v1028 = vadd.f32 %v922, %v1027
        %1029 = vmatprep.mubr.f32.mxu0 0.0
        %1030 = vmatmul.mubr.f32.gmra.mrb[0].mxu0 %v941
        %v1031 = vpop.f32.mrb[0].mxu0
        %v1032 = vadd.f32 %v926, %v1031
        %v1033 = vpop.f32.mrb[0].mxu0
        %v1034 = vadd.f32 %v928, %v1033
        %1035 = vdwg.mxu0
        %v1036 = vld [vmem:[%s3] sm:$0xff]
        %v1037 = vld [vmem:[%s3 + $0x8] sm:$0xff]
        %v1038 = vld [vmem:[%s3 + $0x10] sm:$0xff]
        %v1039 = vld [vmem:[%s3 + $0x18] sm:$0xff]
        %1041 = vset.pattern.permute.xlu0 0
        %1042 = vperm.xlu0 %1041, %v1036
        %v1043 = vpop.permute.xlu0 %1042
        %1046 = vset.pattern.permute.xlu0 0
        %1047 = vperm.xlu0 %1046, %v1037
        %v1048 = vpop.permute.xlu0 %1047
        %1051 = vset.pattern.permute.xlu0 0
        %1052 = vperm.xlu0 %1051, %v1038
        %v1053 = vpop.permute.xlu0 %1052
        %1056 = vset.pattern.permute.xlu0 0
        %1057 = vperm.xlu0 %1056, %v1039
        %v1058 = vpop.permute.xlu0 %1057
        %v1060 = vadd.f32 %v1014, %v1043
        %v1061 = vadd.f32 %v1016, %v1043
        %v1062 = vadd.f32 %v1020, %v1048
        %v1063 = vadd.f32 %v1022, %v1048
        %v1064 = vadd.f32 %v1026, %v1053
        %v1065 = vadd.f32 %v1028, %v1053
        %v1066 = vadd.f32 %v1032, %v1058
        %v1067 = vadd.f32 %v1034, %v1058
        %v1068 = vmax.f32 %v1060, 0.0
        %v1069 = vmax.f32 %v1061, 0.0
        %v1070 = vmax.f32 %v1062, 0.0
        %v1071 = vmax.f32 %v1063, 0.0
        %v1072 = vmax.f32 %v1064, 0.0
        %v1073 = vmax.f32 %v1065, 0.0
        %v1074 = vmax.f32 %v1066, 0.0
        %v1075 = vmax.f32 %v1067, 0.0
        %v1076 = vld [vmem:[%s2 + $0x40] sm:$0xff]
        %v1077 = vld [vmem:[%s2 + $0x48] sm:$0xff]
        %v1078 = vld [vmem:[%s2 + $0x50] sm:$0xff]
        %v1079 = vld [vmem:[%s2 + $0x58] sm:$0xff]
        %v1080 = vld [vmem:[%s2 + $0x60] sm:$0xff]
        %v1081 = vld [vmem:[%s2 + $0x68] sm:$0xff]
        %v1082 = vld [vmem:[%s2 + $0x70] sm:$0xff]
        %v1083 = vld [vmem:[%s2 + $0x78] sm:$0xff]
        %v1085 = vsel %vm930, %v1080, 0
        %v1088 = vsel %vm930, %v1081, 0
        %v1091 = vsel %vm930, %v1082, 0
        %v1094 = vsel %vm930, %v1083, 0
        %1096 = vmatprep.subr.mxu0 %v760
        %1097 = vmatpush1.msra.mxu0 %v759
        %1098 = vmatprep.subr.mxu0 %v769
        %1099 = vmatpush1.msra.mxu0 %v768
        %1100 = vmatprep.subr.mxu0 %v775
        %1101 = vmatpush1.msra.mxu0 %v774
        %1102 = vmatprep.subr.mxu0 %v945
        %1103 = vmatpush1.msra.mxu0 %v943
        %1104 = vmatprep.subr.mxu0 0.0
        %1105 = vmatpush1.msra.mxu0 0.0
        %1106 = vmatprep.subr.mxu0 0.0
        %1107 = vmatpush1.msra.mxu0 0.0
        %1108 = vmatprep.subr.mxu0 0.0
        %1109 = vmatpush1.msra.mxu0 0.0
        %1110 = vmatprep.subr.mxu0 0.0
        %1111 = vmatpush1.msra.mxu0 0.0
        %1112 = vmatprep.subr.mxu0 0.0
        %1113 = vmatpush1.msra.mxu0 0.0
        %1114 = vmatprep.subr.mxu0 0.0
        %1115 = vmatpush1.msra.mxu0 0.0
        %1116 = vmatprep.subr.mxu0 0.0
        %1117 = vmatpush1.msra.mxu0 0.0
        %1118 = vmatprep.subr.mxu0 0.0
        %1119 = vmatpush1.msra.mxu0 0.0
        %1120 = vmatprep.subr.mxu0 0.0
        %1121 = vmatpush1.msra.mxu0 0.0
        %1122 = vmatprep.subr.mxu0 0.0
        %1123 = vmatpush1.msra.mxu0 0.0
        %1124 = vmatprep.subr.mxu0 0.0
        %1125 = vmatpush1.msra.mxu0 0.0
        %1126 = vmatprep.subr.mxu0 0.0
        %1127 = vmatpush1.msra.mxu0 0.0
        %1128 = vmatprep.subr.mxu0 0.0
        %1129 = vmatpush1.msra.mxu0 0.0
        %1130 = vmatprep.subr.mxu0 0.0
        %1131 = vmatpush1.msra.mxu0 0.0
        %1132 = vmatprep.subr.mxu0 0.0
        %1133 = vmatpush1.msra.mxu0 0.0
        %1134 = vmatprep.subr.mxu0 0.0
        %1135 = vmatpush1.msra.mxu0 0.0
        %1136 = vmatprep.subr.mxu0 0.0
        %1137 = vmatpush1.msra.mxu0 0.0
        %1138 = vmatprep.subr.mxu0 0.0
        %1139 = vmatpush1.msra.mxu0 0.0
        %1140 = vmatprep.subr.mxu0 0.0
        %1141 = vmatpush1.msra.mxu0 0.0
        %1142 = vmatprep.subr.mxu0 0.0
        %1143 = vmatpush1.msra.mxu0 0.0
        %1144 = vmatprep.subr.mxu0 0.0
        %1145 = vmatpush1.msra.mxu0 0.0
        %1146 = vmatprep.subr.mxu0 0.0
        %1147 = vmatpush1.msra.mxu0 0.0
        %1148 = vmatprep.subr.mxu0 0.0
        %1149 = vmatpush1.msra.mxu0 0.0
        %1150 = vmatprep.subr.mxu0 0.0
        %1151 = vmatpush1.msra.mxu0 0.0
        %1152 = vmatprep.subr.mxu0 0.0
        %1153 = vmatpush1.msra.mxu0 0.0
        %1154 = vmatprep.subr.mxu0 0.0
        %1155 = vmatpush1.msra.mxu0 0.0
        %1156 = vmatprep.subr.mxu0 0.0
        %1157 = vmatpush1.msra.mxu0 0.0
        %1158 = vmatprep.subr.mxu0 0.0
        %1159 = vmatpush1.msra.mxu0 0.0
        %1160 = vmatprep.mubr.f32.mxu0 0.0
        %1161 = vmatmul.mubr.f32.gmra.mrb[0].mxu0 %v1085
        %v1162 = vpop.f32.mrb[0].mxu0
        %v1163 = vadd.f32 0.0, %v1162
        %v1164 = vpop.f32.mrb[0].mxu0
        %v1165 = vadd.f32 0.0, %v1164
        %1166 = vmatprep.mubr.f32.mxu0 0.0
        %1167 = vmatmul.mubr.f32.gmra.mrb[0].mxu0 %v1088
        %v1168 = vpop.f32.mrb[0].mxu0
        %v1169 = vadd.f32 0.0, %v1168
        %v1170 = vpop.f32.mrb[0].mxu0
        %v1171 = vadd.f32 0.0, %v1170
        %1172 = vmatprep.mubr.f32.mxu0 0.0
        %1173 = vmatmul.mubr.f32.gmra.mrb[0].mxu0 %v1091
        %v1174 = vpop.f32.mrb[0].mxu0
        %v1175 = vadd.f32 0.0, %v1174
        %v1176 = vpop.f32.mrb[0].mxu0
        %v1177 = vadd.f32 0.0, %v1176
        %1178 = vmatprep.mubr.f32.mxu0 0.0
        %1179 = vmatmul.mubr.f32.gmra.mrb[0].mxu0 %v1094
        %v1180 = vpop.f32.mrb[0].mxu0
        %v1181 = vadd.f32 0.0, %v1180
        %v1182 = vpop.f32.mrb[0].mxu0
        %v1183 = vadd.f32 0.0, %v1182
        %1184 = vdwg.mxu0
        %vm1185 = vcmask 261120
        %v1187 = vsel %vm1185, %v1076, 0
        %v1190 = vsel %vm1185, %v1077, 0
        %v1193 = vsel %vm1185, %v1078, 0
        %v1196 = vsel %vm1185, %v1079, 0
        %1198 = vmatprep.subr.mxu0 %v1069
        %1199 = vmatpush1.msra.mxu0 %v1068
        %1200 = vmatprep.subr.mxu0 %v1071
        %1201 = vmatpush1.msra.mxu0 %v1070
        %1202 = vmatprep.subr.mxu0 %v1073
        %1203 = vmatpush1.msra.mxu0 %v1072
        %1204 = vmatprep.subr.mxu0 %v1075
        %1205 = vmatpush1.msra.mxu0 %v1074
        %1206 = vmatprep.subr.mxu0 0.0
        %1207 = vmatpush1.msra.mxu0 0.0
        %1208 = vmatprep.subr.mxu0 0.0
        %1209 = vmatpush1.msra.mxu0 0.0
        %1210 = vmatprep.subr.mxu0 0.0
        %1211 = vmatpush1.msra.mxu0 0.0
        %1212 = vmatprep.subr.mxu0 0.0
        %1213 = vmatpush1.msra.mxu0 0.0
        %1214 = vmatprep.subr.mxu0 0.0
        %1215 = vmatpush1.msra.mxu0 0.0
        %1216 = vmatprep.subr.mxu0 0.0
        %1217 = vmatpush1.msra.mxu0 0.0
        %1218 = vmatprep.subr.mxu0 0.0
        %1219 = vmatpush1.msra.mxu0 0.0
        %1220 = vmatprep.subr.mxu0 0.0
        %1221 = vmatpush1.msra.mxu0 0.0
        %1222 = vmatprep.subr.mxu0 0.0
        %1223 = vmatpush1.msra.mxu0 0.0
        %1224 = vmatprep.subr.mxu0 0.0
        %1225 = vmatpush1.msra.mxu0 0.0
        %1226 = vmatprep.subr.mxu0 0.0
        %1227 = vmatpush1.msra.mxu0 0.0
        %1228 = vmatprep.subr.mxu0 0.0
        %1229 = vmatpush1.msra.mxu0 0.0
        %1230 = vmatprep.subr.mxu0 0.0
        %1231 = vmatpush1.msra.mxu0 0.0
        %1232 = vmatprep.subr.mxu0 0.0
        %1233 = vmatpush1.msra.mxu0 0.0
        %1234 = vmatprep.subr.mxu0 0.0
        %1235 = vmatpush1.msra.mxu0 0.0
        %1236 = vmatprep.subr.mxu0 0.0
        %1237 = vmatpush1.msra.mxu0 0.0
        %1238 = vmatprep.subr.mxu0 0.0
        %1239 = vmatpush1.msra.mxu0 0.0
        %1240 = vmatprep.subr.mxu0 0.0
        %1241 = vmatpush1.msra.mxu0 0.0
        %1242 = vmatprep.subr.mxu0 0.0
        %1243 = vmatpush1.msra.mxu0 0.0
        %1244 = vmatprep.subr.mxu0 0.0
        %1245 = vmatpush1.msra.mxu0 0.0
        %1246 = vmatprep.subr.mxu0 0.0
        %1247 = vmatpush1.msra.mxu0 0.0
        %1248 = vmatprep.subr.mxu0 0.0
        %1249 = vmatpush1.msra.mxu0 0.0
        %1250 = vmatprep.subr.mxu0 0.0
        %1251 = vmatpush1.msra.mxu0 0.0
        %1252 = vmatprep.subr.mxu0 0.0
        %1253 = vmatpush1.msra.mxu0 0.0
        %1254 = vmatprep.subr.mxu0 0.0
        %1255 = vmatpush1.msra.mxu0 0.0
        %1256 = vmatprep.subr.mxu0 0.0
        %1257 = vmatpush1.msra.mxu0 0.0
        %1258 = vmatprep.subr.mxu0 0.0
        %1259 = vmatpush1.msra.mxu0 0.0
        %1260 = vmatprep.subr.mxu0 0.0
        %1261 = vmatpush1.msra.mxu0 0.0
        %1262 = vmatprep.mubr.f32.mxu0 0.0
        %1263 = vmatmul.mubr.f32.gmra.mrb[0].mxu0 %v1187
        %v1264 = vpop.f32.mrb[0].mxu0
        %v1265 = vadd.f32 %v1163, %v1264
        %v1266 = vpop.f32.mrb[0].mxu0
        %v1267 = vadd.f32 %v1165, %v1266
        %1268 = vmatprep.mubr.f32.mxu0 0.0
        %1269 = vmatmul.mubr.f32.gmra.mrb[0].mxu0 %v1190
        %v1270 = vpop.f32.mrb[0].mxu0
        %v1271 = vadd.f32 %v1169, %v1270
        %v1272 = vpop.f32.mrb[0].mxu0
        %v1273 = vadd.f32 %v1171, %v1272
        %1274 = vmatprep.mubr.f32.mxu0 0.0
        %1275 = vmatmul.mubr.f32.gmra.mrb[0].mxu0 %v1193
        %v1276 = vpop.f32.mrb[0].mxu0
        %v1277 = vadd.f32 %v1175, %v1276
        %v1278 = vpop.f32.mrb[0].mxu0
        %v1279 = vadd.f32 %v1177, %v1278
        %1280 = vmatprep.mubr.f32.mxu0 0.0
        %1281 = vmatmul.mubr.f32.gmra.mrb[0].mxu0 %v1196
        %v1282 = vpop.f32.mrb[0].mxu0
        %v1283 = vadd.f32 %v1181, %v1282
        %v1284 = vpop.f32.mrb[0].mxu0
        %v1285 = vadd.f32 %v1183, %v1284
        %1286 = vdwg.mxu0
        %v1287 = vld [vmem:[%s2 + $0x80] sm:$0xff]
        %v1288 = vld [vmem:[%s2 + $0x88] sm:$0xff]
        %v1289 = vld [vmem:[%s2 + $0x90] sm:$0xff]
        %v1290 = vld [vmem:[%s2 + $0x98] sm:$0xff]
        %v1292 = vsel %vm824, %v1287, 0
        %v1295 = vsel %vm824, %v1288, 0
        %v1298 = vsel %vm824, %v1289, 0
        %v1301 = vsel %vm824, %v1290, 0
        %1303 = vmatprep.subr.mxu0 %v815
        %1304 = vmatpush1.msra.mxu0 %v814
        %1305 = vmatprep.subr.mxu0 %v839
        %1306 = vmatpush1.msra.mxu0 %v837
        %1307 = vmatprep.subr.mxu0 0.0
        %1308 = vmatpush1.msra.mxu0 0.0
        %1309 = vmatprep.subr.mxu0 0.0
        %1310 = vmatpush1.msra.mxu0 0.0
        %1311 = vmatprep.subr.mxu0 0.0
        %1312 = vmatpush1.msra.mxu0 0.0
        %1313 = vmatprep.subr.mxu0 0.0
        %1314 = vmatpush1.msra.mxu0 0.0
        %1315 = vmatprep.subr.mxu0 0.0
        %1316 = vmatpush1.msra.mxu0 0.0
        %1317 = vmatprep.subr.mxu0 0.0
        %1318 = vmatpush1.msra.mxu0 0.0
        %1319 = vmatprep.subr.mxu0 0.0
        %1320 = vmatpush1.msra.mxu0 0.0
        %1321 = vmatprep.subr.mxu0 0.0
        %1322 = vmatpush1.msra.mxu0 0.0
        %1323 = vmatprep.subr.mxu0 0.0
        %1324 = vmatpush1.msra.mxu0 0.0
        %1325 = vmatprep.subr.mxu0 0.0
        %1326 = vmatpush1.msra.mxu0 0.0
        %1327 = vmatprep.subr.mxu0 0.0
        %1328 = vmatpush1.msra.mxu0 0.0
        %1329 = vmatprep.subr.mxu0 0.0
        %1330 = vmatpush1.msra.mxu0 0.0
        %1331 = vmatprep.subr.mxu0 0.0
        %1332 = vmatpush1.msra.mxu0 0.0
        %1333 = vmatprep.subr.mxu0 0.0
        %1334 = vmatpush1.msra.mxu0 0.0
        %1335 = vmatprep.subr.mxu0 0.0
        %1336 = vmatpush1.msra.mxu0 0.0
        %1337 = vmatprep.subr.mxu0 0.0
        %1338 = vmatpush1.msra.mxu0 0.0
        %1339 = vmatprep.subr.mxu0 0.0
        %1340 = vmatpush1.msra.mxu0 0.0
        %1341 = vmatprep.subr.mxu0 0.0
        %1342 = vmatpush1.msra.mxu0 0.0
        %1343 = vmatprep.subr.mxu0 0.0
        %1344 = vmatpush1.msra.mxu0 0.0
        %1345 = vmatprep.subr.mxu0 0.0
        %1346 = vmatpush1.msra.mxu0 0.0
        %1347 = vmatprep.subr.mxu0 0.0
        %1348 = vmatpush1.msra.mxu0 0.0
        %1349 = vmatprep.subr.mxu0 0.0
        %1350 = vmatpush1.msra.mxu0 0.0
        %1351 = vmatprep.subr.mxu0 0.0
        %1352 = vmatpush1.msra.mxu0 0.0
        %1353 = vmatprep.subr.mxu0 0.0
        %1354 = vmatpush1.msra.mxu0 0.0
        %1355 = vmatprep.subr.mxu0 0.0
        %1356 = vmatpush1.msra.mxu0 0.0
        %1357 = vmatprep.subr.mxu0 0.0
        %1358 = vmatpush1.msra.mxu0 0.0
        %1359 = vmatprep.subr.mxu0 0.0
        %1360 = vmatpush1.msra.mxu0 0.0
        %1361 = vmatprep.subr.mxu0 0.0
        %1362 = vmatpush1.msra.mxu0 0.0
        %1363 = vmatprep.subr.mxu0 0.0
        %1364 = vmatpush1.msra.mxu0 0.0
        %1365 = vmatprep.subr.mxu0 0.0
        %1366 = vmatpush1.msra.mxu0 0.0
        %1367 = vmatprep.mubr.f32.mxu0 0.0
        %1368 = vmatmul.mubr.f32.gmra.mrb[0].mxu0 %v1292
        %v1369 = vpop.f32.mrb[0].mxu0
        %v1370 = vadd.f32 0.0, %v1369
        %v1371 = vpop.f32.mrb[0].mxu0
        %v1372 = vadd.f32 0.0, %v1371
        %1373 = vmatprep.mubr.f32.mxu0 0.0
        %1374 = vmatmul.mubr.f32.gmra.mrb[0].mxu0 %v1295
        %v1375 = vpop.f32.mrb[0].mxu0
        %v1376 = vadd.f32 0.0, %v1375
        %v1377 = vpop.f32.mrb[0].mxu0
        %v1378 = vadd.f32 0.0, %v1377
        %1379 = vmatprep.mubr.f32.mxu0 0.0
        %1380 = vmatmul.mubr.f32.gmra.mrb[0].mxu0 %v1298
        %v1381 = vpop.f32.mrb[0].mxu0
        %v1382 = vadd.f32 0.0, %v1381
        %v1383 = vpop.f32.mrb[0].mxu0
        %v1384 = vadd.f32 0.0, %v1383
        %1385 = vmatprep.mubr.f32.mxu0 0.0
        %1386 = vmatmul.mubr.f32.gmra.mrb[0].mxu0 %v1301
        %v1387 = vpop.f32.mrb[0].mxu0
        %v1388 = vadd.f32 0.0, %v1387
        %v1389 = vpop.f32.mrb[0].mxu0
        %v1390 = vadd.f32 0.0, %v1389
        %1391 = vdwg.mxu0
        %v1392 = vadd.f32 %v1265, %v1370
        %v1393 = vadd.f32 %v1267, %v1372
        %v1394 = vadd.f32 %v1271, %v1376
        %v1395 = vadd.f32 %v1273, %v1378
        %v1396 = vadd.f32 %v1277, %v1382
        %v1397 = vadd.f32 %v1279, %v1384
        %v1398 = vadd.f32 %v1283, %v1388
        %v1399 = vadd.f32 %v1285, %v1390
        %v1400 = vld [vmem:[%s3 + $0x40] sm:$0xff]
        %v1401 = vld [vmem:[%s3 + $0x48] sm:$0xff]
        %v1402 = vld [vmem:[%s3 + $0x50] sm:$0xff]
        %v1403 = vld [vmem:[%s3 + $0x58] sm:$0xff]
        %1405 = vset.pattern.permute.xlu0 0
        %1406 = vperm.xlu0 %1405, %v1400
        %v1407 = vpop.permute.xlu0 %1406
        %1410 = vset.pattern.permute.xlu0 0
        %1411 = vperm.xlu0 %1410, %v1401
        %v1412 = vpop.permute.xlu0 %1411
        %1415 = vset.pattern.permute.xlu0 0
        %1416 = vperm.xlu0 %1415, %v1402
        %v1417 = vpop.permute.xlu0 %1416
        %1420 = vset.pattern.permute.xlu0 0
        %1421 = vperm.xlu0 %1420, %v1403
        %v1422 = vpop.permute.xlu0 %1421
        %v1424 = vadd.f32 %v1392, %v1407
        %v1425 = vadd.f32 %v1393, %v1407
        %v1426 = vadd.f32 %v1394, %v1412
        %v1427 = vadd.f32 %v1395, %v1412
        %v1428 = vadd.f32 %v1396, %v1417
        %v1429 = vadd.f32 %v1397, %v1417
        %v1430 = vadd.f32 %v1398, %v1422
        %v1431 = vadd.f32 %v1399, %v1422
        %v1432 = vmax.f32 %v1424, 0.0
        %v1433 = vmax.f32 %v1425, 0.0
        %v1434 = vmax.f32 %v1426, 0.0
        %v1435 = vmax.f32 %v1427, 0.0
        %v1436 = vmax.f32 %v1428, 0.0
        %v1437 = vmax.f32 %v1429, 0.0
        %v1438 = vmax.f32 %v1430, 0.0
        %v1439 = vmax.f32 %v1431, 0.0
        %v1440 = vld [vmem:[%s2 + $0xa0] sm:$0x7]
        %v1442 = vsel %vm1185, %v1440, 0
        %1444 = vmatprep.subr.mxu0 %v1433
        %1445 = vmatpush1.msra.mxu0 %v1432
        %1446 = vmatprep.subr.mxu0 %v1435
        %1447 = vmatpush1.msra.mxu0 %v1434
        %1448 = vmatprep.subr.mxu0 %v1437
        %1449 = vmatpush1.msra.mxu0 %v1436
        %1450 = vmatprep.subr.mxu0 %v1439
        %1451 = vmatpush1.msra.mxu0 %v1438
        %1452 = vmatprep.subr.mxu0 0.0
        %1453 = vmatpush1.msra.mxu0 0.0
        %1454 = vmatprep.subr.mxu0 0.0
        %1455 = vmatpush1.msra.mxu0 0.0
        %1456 = vmatprep.subr.mxu0 0.0
        %1457 = vmatpush1.msra.mxu0 0.0
        %1458 = vmatprep.subr.mxu0 0.0
        %1459 = vmatpush1.msra.mxu0 0.0
        %1460 = vmatprep.subr.mxu0 0.0
        %1461 = vmatpush1.msra.mxu0 0.0
        %1462 = vmatprep.subr.mxu0 0.0
        %1463 = vmatpush1.msra.mxu0 0.0
        %1464 = vmatprep.subr.mxu0 0.0
        %1465 = vmatpush1.msra.mxu0 0.0
        %1466 = vmatprep.subr.mxu0 0.0
        %1467 = vmatpush1.msra.mxu0 0.0
        %1468 = vmatprep.subr.mxu0 0.0
        %1469 = vmatpush1.msra.mxu0 0.0
        %1470 = vmatprep.subr.mxu0 0.0
        %1471 = vmatpush1.msra.mxu0 0.0
        %1472 = vmatprep.subr.mxu0 0.0
        %1473 = vmatpush1.msra.mxu0 0.0
        %1474 = vmatprep.subr.mxu0 0.0
        %1475 = vmatpush1.msra.mxu0 0.0
        %1476 = vmatprep.subr.mxu0 0.0
        %1477 = vmatpush1.msra.mxu0 0.0
        %1478 = vmatprep.subr.mxu0 0.0
        %1479 = vmatpush1.msra.mxu0 0.0
        %1480 = vmatprep.subr.mxu0 0.0
        %1481 = vmatpush1.msra.mxu0 0.0
        %1482 = vmatprep.subr.mxu0 0.0
        %1483 = vmatpush1.msra.mxu0 0.0
        %1484 = vmatprep.subr.mxu0 0.0
        %1485 = vmatpush1.msra.mxu0 0.0
        %1486 = vmatprep.subr.mxu0 0.0
        %1487 = vmatpush1.msra.mxu0 0.0
        %1488 = vmatprep.subr.mxu0 0.0
        %1489 = vmatpush1.msra.mxu0 0.0
        %1490 = vmatprep.subr.mxu0 0.0
        %1491 = vmatpush1.msra.mxu0 0.0
        %1492 = vmatprep.subr.mxu0 0.0
        %1493 = vmatpush1.msra.mxu0 0.0
        %1494 = vmatprep.subr.mxu0 0.0
        %1495 = vmatpush1.msra.mxu0 0.0
        %1496 = vmatprep.subr.mxu0 0.0
        %1497 = vmatpush1.msra.mxu0 0.0
        %1498 = vmatprep.subr.mxu0 0.0
        %1499 = vmatpush1.msra.mxu0 0.0
        %1500 = vmatprep.subr.mxu0 0.0
        %1501 = vmatpush1.msra.mxu0 0.0
        %1502 = vmatprep.subr.mxu0 0.0
        %1503 = vmatpush1.msra.mxu0 0.0
        %1504 = vmatprep.subr.mxu0 0.0
        %1505 = vmatpush1.msra.mxu0 0.0
        %1506 = vmatprep.subr.mxu0 0.0
        %1507 = vmatpush1.msra.mxu0 0.0
        %1508 = vmatprep.mubr.f32.mxu0 0.0
        %1509 = vmatmul.mubr.f32.gmra.mrb[0].mxu0 %v1442
        %v1510 = vpop.f32.mrb[0].mxu0
        %v1511 = vadd.f32 0.0, %v1510
        %v1512 = vpop.f32.mrb[0].mxu0
        %v1513 = vadd.f32 0.0, %v1512
        %1514 = vdwg.mxu0
        %v1515 = vadd.f32 %v271, %v1511
        %v1516 = vadd.f32 %v272, %v1513
        %v1517 = vld [vmem:[%s3 + $0xa0] sm:$0x7]
        %1519 = vset.pattern.permute.xlu0 0
        %1520 = vperm.xlu0 %1519, %v1517
        %v1521 = vpop.permute.xlu0 %1520
        %v1523 = vadd.f32 %v1515, %v1521
        %v1524 = vadd.f32 %v1516, %v1521
        %v1525 = vand.u32 2147483647, %v1523
        %vm1526 = vcmp.le.f32.partialorder %v1525, 0.7853982
        %vm1527 = vcmp.lt.s32.totalorder %v1523, 0
        %v1528 = vand.u32 %v1523, 2139095040
        %v1529 = vshrl.u32 %v1528, 23
        %v1530 = vsub.s32 %v1529, 127
        %v1531 = vand.u32 2147483647, %v1523
        %v1532 = vand.u32 %v1531, 8388607
        %v1533 = vor.u32 %v1532, 8388608
        %v1534 = vsub.s32 0, %v1533
        %v1535 = vadd.s32 %v1530, 1
        %vm1536 = vcmp.gt.s32.totalorder %v1535, 0
        %v1537 = vsel %vm1536, %v1535, 0
        %v1538 = vshrl.u32 %v1537, 5
        %v1539 = vand.u32 %v1537, 31
        %v1540 = vsub.s32 32, %v1539
        %v1541 = vshrl.u32 683565275, %v1540
        %v1542 = vshll.u32 683565275, %v1539
        %v1543 = vshrl.u32 2475754826, %v1540
        %v1544 = vor.u32 %v1542, %v1543
        %v1545 = vshll.u32 2475754826, %v1539
        %v1546 = vshrl.u32 2131351028, %v1540
        %v1547 = vor.u32 %v1545, %v1546
        %v1548 = vshll.u32 2131351028, %v1539
        %v1549 = vshrl.u32 2102212464, %v1540
        %v1550 = vor.u32 %v1548, %v1549
        %v1551 = vshll.u32 2102212464, %v1539
        %v1552 = vshrl.u32 920167782, %v1540
        %v1553 = vor.u32 %v1551, %v1552
        %v1554 = vshll.u32 920167782, %v1539
        %v1555 = vshrl.u32 1326507024, %v1540
        %v1556 = vor.u32 %v1554, %v1555
        %vm1557 = vcmp.lt.s32.totalorder %v1538, 1
        %vm1558 = vcmp.lt.s32.totalorder %v1538, 2
        %vm1559 = vcmp.lt.s32.totalorder %v1538, 3
        %vm1560 = vcmp.lt.s32.totalorder %v1538, 4
        %v1561 = vsel %vm1557, %v1541, %v1544
        %v1562 = vsel %vm1560, %v1550, 2102212464
        %v1563 = vsel %vm1559, %v1547, %v1562
        %v1564 = vsel %vm1558, %v1561, %v1563
        %v1565 = vsel %vm1557, %v1544, %v1547
        %v1566 = vsel %vm1560, %v1553, 920167782
        %v1567 = vsel %vm1559, %v1550, %v1566
        %v1568 = vsel %vm1558, %v1565, %v1567
        %v1569 = vsel %vm1557, %v1547, %v1550
        %v1570 = vsel %vm1560, %v1556, 1326507024
        %v1571 = vsel %vm1559, %v1553, %v1570
        %v1572 = vsel %vm1558, %v1569, %v1571
        %v1573 = vshll.u32 %v1533, 8
        %v1574 = vmul.u32.u64.compose %v1573, %v1572
        %v1575 = vextract.low.u32 %v1574
        %v1576 = vextract.high.u32 %v1574
        %v1577 = vmul.u32.u64.compose %v1573, %v1568
        %v1578 = vextract.low.u32 %v1577
        %v1579 = vextract.high.u32 %v1577
        %v1580 = vmul.u32 %v1573, %v1564
        %v1581 = vadd.s32 %v1576, %v1578
        %vm1582 = vc.u32 %v1576, %v1578
        %v1583 = vadd.s32 %v1579, 1
        %v1584 = vsel %vm1582, %v1583, %v1579
        %v1585 = vadd.s32 %v1580, %v1584
        %v1586 = vadd.s32 %v1585, 536870912
        %v1587 = vshrl.u32 %v1586, 30
        %v1588 = vshll.u32 %v1587, 30
        %v1589 = vsub.s32 %v1585, %v1588
        %vm1590 = vcmp.lt.s32.totalorder %v1589, 0
        %v1591 = vsub.s32 0, %v1589
        %v1592 = vsel %vm1590, %v1591, %v1589
        %v1593 = vclz %v1592
        %v1594 = vsub.s32 %v1593, 2
        %vm1595 = vcmp.gt.s32.totalorder 0, %v1594
        %v1596 = vsel %vm1595, 0, %v1594
        %v1597 = vsub.s32 32, %v1596
        %v1598 = vshll.u32 %v1589, %v1596
        %v1599 = vshrl.u32 %v1581, %v1597
        %v1600 = vor.u32 %v1598, %v1599
        %v1601 = vsub.s32 4294967266, %v1596
        %v1602 = vadd.s32 %v1601, 127
        %v1603 = vshll.u32 %v1602, 23
        %v1604 = vor.u32 4788187, %v1603
        %v1605 = vand.u32 2147483647, %v1604
        %v1607 = vcvt.s32.f32 %v1600
        %v1608 = vmul.f32 %v1607, %v1605
        %v1609 = vxor.u32 %v1608, 2147483648
        %v1610 = vsel %vm1527, %v1609, %v1608
        %v1611 = vsub.s32 4, %v1587
        %v1612 = vsel %vm1527, %v1611, %v1587
        %v1613 = vsel %vm1526, %v1523, %v1610
        %v1614 = vsel %vm1526, 0, %v1612
        %v1615 = vcosq.f32.pop %v1613
        %v1616 = vsinq.f32.pop %v1613
        %vm1617 = vweird.f32 %v1523
        %v1618 = vadd.s32 %v1614, 3
        %v1619 = vand.u32 %v1618, 3
        %vm1620 = vcmp.lt.s32.totalorder %v1619, 2
        %vm1621 = vcmp.eq.s32.totalorder %v1619, 0
        %v1622 = vxor.u32 %v1616, 2147483648
        %v1623 = vsel %vm1621, %v1615, %v1622
        %vm1624 = vcmp.eq.s32.totalorder %v1619, 2
        %v1625 = vxor.u32 %v1615, 2147483648
        %v1626 = vsel %vm1624, %v1625, %v1616
        %v1627 = vsel %vm1620, %v1623, %v1626
        %v1628 = vsel %vm1617, nan, %v1627
        %v1629 = vand.u32 2147483647, %v1524
        %vm1630 = vcmp.le.f32.partialorder %v1629, 0.7853982
        %vm1631 = vcmp.lt.s32.totalorder %v1524, 0
        %v1632 = vand.u32 %v1524, 2139095040
        %v1633 = vshrl.u32 %v1632, 23
        %v1634 = vsub.s32 %v1633, 127
        %v1635 = vand.u32 2147483647, %v1524
        %v1636 = vand.u32 %v1635, 8388607
        %v1637 = vor.u32 %v1636, 8388608
        %v1638 = vsub.s32 0, %v1637
        %v1639 = vadd.s32 %v1634, 1
        %vm1640 = vcmp.gt.s32.totalorder %v1639, 0
        %v1641 = vsel %vm1640, %v1639, 0
        %v1642 = vshrl.u32 %v1641, 5
        %v1643 = vand.u32 %v1641, 31
        %v1644 = vsub.s32 32, %v1643
        %v1645 = vshrl.u32 683565275, %v1644
        %v1646 = vshll.u32 683565275, %v1643
        %v1647 = vshrl.u32 2475754826, %v1644
        %v1648 = vor.u32 %v1646, %v1647
        %v1649 = vshll.u32 2475754826, %v1643
        %v1650 = vshrl.u32 2131351028, %v1644
        %v1651 = vor.u32 %v1649, %v1650
        %v1652 = vshll.u32 2131351028, %v1643
        %v1653 = vshrl.u32 2102212464, %v1644
        %v1654 = vor.u32 %v1652, %v1653
        %v1655 = vshll.u32 2102212464, %v1643
        %v1656 = vshrl.u32 920167782, %v1644
        %v1657 = vor.u32 %v1655, %v1656
        %v1658 = vshll.u32 920167782, %v1643
        %v1659 = vshrl.u32 1326507024, %v1644
        %v1660 = vor.u32 %v1658, %v1659
        %vm1661 = vcmp.lt.s32.totalorder %v1642, 1
        %vm1662 = vcmp.lt.s32.totalorder %v1642, 2
        %vm1663 = vcmp.lt.s32.totalorder %v1642, 3
        %vm1664 = vcmp.lt.s32.totalorder %v1642, 4
        %v1665 = vsel %vm1661, %v1645, %v1648
        %v1666 = vsel %vm1664, %v1654, 2102212464
        %v1667 = vsel %vm1663, %v1651, %v1666
        %v1668 = vsel %vm1662, %v1665, %v1667
        %v1669 = vsel %vm1661, %v1648, %v1651
        %v1670 = vsel %vm1664, %v1657, 920167782
        %v1671 = vsel %vm1663, %v1654, %v1670
        %v1672 = vsel %vm1662, %v1669, %v1671
        %v1673 = vsel %vm1661, %v1651, %v1654
        %v1674 = vsel %vm1664, %v1660, 1326507024
        %v1675 = vsel %vm1663, %v1657, %v1674
        %v1676 = vsel %vm1662, %v1673, %v1675
        %v1677 = vshll.u32 %v1637, 8
        %v1678 = vmul.u32.u64.compose %v1677, %v1676
        %v1679 = vextract.low.u32 %v1678
        %v1680 = vextract.high.u32 %v1678
        %v1681 = vmul.u32.u64.compose %v1677, %v1672
        %v1682 = vextract.low.u32 %v1681
        %v1683 = vextract.high.u32 %v1681
        %v1684 = vmul.u32 %v1677, %v1668
        %v1685 = vadd.s32 %v1680, %v1682
        %vm1686 = vc.u32 %v1680, %v1682
        %v1687 = vadd.s32 %v1683, 1
        %v1688 = vsel %vm1686, %v1687, %v1683
        %v1689 = vadd.s32 %v1684, %v1688
        %v1690 = vadd.s32 %v1689, 536870912
        %v1691 = vshrl.u32 %v1690, 30
        %v1692 = vshll.u32 %v1691, 30
        %v1693 = vsub.s32 %v1689, %v1692
        %vm1694 = vcmp.lt.s32.totalorder %v1693, 0
        %v1695 = vsub.s32 0, %v1693
        %v1696 = vsel %vm1694, %v1695, %v1693
        %v1697 = vclz %v1696
        %v1698 = vsub.s32 %v1697, 2
        %vm1699 = vcmp.gt.s32.totalorder 0, %v1698
        %v1700 = vsel %vm1699, 0, %v1698
        %v1701 = vsub.s32 32, %v1700
        %v1702 = vshll.u32 %v1693, %v1700
        %v1703 = vshrl.u32 %v1685, %v1701
        %v1704 = vor.u32 %v1702, %v1703
        %v1705 = vsub.s32 4294967266, %v1700
        %v1706 = vadd.s32 %v1705, 127
        %v1707 = vshll.u32 %v1706, 23
        %v1708 = vor.u32 4788187, %v1707
        %v1709 = vand.u32 2147483647, %v1708
        %v1711 = vcvt.s32.f32 %v1704
        %v1712 = vmul.f32 %v1711, %v1709
        %v1713 = vxor.u32 %v1712, 2147483648
        %v1714 = vsel %vm1631, %v1713, %v1712
        %v1715 = vsub.s32 4, %v1691
        %v1716 = vsel %vm1631, %v1715, %v1691
        %v1717 = vsel %vm1630, %v1524, %v1714
        %v1718 = vsel %vm1630, 0, %v1716
        %v1719 = vcosq.f32.pop %v1717
        %v1720 = vsinq.f32.pop %v1717
        %vm1721 = vweird.f32 %v1524
        %v1722 = vadd.s32 %v1718, 3
        %v1723 = vand.u32 %v1722, 3
        %vm1724 = vcmp.lt.s32.totalorder %v1723, 2
        %vm1725 = vcmp.eq.s32.totalorder %v1723, 0
        %v1726 = vxor.u32 %v1720, 2147483648
        %v1727 = vsel %vm1725, %v1719, %v1726
        %vm1728 = vcmp.eq.s32.totalorder %v1723, 2
        %v1729 = vxor.u32 %v1719, 2147483648
        %v1730 = vsel %vm1728, %v1729, %v1720
        %v1731 = vsel %vm1724, %v1727, %v1730
        %v1732 = vsel %vm1721, nan, %v1731
        %v1733 = vand.u32 2147483647, %v1523
        %vm1734 = vcmp.le.f32.partialorder %v1733, 0.7853982
        %vm1735 = vcmp.lt.s32.totalorder %v1523, 0
        %v1736 = vand.u32 %v1523, 2139095040
        %v1737 = vshrl.u32 %v1736, 23
        %v1738 = vsub.s32 %v1737, 127
        %v1739 = vand.u32 2147483647, %v1523
        %v1740 = vand.u32 %v1739, 8388607
        %v1741 = vor.u32 %v1740, 8388608
        %v1742 = vsub.s32 0, %v1741
        %v1743 = vadd.s32 %v1738, 1
        %vm1744 = vcmp.gt.s32.totalorder %v1743, 0
        %v1745 = vsel %vm1744, %v1743, 0
        %v1746 = vshrl.u32 %v1745, 5
        %v1747 = vand.u32 %v1745, 31
        %v1748 = vsub.s32 32, %v1747
        %v1749 = vshrl.u32 683565275, %v1748
        %v1750 = vshll.u32 683565275, %v1747
        %v1751 = vshrl.u32 2475754826, %v1748
        %v1752 = vor.u32 %v1750, %v1751
        %v1753 = vshll.u32 2475754826, %v1747
        %v1754 = vshrl.u32 2131351028, %v1748
        %v1755 = vor.u32 %v1753, %v1754
        %v1756 = vshll.u32 2131351028, %v1747
        %v1757 = vshrl.u32 2102212464, %v1748
        %v1758 = vor.u32 %v1756, %v1757
        %v1759 = vshll.u32 2102212464, %v1747
        %v1760 = vshrl.u32 920167782, %v1748
        %v1761 = vor.u32 %v1759, %v1760
        %v1762 = vshll.u32 920167782, %v1747
        %v1763 = vshrl.u32 1326507024, %v1748
        %v1764 = vor.u32 %v1762, %v1763
        %vm1765 = vcmp.lt.s32.totalorder %v1746, 1
        %vm1766 = vcmp.lt.s32.totalorder %v1746, 2
        %vm1767 = vcmp.lt.s32.totalorder %v1746, 3
        %vm1768 = vcmp.lt.s32.totalorder %v1746, 4
        %v1769 = vsel %vm1765, %v1749, %v1752
        %v1770 = vsel %vm1768, %v1758, 2102212464
        %v1771 = vsel %vm1767, %v1755, %v1770
        %v1772 = vsel %vm1766, %v1769, %v1771
        %v1773 = vsel %vm1765, %v1752, %v1755
        %v1774 = vsel %vm1768, %v1761, 920167782
        %v1775 = vsel %vm1767, %v1758, %v1774
        %v1776 = vsel %vm1766, %v1773, %v1775
        %v1777 = vsel %vm1765, %v1755, %v1758
        %v1778 = vsel %vm1768, %v1764, 1326507024
        %v1779 = vsel %vm1767, %v1761, %v1778
        %v1780 = vsel %vm1766, %v1777, %v1779
        %v1781 = vshll.u32 %v1741, 8
        %v1782 = vmul.u32.u64.compose %v1781, %v1780
        %v1783 = vextract.low.u32 %v1782
        %v1784 = vextract.high.u32 %v1782
        %v1785 = vmul.u32.u64.compose %v1781, %v1776
        %v1786 = vextract.low.u32 %v1785
        %v1787 = vextract.high.u32 %v1785
        %v1788 = vmul.u32 %v1781, %v1772
        %v1789 = vadd.s32 %v1784, %v1786
        %vm1790 = vc.u32 %v1784, %v1786
        %v1791 = vadd.s32 %v1787, 1
        %v1792 = vsel %vm1790, %v1791, %v1787
        %v1793 = vadd.s32 %v1788, %v1792
        %v1794 = vadd.s32 %v1793, 536870912
        %v1795 = vshrl.u32 %v1794, 30
        %v1796 = vshll.u32 %v1795, 30
        %v1797 = vsub.s32 %v1793, %v1796
        %vm1798 = vcmp.lt.s32.totalorder %v1797, 0
        %v1799 = vsub.s32 0, %v1797
        %v1800 = vsel %vm1798, %v1799, %v1797
        %v1801 = vclz %v1800
        %v1802 = vsub.s32 %v1801, 2
        %vm1803 = vcmp.gt.s32.totalorder 0, %v1802
        %v1804 = vsel %vm1803, 0, %v1802
        %v1805 = vsub.s32 32, %v1804
        %v1806 = vshll.u32 %v1797, %v1804
        %v1807 = vshrl.u32 %v1789, %v1805
        %v1808 = vor.u32 %v1806, %v1807
        %v1809 = vsub.s32 4294967266, %v1804
        %v1810 = vadd.s32 %v1809, 127
        %v1811 = vshll.u32 %v1810, 23
        %v1812 = vor.u32 4788187, %v1811
        %v1813 = vand.u32 2147483647, %v1812
        %v1815 = vcvt.s32.f32 %v1808
        %v1816 = vmul.f32 %v1815, %v1813
        %v1817 = vxor.u32 %v1816, 2147483648
        %v1818 = vsel %vm1735, %v1817, %v1816
        %v1819 = vsub.s32 4, %v1795
        %v1820 = vsel %vm1735, %v1819, %v1795
        %v1821 = vsel %vm1734, %v1523, %v1818
        %v1822 = vsel %vm1734, 0, %v1820
        %v1823 = vcosq.f32.pop %v1821
        %v1824 = vsinq.f32.pop %v1821
        %vm1825 = vweird.f32 %v1523
        %v1826 = vand.u32 %v1822, 3
        %vm1827 = vcmp.lt.s32.totalorder %v1826, 2
        %vm1828 = vcmp.eq.s32.totalorder %v1826, 0
        %v1829 = vxor.u32 %v1824, 2147483648
        %v1830 = vsel %vm1828, %v1823, %v1829
        %vm1831 = vcmp.eq.s32.totalorder %v1826, 2
        %v1832 = vxor.u32 %v1823, 2147483648
        %v1833 = vsel %vm1831, %v1832, %v1824
        %v1834 = vsel %vm1827, %v1830, %v1833
        %v1835 = vsel %vm1825, nan, %v1834
        %v1836 = vand.u32 2147483647, %v1524
        %vm1837 = vcmp.le.f32.partialorder %v1836, 0.7853982
        %vm1838 = vcmp.lt.s32.totalorder %v1524, 0
        %v1839 = vand.u32 %v1524, 2139095040
        %v1840 = vshrl.u32 %v1839, 23
        %v1841 = vsub.s32 %v1840, 127
        %v1842 = vand.u32 2147483647, %v1524
        %v1843 = vand.u32 %v1842, 8388607
        %v1844 = vor.u32 %v1843, 8388608
        %v1845 = vsub.s32 0, %v1844
        %v1846 = vadd.s32 %v1841, 1
        %vm1847 = vcmp.gt.s32.totalorder %v1846, 0
        %v1848 = vsel %vm1847, %v1846, 0
        %v1849 = vshrl.u32 %v1848, 5
        %v1850 = vand.u32 %v1848, 31
        %v1851 = vsub.s32 32, %v1850
        %v1852 = vshrl.u32 683565275, %v1851
        %v1853 = vshll.u32 683565275, %v1850
        %v1854 = vshrl.u32 2475754826, %v1851
        %v1855 = vor.u32 %v1853, %v1854
        %v1856 = vshll.u32 2475754826, %v1850
        %v1857 = vshrl.u32 2131351028, %v1851
        %v1858 = vor.u32 %v1856, %v1857
        %v1859 = vshll.u32 2131351028, %v1850
        %v1860 = vshrl.u32 2102212464, %v1851
        %v1861 = vor.u32 %v1859, %v1860
        %v1862 = vshll.u32 2102212464, %v1850
        %v1863 = vshrl.u32 920167782, %v1851
        %v1864 = vor.u32 %v1862, %v1863
        %v1865 = vshll.u32 920167782, %v1850
        %v1866 = vshrl.u32 1326507024, %v1851
        %v1867 = vor.u32 %v1865, %v1866
        %vm1868 = vcmp.lt.s32.totalorder %v1849, 1
        %vm1869 = vcmp.lt.s32.totalorder %v1849, 2
        %vm1870 = vcmp.lt.s32.totalorder %v1849, 3
        %vm1871 = vcmp.lt.s32.totalorder %v1849, 4
        %v1872 = vsel %vm1868, %v1852, %v1855
        %v1873 = vsel %vm1871, %v1861, 2102212464
        %v1874 = vsel %vm1870, %v1858, %v1873
        %v1875 = vsel %vm1869, %v1872, %v1874
        %v1876 = vsel %vm1868, %v1855, %v1858
        %v1877 = vsel %vm1871, %v1864, 920167782
        %v1878 = vsel %vm1870, %v1861, %v1877
        %v1879 = vsel %vm1869, %v1876, %v1878
        %v1880 = vsel %vm1868, %v1858, %v1861
        %v1881 = vsel %vm1871, %v1867, 1326507024
        %v1882 = vsel %vm1870, %v1864, %v1881
        %v1883 = vsel %vm1869, %v1880, %v1882
        %v1884 = vshll.u32 %v1844, 8
        %v1885 = vmul.u32.u64.compose %v1884, %v1883
        %v1886 = vextract.low.u32 %v1885
        %v1887 = vextract.high.u32 %v1885
        %v1888 = vmul.u32.u64.compose %v1884, %v1879
        %v1889 = vextract.low.u32 %v1888
        %v1890 = vextract.high.u32 %v1888
        %v1891 = vmul.u32 %v1884, %v1875
        %v1892 = vadd.s32 %v1887, %v1889
        %vm1893 = vc.u32 %v1887, %v1889
        %v1894 = vadd.s32 %v1890, 1
        %v1895 = vsel %vm1893, %v1894, %v1890
        %v1896 = vadd.s32 %v1891, %v1895
        %v1897 = vadd.s32 %v1896, 536870912
        %v1898 = vshrl.u32 %v1897, 30
        %v1899 = vshll.u32 %v1898, 30
        %v1900 = vsub.s32 %v1896, %v1899
        %vm1901 = vcmp.lt.s32.totalorder %v1900, 0
        %v1902 = vsub.s32 0, %v1900
        %v1903 = vsel %vm1901, %v1902, %v1900
        %v1904 = vclz %v1903
        %v1905 = vsub.s32 %v1904, 2
        %vm1906 = vcmp.gt.s32.totalorder 0, %v1905
        %v1907 = vsel %vm1906, 0, %v1905
        %v1908 = vsub.s32 32, %v1907
        %v1909 = vshll.u32 %v1900, %v1907
        %v1910 = vshrl.u32 %v1892, %v1908
        %v1911 = vor.u32 %v1909, %v1910
        %v1912 = vsub.s32 4294967266, %v1907
        %v1913 = vadd.s32 %v1912, 127
        %v1914 = vshll.u32 %v1913, 23
        %v1915 = vor.u32 4788187, %v1914
        %v1916 = vand.u32 2147483647, %v1915
        %v1918 = vcvt.s32.f32 %v1911
        %v1919 = vmul.f32 %v1918, %v1916
        %v1920 = vxor.u32 %v1919, 2147483648
        %v1921 = vsel %vm1838, %v1920, %v1919
        %v1922 = vsub.s32 4, %v1898
        %v1923 = vsel %vm1838, %v1922, %v1898
        %v1924 = vsel %vm1837, %v1524, %v1921
        %v1925 = vsel %vm1837, 0, %v1923
        %v1926 = vcosq.f32.pop %v1924
        %v1927 = vsinq.f32.pop %v1924
        %vm1928 = vweird.f32 %v1524
        %v1929 = vand.u32 %v1925, 3
        %vm1930 = vcmp.lt.s32.totalorder %v1929, 2
        %vm1931 = vcmp.eq.s32.totalorder %v1929, 0
        %v1932 = vxor.u32 %v1927, 2147483648
        %v1933 = vsel %vm1931, %v1926, %v1932
        %vm1934 = vcmp.eq.s32.totalorder %v1929, 2
        %v1935 = vxor.u32 %v1926, 2147483648
        %v1936 = vsel %vm1934, %v1935, %v1927
        %v1937 = vsel %vm1930, %v1933, %v1936
        %v1938 = vsel %vm1928, nan, %v1937
        %v1939 = vmul.f32 %v1628, 2.0
        %v1940 = vmul.f32 %v1732, 2.0
        %v1941 = vmul.f32 %v1939, %v1835
        %v1942 = vmul.f32 %v1940, %v1938
        %v1943 = vmul.f32 %v1939, %v1628
        %v1944 = vmul.f32 %v1940, %v1732
        %v1945 = vsub.f32 1.0, %v1943
        %v1946 = vsub.f32 1.0, %v1944
        %v1947 = vmul.f32 %v1941, 2.0
        %v1948 = vmul.f32 %v1942, 2.0
        %v1949 = vmul.f32 %v1947, %v1945
        %v1950 = vmul.f32 %v1948, %v1946
        %v1951 = vmul.f32 %v1947, %v1941
        %v1952 = vmul.f32 %v1948, %v1942
        %v1953 = vsub.f32 1.0, %v1951
        %v1954 = vsub.f32 1.0, %v1952
        %v1955 = vmul.f32 %v1949, 2.0
        %v1956 = vmul.f32 %v1950, 2.0
        %v1957 = vmul.f32 %v1955, %v1953
        %v1958 = vmul.f32 %v1956, %v1954
        %v1959 = vmul.f32 %v1955, %v1949
        %v1960 = vmul.f32 %v1956, %v1950
        %v1961 = vsub.f32 1.0, %v1959
        %v1962 = vsub.f32 1.0, %v1960
        %v1965 = vrot.slane %v1628, 5
        %v1966 = vrot.slane %v1732, 5
        %v1971 = vrot.slane %v1835, 2
        %v1972 = vrot.slane %v1938, 2
        %v1977 = vrot.slane %v1941, 7
        %v1978 = vrot.slane %v1942, 7
        %v1983 = vrot.slane %v1945, 4
        %v1984 = vrot.slane %v1946, 4
        %v1989 = vrot.slane %v1949, 1
        %v1990 = vrot.slane %v1950, 1
        %v1995 = vrot.slane %v1953, 6
        %v1996 = vrot.slane %v1954, 6
        %v2001 = vrot.slane %v1957, 3
        %v2002 = vrot.slane %v1958, 3
        %v2005 = vsel %vm755, %v1523, %v1965
        %v2006 = vsel %vm755, %v1524, %v1966
        %v2007 = vsel %vm758, %v2005, %v1971
        %v2008 = vsel %vm758, %v2006, %v1972
        %v2009 = vsel %vm761, %v1971, %v1977
        %v2010 = vsel %vm761, %v1972, %v1978
        %v2011 = vsel %vm764, %v2009, %v1983
        %v2012 = vsel %vm764, %v2010, %v1984
        %v2013 = vsel %vm767, %v2011, %v1989
        %v2014 = vsel %vm767, %v2012, %v1990
        %v2015 = vsel %vm770, %v1989, %v1995
        %v2016 = vsel %vm770, %v1990, %v1996
        %v2017 = vsel %vm773, %v2015, %v2001
        %v2018 = vsel %vm773, %v2016, %v2002
        %v2019 = vld [vmem:[%s2 + $0xa8] sm:$0xff]
        %v2020 = vld [vmem:[%s2 + $0xb0] sm:$0xff]
        %v2021 = vld [vmem:[%s2 + $0xb8] sm:$0xff]
        %v2022 = vld [vmem:[%s2 + $0xc0] sm:$0xff]
        %v2023 = vld [vmem:[%s3 + $0xa8] sm:$0xff]
        %v2024 = vld [vmem:[%s3 + $0xb0] sm:$0xff]
        %v2025 = vld [vmem:[%s3 + $0xb8] sm:$0xff]
        %v2026 = vld [vmem:[%s3 + $0xc0] sm:$0xff]
        %2028 = vset.pattern.permute.xlu0 0
        %2029 = vperm.xlu0 %2028, %v2023
        %v2030 = vpop.permute.xlu0 %2029
        %2033 = vset.pattern.permute.xlu0 0
        %2034 = vperm.xlu0 %2033, %v2024
        %v2035 = vpop.permute.xlu0 %2034
        %2038 = vset.pattern.permute.xlu0 0
        %2039 = vperm.xlu0 %2038, %v2025
        %v2040 = vpop.permute.xlu0 %2039
        %2043 = vset.pattern.permute.xlu0 0
        %2044 = vperm.xlu0 %2043, %v2026
        %v2045 = vpop.permute.xlu0 %2044
        %v2048 = vsel %vm930, %v2019, 0
        %v2051 = vsel %vm930, %v2020, 0
        %v2054 = vsel %vm930, %v2021, 0
        %v2057 = vsel %vm930, %v2022, 0
        %v2060 = vsel %vm755, %v1961, 0
        %v2063 = vsel %vm755, %v1962, 0
        %2065 = vmatprep.subr.mxu0 %v2008
        %2066 = vmatpush1.msra.mxu0 %v2007
        %2067 = vmatprep.subr.mxu0 %v2014
        %2068 = vmatpush1.msra.mxu0 %v2013
        %2069 = vmatprep.subr.mxu0 %v2018
        %2070 = vmatpush1.msra.mxu0 %v2017
        %2071 = vmatprep.subr.mxu0 %v2063
        %2072 = vmatpush1.msra.mxu0 %v2060
        %2073 = vmatprep.subr.mxu0 0.0
        %2074 = vmatpush1.msra.mxu0 0.0
        %2075 = vmatprep.subr.mxu0 0.0
        %2076 = vmatpush1.msra.mxu0 0.0
        %2077 = vmatprep.subr.mxu0 0.0
        %2078 = vmatpush1.msra.mxu0 0.0
        %2079 = vmatprep.subr.mxu0 0.0
        %2080 = vmatpush1.msra.mxu0 0.0
        %2081 = vmatprep.subr.mxu0 0.0
        %2082 = vmatpush1.msra.mxu0 0.0
        %2083 = vmatprep.subr.mxu0 0.0
        %2084 = vmatpush1.msra.mxu0 0.0
        %2085 = vmatprep.subr.mxu0 0.0
        %2086 = vmatpush1.msra.mxu0 0.0
        %2087 = vmatprep.subr.mxu0 0.0
        %2088 = vmatpush1.msra.mxu0 0.0
        %2089 = vmatprep.subr.mxu0 0.0
        %2090 = vmatpush1.msra.mxu0 0.0
        %2091 = vmatprep.subr.mxu0 0.0
        %2092 = vmatpush1.msra.mxu0 0.0
        %2093 = vmatprep.subr.mxu0 0.0
        %2094 = vmatpush1.msra.mxu0 0.0
        %2095 = vmatprep.subr.mxu0 0.0
        %2096 = vmatpush1.msra.mxu0 0.0
        %2097 = vmatprep.subr.mxu0 0.0
        %2098 = vmatpush1.msra.mxu0 0.0
        %2099 = vmatprep.subr.mxu0 0.0
        %2100 = vmatpush1.msra.mxu0 0.0
        %2101 = vmatprep.subr.mxu0 0.0
        %2102 = vmatpush1.msra.mxu0 0.0
        %2103 = vmatprep.subr.mxu0 0.0
        %2104 = vmatpush1.msra.mxu0 0.0
        %2105 = vmatprep.subr.mxu0 0.0
        %2106 = vmatpush1.msra.mxu0 0.0
        %2107 = vmatprep.subr.mxu0 0.0
        %2108 = vmatpush1.msra.mxu0 0.0
        %2109 = vmatprep.subr.mxu0 0.0
        %2110 = vmatpush1.msra.mxu0 0.0
        %2111 = vmatprep.subr.mxu0 0.0
        %2112 = vmatpush1.msra.mxu0 0.0
        %2113 = vmatprep.subr.mxu0 0.0
        %2114 = vmatpush1.msra.mxu0 0.0
        %2115 = vmatprep.subr.mxu0 0.0
        %2116 = vmatpush1.msra.mxu0 0.0
        %2117 = vmatprep.subr.mxu0 0.0
        %2118 = vmatpush1.msra.mxu0 0.0
        %2119 = vmatprep.subr.mxu0 0.0
        %2120 = vmatpush1.msra.mxu0 0.0
        %2121 = vmatprep.subr.mxu0 0.0
        %2122 = vmatpush1.msra.mxu0 0.0
        %2123 = vmatprep.subr.mxu0 0.0
        %2124 = vmatpush1.msra.mxu0 0.0
        %2125 = vmatprep.subr.mxu0 0.0
        %2126 = vmatpush1.msra.mxu0 0.0
        %2127 = vmatprep.subr.mxu0 0.0
        %2128 = vmatpush1.msra.mxu0 0.0
        %2129 = vmatprep.mubr.f32.mxu0 0.0
        %2130 = vmatmul.mubr.f32.gmra.mrb[0].mxu0 %v2048
        %v2131 = vpop.f32.mrb[0].mxu0
        %v2132 = vadd.f32 %v2030, %v2131
        %v2133 = vpop.f32.mrb[0].mxu0
        %v2134 = vadd.f32 %v2030, %v2133
        %2135 = vmatprep.mubr.f32.mxu0 0.0
        %2136 = vmatmul.mubr.f32.gmra.mrb[0].mxu0 %v2051
        %v2137 = vpop.f32.mrb[0].mxu0
        %v2138 = vadd.f32 %v2035, %v2137
        %v2139 = vpop.f32.mrb[0].mxu0
        %v2140 = vadd.f32 %v2035, %v2139
        %2141 = vmatprep.mubr.f32.mxu0 0.0
        %2142 = vmatmul.mubr.f32.gmra.mrb[0].mxu0 %v2054
        %v2143 = vpop.f32.mrb[0].mxu0
        %v2144 = vadd.f32 %v2040, %v2143
        %v2145 = vpop.f32.mrb[0].mxu0
        %v2146 = vadd.f32 %v2040, %v2145
        %2147 = vmatprep.mubr.f32.mxu0 0.0
        %2148 = vmatmul.mubr.f32.gmra.mrb[0].mxu0 %v2057
        %v2149 = vpop.f32.mrb[0].mxu0
        %v2150 = vadd.f32 %v2045, %v2149
        %v2151 = vpop.f32.mrb[0].mxu0
        %v2152 = vadd.f32 %v2045, %v2151
        %2153 = vdwg.mxu0
        %v2154 = vmax.f32 %v2132, 0.0
        %v2155 = vmax.f32 %v2134, 0.0
        %v2156 = vmax.f32 %v2138, 0.0
        %v2157 = vmax.f32 %v2140, 0.0
        %v2158 = vmax.f32 %v2144, 0.0
        %v2159 = vmax.f32 %v2146, 0.0
        %v2160 = vmax.f32 %v2150, 0.0
        %v2161 = vmax.f32 %v2152, 0.0
        %v2162 = vld [vmem:[%s2 + $0xc8] sm:$0xff]
        %v2163 = vld [vmem:[%s2 + $0xd0] sm:$0xff]
        %v2164 = vld [vmem:[%s2 + $0xd8] sm:$0xff]
        %v2165 = vld [vmem:[%s2 + $0xe0] sm:$0xff]
        %v2166 = vld [vmem:[%s2 + $0xe8] sm:$0xff]
        %v2167 = vld [vmem:[%s2 + $0xf0] sm:$0xff]
        %v2168 = vld [vmem:[%s2 + $0xf8] sm:$0xff]
        %v2169 = vld [vmem:[%s2 + $0x100] sm:$0xff]
        %v2171 = vsel %vm930, %v2166, 0
        %v2174 = vsel %vm930, %v2167, 0
        %v2177 = vsel %vm930, %v2168, 0
        %v2180 = vsel %vm930, %v2169, 0
        %2182 = vmatprep.subr.mxu0 %v2008
        %2183 = vmatpush1.msra.mxu0 %v2007
        %2184 = vmatprep.subr.mxu0 %v2014
        %2185 = vmatpush1.msra.mxu0 %v2013
        %2186 = vmatprep.subr.mxu0 %v2018
        %2187 = vmatpush1.msra.mxu0 %v2017
        %2188 = vmatprep.subr.mxu0 %v2063
        %2189 = vmatpush1.msra.mxu0 %v2060
        %2190 = vmatprep.subr.mxu0 0.0
        %2191 = vmatpush1.msra.mxu0 0.0
        %2192 = vmatprep.subr.mxu0 0.0
        %2193 = vmatpush1.msra.mxu0 0.0
        %2194 = vmatprep.subr.mxu0 0.0
        %2195 = vmatpush1.msra.mxu0 0.0
        %2196 = vmatprep.subr.mxu0 0.0
        %2197 = vmatpush1.msra.mxu0 0.0
        %2198 = vmatprep.subr.mxu0 0.0
        %2199 = vmatpush1.msra.mxu0 0.0
        %2200 = vmatprep.subr.mxu0 0.0
        %2201 = vmatpush1.msra.mxu0 0.0
        %2202 = vmatprep.subr.mxu0 0.0
        %2203 = vmatpush1.msra.mxu0 0.0
        %2204 = vmatprep.subr.mxu0 0.0
        %2205 = vmatpush1.msra.mxu0 0.0
        %2206 = vmatprep.subr.mxu0 0.0
        %2207 = vmatpush1.msra.mxu0 0.0
        %2208 = vmatprep.subr.mxu0 0.0
        %2209 = vmatpush1.msra.mxu0 0.0
        %2210 = vmatprep.subr.mxu0 0.0
        %2211 = vmatpush1.msra.mxu0 0.0
        %2212 = vmatprep.subr.mxu0 0.0
        %2213 = vmatpush1.msra.mxu0 0.0
        %2214 = vmatprep.subr.mxu0 0.0
        %2215 = vmatpush1.msra.mxu0 0.0
        %2216 = vmatprep.subr.mxu0 0.0
        %2217 = vmatpush1.msra.mxu0 0.0
        %2218 = vmatprep.subr.mxu0 0.0
        %2219 = vmatpush1.msra.mxu0 0.0
        %2220 = vmatprep.subr.mxu0 0.0
        %2221 = vmatpush1.msra.mxu0 0.0
        %2222 = vmatprep.subr.mxu0 0.0
        %2223 = vmatpush1.msra.mxu0 0.0
        %2224 = vmatprep.subr.mxu0 0.0
        %2225 = vmatpush1.msra.mxu0 0.0
        %2226 = vmatprep.subr.mxu0 0.0
        %2227 = vmatpush1.msra.mxu0 0.0
        %2228 = vmatprep.subr.mxu0 0.0
        %2229 = vmatpush1.msra.mxu0 0.0
        %2230 = vmatprep.subr.mxu0 0.0
        %2231 = vmatpush1.msra.mxu0 0.0
        %2232 = vmatprep.subr.mxu0 0.0
        %2233 = vmatpush1.msra.mxu0 0.0
        %2234 = vmatprep.subr.mxu0 0.0
        %2235 = vmatpush1.msra.mxu0 0.0
        %2236 = vmatprep.subr.mxu0 0.0
        %2237 = vmatpush1.msra.mxu0 0.0
        %2238 = vmatprep.subr.mxu0 0.0
        %2239 = vmatpush1.msra.mxu0 0.0
        %2240 = vmatprep.subr.mxu0 0.0
        %2241 = vmatpush1.msra.mxu0 0.0
        %2242 = vmatprep.subr.mxu0 0.0
        %2243 = vmatpush1.msra.mxu0 0.0
        %2244 = vmatprep.subr.mxu0 0.0
        %2245 = vmatpush1.msra.mxu0 0.0
        %2246 = vmatprep.mubr.f32.mxu0 0.0
        %2247 = vmatmul.mubr.f32.gmra.mrb[0].mxu0 %v2171
        %v2248 = vpop.f32.mrb[0].mxu0
        %v2249 = vadd.f32 0.0, %v2248
        %v2250 = vpop.f32.mrb[0].mxu0
        %v2251 = vadd.f32 0.0, %v2250
        %2252 = vmatprep.mubr.f32.mxu0 0.0
        %2253 = vmatmul.mubr.f32.gmra.mrb[0].mxu0 %v2174
        %v2254 = vpop.f32.mrb[0].mxu0
        %v2255 = vadd.f32 0.0, %v2254
        %v2256 = vpop.f32.mrb[0].mxu0
        %v2257 = vadd.f32 0.0, %v2256
        %2258 = vmatprep.mubr.f32.mxu0 0.0
        %2259 = vmatmul.mubr.f32.gmra.mrb[0].mxu0 %v2177
        %v2260 = vpop.f32.mrb[0].mxu0
        %v2261 = vadd.f32 0.0, %v2260
        %v2262 = vpop.f32.mrb[0].mxu0
        %v2263 = vadd.f32 0.0, %v2262
        %2264 = vmatprep.mubr.f32.mxu0 0.0
        %2265 = vmatmul.mubr.f32.gmra.mrb[0].mxu0 %v2180
        %v2266 = vpop.f32.mrb[0].mxu0
        %v2267 = vadd.f32 0.0, %v2266
        %v2268 = vpop.f32.mrb[0].mxu0
        %v2269 = vadd.f32 0.0, %v2268
        %2270 = vdwg.mxu0
        %v2272 = vsel %vm1185, %v2162, 0
        %v2275 = vsel %vm1185, %v2163, 0
        %v2278 = vsel %vm1185, %v2164, 0
        %v2281 = vsel %vm1185, %v2165, 0
        %2283 = vmatprep.subr.mxu0 %v2155
        %2284 = vmatpush1.msra.mxu0 %v2154
        %2285 = vmatprep.subr.mxu0 %v2157
        %2286 = vmatpush1.msra.mxu0 %v2156
        %2287 = vmatprep.subr.mxu0 %v2159
        %2288 = vmatpush1.msra.mxu0 %v2158
        %2289 = vmatprep.subr.mxu0 %v2161
        %2290 = vmatpush1.msra.mxu0 %v2160
        %2291 = vmatprep.subr.mxu0 0.0
        %2292 = vmatpush1.msra.mxu0 0.0
        %2293 = vmatprep.subr.mxu0 0.0
        %2294 = vmatpush1.msra.mxu0 0.0
        %2295 = vmatprep.subr.mxu0 0.0
        %2296 = vmatpush1.msra.mxu0 0.0
        %2297 = vmatprep.subr.mxu0 0.0
        %2298 = vmatpush1.msra.mxu0 0.0
        %2299 = vmatprep.subr.mxu0 0.0
        %2300 = vmatpush1.msra.mxu0 0.0
        %2301 = vmatprep.subr.mxu0 0.0
        %2302 = vmatpush1.msra.mxu0 0.0
        %2303 = vmatprep.subr.mxu0 0.0
        %2304 = vmatpush1.msra.mxu0 0.0
        %2305 = vmatprep.subr.mxu0 0.0
        %2306 = vmatpush1.msra.mxu0 0.0
        %2307 = vmatprep.subr.mxu0 0.0
        %2308 = vmatpush1.msra.mxu0 0.0
        %2309 = vmatprep.subr.mxu0 0.0
        %2310 = vmatpush1.msra.mxu0 0.0
        %2311 = vmatprep.subr.mxu0 0.0
        %2312 = vmatpush1.msra.mxu0 0.0
        %2313 = vmatprep.subr.mxu0 0.0
        %2314 = vmatpush1.msra.mxu0 0.0
        %2315 = vmatprep.subr.mxu0 0.0
        %2316 = vmatpush1.msra.mxu0 0.0
        %2317 = vmatprep.subr.mxu0 0.0
        %2318 = vmatpush1.msra.mxu0 0.0
        %2319 = vmatprep.subr.mxu0 0.0
        %2320 = vmatpush1.msra.mxu0 0.0
        %2321 = vmatprep.subr.mxu0 0.0
        %2322 = vmatpush1.msra.mxu0 0.0
        %2323 = vmatprep.subr.mxu0 0.0
        %2324 = vmatpush1.msra.mxu0 0.0
        %2325 = vmatprep.subr.mxu0 0.0
        %2326 = vmatpush1.msra.mxu0 0.0
        %2327 = vmatprep.subr.mxu0 0.0
        %2328 = vmatpush1.msra.mxu0 0.0
        %2329 = vmatprep.subr.mxu0 0.0
        %2330 = vmatpush1.msra.mxu0 0.0
        %2331 = vmatprep.subr.mxu0 0.0
        %2332 = vmatpush1.msra.mxu0 0.0
        %2333 = vmatprep.subr.mxu0 0.0
        %2334 = vmatpush1.msra.mxu0 0.0
        %2335 = vmatprep.subr.mxu0 0.0
        %2336 = vmatpush1.msra.mxu0 0.0
        %2337 = vmatprep.subr.mxu0 0.0
        %2338 = vmatpush1.msra.mxu0 0.0
        %2339 = vmatprep.subr.mxu0 0.0
        %2340 = vmatpush1.msra.mxu0 0.0
        %2341 = vmatprep.subr.mxu0 0.0
        %2342 = vmatpush1.msra.mxu0 0.0
        %2343 = vmatprep.subr.mxu0 0.0
        %2344 = vmatpush1.msra.mxu0 0.0
        %2345 = vmatprep.subr.mxu0 0.0
        %2346 = vmatpush1.msra.mxu0 0.0
        %2347 = vmatprep.mubr.f32.mxu0 0.0
        %2348 = vmatmul.mubr.f32.gmra.mrb[0].mxu0 %v2272
        %v2349 = vpop.f32.mrb[0].mxu0
        %v2350 = vadd.f32 %v2249, %v2349
        %v2351 = vpop.f32.mrb[0].mxu0
        %v2352 = vadd.f32 %v2251, %v2351
        %2353 = vmatprep.mubr.f32.mxu0 0.0
        %2354 = vmatmul.mubr.f32.gmra.mrb[0].mxu0 %v2275
        %v2355 = vpop.f32.mrb[0].mxu0
        %v2356 = vadd.f32 %v2255, %v2355
        %v2357 = vpop.f32.mrb[0].mxu0
        %v2358 = vadd.f32 %v2257, %v2357
        %2359 = vmatprep.mubr.f32.mxu0 0.0
        %2360 = vmatmul.mubr.f32.gmra.mrb[0].mxu0 %v2278
        %v2361 = vpop.f32.mrb[0].mxu0
        %v2362 = vadd.f32 %v2261, %v2361
        %v2363 = vpop.f32.mrb[0].mxu0
        %v2364 = vadd.f32 %v2263, %v2363
        %2365 = vmatprep.mubr.f32.mxu0 0.0
        %2366 = vmatmul.mubr.f32.gmra.mrb[0].mxu0 %v2281
        %v2367 = vpop.f32.mrb[0].mxu0
        %v2368 = vadd.f32 %v2267, %v2367
        %v2369 = vpop.f32.mrb[0].mxu0
        %v2370 = vadd.f32 %v2269, %v2369
        %2371 = vdwg.mxu0
        %v2372 = vld [vmem:[%s3 + $0xc8] sm:$0xff]
        %v2373 = vld [vmem:[%s3 + $0xd0] sm:$0xff]
        %v2374 = vld [vmem:[%s3 + $0xd8] sm:$0xff]
        %v2375 = vld [vmem:[%s3 + $0xe0] sm:$0xff]
        %2377 = vset.pattern.permute.xlu0 0
        %2378 = vperm.xlu0 %2377, %v2372
        %v2379 = vpop.permute.xlu0 %2378
        %2382 = vset.pattern.permute.xlu0 0
        %2383 = vperm.xlu0 %2382, %v2373
        %v2384 = vpop.permute.xlu0 %2383
        %2387 = vset.pattern.permute.xlu0 0
        %2388 = vperm.xlu0 %2387, %v2374
        %v2389 = vpop.permute.xlu0 %2388
        %2392 = vset.pattern.permute.xlu0 0
        %2393 = vperm.xlu0 %2392, %v2375
        %v2394 = vpop.permute.xlu0 %2393
        %v2396 = vadd.f32 %v2350, %v2379
        %v2397 = vadd.f32 %v2352, %v2379
        %v2398 = vadd.f32 %v2356, %v2384
        %v2399 = vadd.f32 %v2358, %v2384
        %v2400 = vadd.f32 %v2362, %v2389
        %v2401 = vadd.f32 %v2364, %v2389
        %v2402 = vadd.f32 %v2368, %v2394
        %v2403 = vadd.f32 %v2370, %v2394
        %v2404 = vmax.f32 %v2396, 0.0
        %v2405 = vmax.f32 %v2397, 0.0
        %v2406 = vmax.f32 %v2398, 0.0
        %v2407 = vmax.f32 %v2399, 0.0
        %v2408 = vmax.f32 %v2400, 0.0
        %v2409 = vmax.f32 %v2401, 0.0
        %v2410 = vmax.f32 %v2402, 0.0
        %v2411 = vmax.f32 %v2403, 0.0
        %v2412 = vld [vmem:[%s2 + $0x108] sm:$0xff]
        %v2413 = vld [vmem:[%s2 + $0x110] sm:$0xff]
        %v2414 = vld [vmem:[%s2 + $0x118] sm:$0x1]
        %v2415 = vld [vmem:[%s3 + $0x108] sm:$0xff]
        %v2416 = vld [vmem:[%s3 + $0x110] sm:$0xff]
        %v2417 = vld [vmem:[%s3 + $0x118] sm:$0x1]
        %2419 = vset.pattern.permute.xlu0 0
        %2420 = vperm.xlu0 %2419, %v2415
        %v2421 = vpop.permute.xlu0 %2420
        %2424 = vset.pattern.permute.xlu0 0
        %2425 = vperm.xlu0 %2424, %v2416
        %v2426 = vpop.permute.xlu0 %2425
        %2429 = vset.pattern.permute.xlu0 0
        %2430 = vperm.xlu0 %2429, %v2417
        %v2431 = vpop.permute.xlu0 %2430
        %v2434 = vsel %vm1185, %v2412, 0
        %v2437 = vsel %vm1185, %v2413, 0
        %v2440 = vsel %vm1185, %v2414, 0
        %2442 = vmatprep.subr.mxu0 %v2405
        %2443 = vmatpush1.msra.mxu0 %v2404
        %2444 = vmatprep.subr.mxu0 %v2407
        %2445 = vmatpush1.msra.mxu0 %v2406
        %2446 = vmatprep.subr.mxu0 %v2409
        %2447 = vmatpush1.msra.mxu0 %v2408
        %2448 = vmatprep.subr.mxu0 %v2411
        %2449 = vmatpush1.msra.mxu0 %v2410
        %2450 = vmatprep.subr.mxu0 0.0
        %2451 = vmatpush1.msra.mxu0 0.0
        %2452 = vmatprep.subr.mxu0 0.0
        %2453 = vmatpush1.msra.mxu0 0.0
        %2454 = vmatprep.subr.mxu0 0.0
        %2455 = vmatpush1.msra.mxu0 0.0
        %2456 = vmatprep.subr.mxu0 0.0
        %2457 = vmatpush1.msra.mxu0 0.0
        %2458 = vmatprep.subr.mxu0 0.0
        %2459 = vmatpush1.msra.mxu0 0.0
        %2460 = vmatprep.subr.mxu0 0.0
        %2461 = vmatpush1.msra.mxu0 0.0
        %2462 = vmatprep.subr.mxu0 0.0
        %2463 = vmatpush1.msra.mxu0 0.0
        %2464 = vmatprep.subr.mxu0 0.0
        %2465 = vmatpush1.msra.mxu0 0.0
        %2466 = vmatprep.subr.mxu0 0.0
        %2467 = vmatpush1.msra.mxu0 0.0
        %2468 = vmatprep.subr.mxu0 0.0
        %2469 = vmatpush1.msra.mxu0 0.0
        %2470 = vmatprep.subr.mxu0 0.0
        %2471 = vmatpush1.msra.mxu0 0.0
        %2472 = vmatprep.subr.mxu0 0.0
        %2473 = vmatpush1.msra.mxu0 0.0
        %2474 = vmatprep.subr.mxu0 0.0
        %2475 = vmatpush1.msra.mxu0 0.0
        %2476 = vmatprep.subr.mxu0 0.0
        %2477 = vmatpush1.msra.mxu0 0.0
        %2478 = vmatprep.subr.mxu0 0.0
        %2479 = vmatpush1.msra.mxu0 0.0
        %2480 = vmatprep.subr.mxu0 0.0
        %2481 = vmatpush1.msra.mxu0 0.0
        %2482 = vmatprep.subr.mxu0 0.0
        %2483 = vmatpush1.msra.mxu0 0.0
        %2484 = vmatprep.subr.mxu0 0.0
        %2485 = vmatpush1.msra.mxu0 0.0
        %2486 = vmatprep.subr.mxu0 0.0
        %2487 = vmatpush1.msra.mxu0 0.0
        %2488 = vmatprep.subr.mxu0 0.0
        %2489 = vmatpush1.msra.mxu0 0.0
        %2490 = vmatprep.subr.mxu0 0.0
        %2491 = vmatpush1.msra.mxu0 0.0
        %2492 = vmatprep.subr.mxu0 0.0
        %2493 = vmatpush1.msra.mxu0 0.0
        %2494 = vmatprep.subr.mxu0 0.0
        %2495 = vmatpush1.msra.mxu0 0.0
        %2496 = vmatprep.subr.mxu0 0.0
        %2497 = vmatpush1.msra.mxu0 0.0
        %2498 = vmatprep.subr.mxu0 0.0
        %2499 = vmatpush1.msra.mxu0 0.0
        %2500 = vmatprep.subr.mxu0 0.0
        %2501 = vmatpush1.msra.mxu0 0.0
        %2502 = vmatprep.subr.mxu0 0.0
        %2503 = vmatpush1.msra.mxu0 0.0
        %2504 = vmatprep.subr.mxu0 0.0
        %2505 = vmatpush1.msra.mxu0 0.0
        %2506 = vmatprep.mubr.f32.mxu0 0.0
        %2507 = vmatmul.mubr.f32.gmra.mrb[0].mxu0 %v2434
        %v2508 = vpop.f32.mrb[0].mxu0
        %v2509 = vadd.f32 %v2421, %v2508
        %v2510 = vpop.f32.mrb[0].mxu0
        %v2511 = vadd.f32 %v2421, %v2510
        %2512 = vmatprep.mubr.f32.mxu0 0.0
        %2513 = vmatmul.mubr.f32.gmra.mrb[0].mxu0 %v2437
        %v2514 = vpop.f32.mrb[0].mxu0
        %v2515 = vadd.f32 %v2426, %v2514
        %v2516 = vpop.f32.mrb[0].mxu0
        %v2517 = vadd.f32 %v2426, %v2516
        %2518 = vmatprep.mubr.f32.mxu0 0.0
        %2519 = vmatmul.mubr.f32.gmra.mrb[0].mxu0 %v2440
        %v2520 = vpop.f32.mrb[0].mxu0
        %v2521 = vadd.f32 %v2431, %v2520
        %v2522 = vpop.f32.mrb[0].mxu0
        %v2523 = vadd.f32 %v2431, %v2522
        %2524 = vdwg.mxu0
        %v2525 = vrot.slane %v271, 7
        %v2526 = vrot.slane %v272, 7
        %v2529 = vadd.f32 %v2521, %v2525
        %v2530 = vadd.f32 %v2523, %v2526
        %v2531 = vmax.f32 %v2529, 0.0
        %v2532 = vmax.f32 %v2530, 0.0
        %v2533 = vrot.slane %v271, 3
        %v2534 = vrot.slane %v272, 3
        %v2537 = vrot.slane %v585, 5
        %v2538 = vrot.slane %v688, 5
        %v2541 = vrot.slane %v691, 2
        %v2542 = vrot.slane %v692, 2
        %v2545 = vrot.slane %v695, 7
        %v2546 = vrot.slane %v696, 7
        %v2549 = vsel %vm755, %v2533, %v378
        %v2550 = vsel %vm755, %v2534, %v482
        %v2551 = vsel %vm758, %v2549, %v2537
        %v2552 = vsel %vm758, %v2550, %v2538
        %v2553 = vsel %vm761, %v2537, %v2541
        %v2554 = vsel %vm761, %v2538, %v2542
        %v2555 = vsel %vm764, %v2553, %v2545
        %v2556 = vsel %vm764, %v2554, %v2546
        %v2557 = vld [vmem:[%s2 + $0x120] sm:$0xff]
        %v2558 = vld [vmem:[%s2 + $0x128] sm:$0xff]
        %v2559 = vld [vmem:[%s2 + $0x130] sm:$0xff]
        %v2560 = vld [vmem:[%s2 + $0x138] sm:$0xff]
        %v2561 = vld [vmem:[%s2 + $0x140] sm:$0xff]
        %v2562 = vld [vmem:[%s2 + $0x148] sm:$0xff]
        %v2563 = vld [vmem:[%s2 + $0x150] sm:$0xff]
        %v2564 = vld [vmem:[%s2 + $0x158] sm:$0xff]
        %vm2565 = vcmask 130048
        %v2567 = vsel %vm2565, %v2561, 0
        %v2570 = vsel %vm2565, %v2562, 0
        %v2573 = vsel %vm2565, %v2563, 0
        %v2576 = vsel %vm2565, %v2564, 0
        %2578 = vmatprep.subr.mxu0 %v2511
        %2579 = vmatpush1.msra.mxu0 %v2509
        %2580 = vmatprep.subr.mxu0 %v2517
        %2581 = vmatpush1.msra.mxu0 %v2515
        %2582 = vmatprep.subr.mxu0 0.0
        %2583 = vmatpush1.msra.mxu0 0.0
        %2584 = vmatprep.subr.mxu0 0.0
        %2585 = vmatpush1.msra.mxu0 0.0
        %2586 = vmatprep.subr.mxu0 0.0
        %2587 = vmatpush1.msra.mxu0 0.0
        %2588 = vmatprep.subr.mxu0 0.0
        %2589 = vmatpush1.msra.mxu0 0.0
        %2590 = vmatprep.subr.mxu0 0.0
        %2591 = vmatpush1.msra.mxu0 0.0
        %2592 = vmatprep.subr.mxu0 0.0
        %2593 = vmatpush1.msra.mxu0 0.0
        %2594 = vmatprep.subr.mxu0 0.0
        %2595 = vmatpush1.msra.mxu0 0.0
        %2596 = vmatprep.subr.mxu0 0.0
        %2597 = vmatpush1.msra.mxu0 0.0
        %2598 = vmatprep.subr.mxu0 0.0
        %2599 = vmatpush1.msra.mxu0 0.0
        %2600 = vmatprep.subr.mxu0 0.0
        %2601 = vmatpush1.msra.mxu0 0.0
        %2602 = vmatprep.subr.mxu0 0.0
        %2603 = vmatpush1.msra.mxu0 0.0
        %2604 = vmatprep.subr.mxu0 0.0
        %2605 = vmatpush1.msra.mxu0 0.0
        %2606 = vmatprep.subr.mxu0 0.0
        %2607 = vmatpush1.msra.mxu0 0.0
        %2608 = vmatprep.subr.mxu0 0.0
        %2609 = vmatpush1.msra.mxu0 0.0
        %2610 = vmatprep.subr.mxu0 0.0
        %2611 = vmatpush1.msra.mxu0 0.0
        %2612 = vmatprep.subr.mxu0 0.0
        %2613 = vmatpush1.msra.mxu0 0.0
        %2614 = vmatprep.subr.mxu0 0.0
        %2615 = vmatpush1.msra.mxu0 0.0
        %2616 = vmatprep.subr.mxu0 0.0
        %2617 = vmatpush1.msra.mxu0 0.0
        %2618 = vmatprep.subr.mxu0 0.0
        %2619 = vmatpush1.msra.mxu0 0.0
        %2620 = vmatprep.subr.mxu0 0.0
        %2621 = vmatpush1.msra.mxu0 0.0
        %2622 = vmatprep.subr.mxu0 0.0
        %2623 = vmatpush1.msra.mxu0 0.0
        %2624 = vmatprep.subr.mxu0 0.0
        %2625 = vmatpush1.msra.mxu0 0.0
        %2626 = vmatprep.subr.mxu0 0.0
        %2627 = vmatpush1.msra.mxu0 0.0
        %2628 = vmatprep.subr.mxu0 0.0
        %2629 = vmatpush1.msra.mxu0 0.0
        %2630 = vmatprep.subr.mxu0 0.0
        %2631 = vmatpush1.msra.mxu0 0.0
        %2632 = vmatprep.subr.mxu0 0.0
        %2633 = vmatpush1.msra.mxu0 0.0
        %2634 = vmatprep.subr.mxu0 0.0
        %2635 = vmatpush1.msra.mxu0 0.0
        %2636 = vmatprep.subr.mxu0 0.0
        %2637 = vmatpush1.msra.mxu0 0.0
        %2638 = vmatprep.subr.mxu0 0.0
        %2639 = vmatpush1.msra.mxu0 0.0
        %2640 = vmatprep.subr.mxu0 0.0
        %2641 = vmatpush1.msra.mxu0 0.0
        %2642 = vmatprep.mubr.f32.mxu0 0.0
        %2643 = vmatmul.mubr.f32.gmra.mrb[0].mxu0 %v2567
        %v2644 = vpop.f32.mrb[0].mxu0
        %v2645 = vadd.f32 0.0, %v2644
        %v2646 = vpop.f32.mrb[0].mxu0
        %v2647 = vadd.f32 0.0, %v2646
        %2648 = vmatprep.mubr.f32.mxu0 0.0
        %2649 = vmatmul.mubr.f32.gmra.mrb[0].mxu0 %v2570
        %v2650 = vpop.f32.mrb[0].mxu0
        %v2651 = vadd.f32 0.0, %v2650
        %v2652 = vpop.f32.mrb[0].mxu0
        %v2653 = vadd.f32 0.0, %v2652
        %2654 = vmatprep.mubr.f32.mxu0 0.0
        %2655 = vmatmul.mubr.f32.gmra.mrb[0].mxu0 %v2573
        %v2656 = vpop.f32.mrb[0].mxu0
        %v2657 = vadd.f32 0.0, %v2656
        %v2658 = vpop.f32.mrb[0].mxu0
        %v2659 = vadd.f32 0.0, %v2658
        %2660 = vmatprep.mubr.f32.mxu0 0.0
        %2661 = vmatmul.mubr.f32.gmra.mrb[0].mxu0 %v2576
        %v2662 = vpop.f32.mrb[0].mxu0
        %v2663 = vadd.f32 0.0, %v2662
        %v2664 = vpop.f32.mrb[0].mxu0
        %v2665 = vadd.f32 0.0, %v2664
        %2666 = vdwg.mxu0
        %vm2667 = vcmask 121856
        %v2669 = vsel %vm2667, %v2557, 0
        %v2672 = vsel %vm2667, %v2558, 0
        %v2675 = vsel %vm2667, %v2559, 0
        %v2678 = vsel %vm2667, %v2560, 0
        %v2681 = vsel %vm767, %v2555, 0
        %v2684 = vsel %vm767, %v2556, 0
        %2686 = vmatprep.subr.mxu0 %v2552
        %2687 = vmatpush1.msra.mxu0 %v2551
        %2688 = vmatprep.subr.mxu0 %v2684
        %2689 = vmatpush1.msra.mxu0 %v2681
        %2690 = vmatprep.subr.mxu0 0.0
        %2691 = vmatpush1.msra.mxu0 0.0
        %2692 = vmatprep.subr.mxu0 0.0
        %2693 = vmatpush1.msra.mxu0 0.0
        %2694 = vmatprep.subr.mxu0 0.0
        %2695 = vmatpush1.msra.mxu0 0.0
        %2696 = vmatprep.subr.mxu0 0.0
        %2697 = vmatpush1.msra.mxu0 0.0
        %2698 = vmatprep.subr.mxu0 0.0
        %2699 = vmatpush1.msra.mxu0 0.0
        %2700 = vmatprep.subr.mxu0 0.0
        %2701 = vmatpush1.msra.mxu0 0.0
        %2702 = vmatprep.subr.mxu0 0.0
        %2703 = vmatpush1.msra.mxu0 0.0
        %2704 = vmatprep.subr.mxu0 0.0
        %2705 = vmatpush1.msra.mxu0 0.0
        %2706 = vmatprep.subr.mxu0 0.0
        %2707 = vmatpush1.msra.mxu0 0.0
        %2708 = vmatprep.subr.mxu0 0.0
        %2709 = vmatpush1.msra.mxu0 0.0
        %2710 = vmatprep.subr.mxu0 0.0
        %2711 = vmatpush1.msra.mxu0 0.0
        %2712 = vmatprep.subr.mxu0 0.0
        %2713 = vmatpush1.msra.mxu0 0.0
        %2714 = vmatprep.subr.mxu0 0.0
        %2715 = vmatpush1.msra.mxu0 0.0
        %2716 = vmatprep.subr.mxu0 0.0
        %2717 = vmatpush1.msra.mxu0 0.0
        %2718 = vmatprep.subr.mxu0 0.0
        %2719 = vmatpush1.msra.mxu0 0.0
        %2720 = vmatprep.subr.mxu0 0.0
        %2721 = vmatpush1.msra.mxu0 0.0
        %2722 = vmatprep.subr.mxu0 0.0
        %2723 = vmatpush1.msra.mxu0 0.0
        %2724 = vmatprep.subr.mxu0 0.0
        %2725 = vmatpush1.msra.mxu0 0.0
        %2726 = vmatprep.subr.mxu0 0.0
        %2727 = vmatpush1.msra.mxu0 0.0
        %2728 = vmatprep.subr.mxu0 0.0
        %2729 = vmatpush1.msra.mxu0 0.0
        %2730 = vmatprep.subr.mxu0 0.0
        %2731 = vmatpush1.msra.mxu0 0.0
        %2732 = vmatprep.subr.mxu0 0.0
        %2733 = vmatpush1.msra.mxu0 0.0
        %2734 = vmatprep.subr.mxu0 0.0
        %2735 = vmatpush1.msra.mxu0 0.0
        %2736 = vmatprep.subr.mxu0 0.0
        %2737 = vmatpush1.msra.mxu0 0.0
        %2738 = vmatprep.subr.mxu0 0.0
        %2739 = vmatpush1.msra.mxu0 0.0
        %2740 = vmatprep.subr.mxu0 0.0
        %2741 = vmatpush1.msra.mxu0 0.0
        %2742 = vmatprep.subr.mxu0 0.0
        %2743 = vmatpush1.msra.mxu0 0.0
        %2744 = vmatprep.subr.mxu0 0.0
        %2745 = vmatpush1.msra.mxu0 0.0
        %2746 = vmatprep.subr.mxu0 0.0
        %2747 = vmatpush1.msra.mxu0 0.0
        %2748 = vmatprep.subr.mxu0 0.0
        %2749 = vmatpush1.msra.mxu0 0.0
        %2750 = vmatprep.mubr.f32.mxu0 0.0
        %2751 = vmatmul.mubr.f32.gmra.mrb[0].mxu0 %v2669
        %v2752 = vpop.f32.mrb[0].mxu0
        %v2753 = vadd.f32 %v2645, %v2752
        %v2754 = vpop.f32.mrb[0].mxu0
        %v2755 = vadd.f32 %v2647, %v2754
        %2756 = vmatprep.mubr.f32.mxu0 0.0
        %2757 = vmatmul.mubr.f32.gmra.mrb[0].mxu0 %v2672
        %v2758 = vpop.f32.mrb[0].mxu0
        %v2759 = vadd.f32 %v2651, %v2758
        %v2760 = vpop.f32.mrb[0].mxu0
        %v2761 = vadd.f32 %v2653, %v2760
        %2762 = vmatprep.mubr.f32.mxu0 0.0
        %2763 = vmatmul.mubr.f32.gmra.mrb[0].mxu0 %v2675
        %v2764 = vpop.f32.mrb[0].mxu0
        %v2765 = vadd.f32 %v2657, %v2764
        %v2766 = vpop.f32.mrb[0].mxu0
        %v2767 = vadd.f32 %v2659, %v2766
        %2768 = vmatprep.mubr.f32.mxu0 0.0
        %2769 = vmatmul.mubr.f32.gmra.mrb[0].mxu0 %v2678
        %v2770 = vpop.f32.mrb[0].mxu0
        %v2771 = vadd.f32 %v2663, %v2770
        %v2772 = vpop.f32.mrb[0].mxu0
        %v2773 = vadd.f32 %v2665, %v2772
        %2774 = vdwg.mxu0
        %v2775 = vld [vmem:[%s3 + $0x120] sm:$0xff]
        %v2776 = vld [vmem:[%s3 + $0x128] sm:$0xff]
        %v2777 = vld [vmem:[%s3 + $0x130] sm:$0xff]
        %v2778 = vld [vmem:[%s3 + $0x138] sm:$0xff]
        %2780 = vset.pattern.permute.xlu0 0
        %2781 = vperm.xlu0 %2780, %v2775
        %v2782 = vpop.permute.xlu0 %2781
        %2785 = vset.pattern.permute.xlu0 0
        %2786 = vperm.xlu0 %2785, %v2776
        %v2787 = vpop.permute.xlu0 %2786
        %2790 = vset.pattern.permute.xlu0 0
        %2791 = vperm.xlu0 %2790, %v2777
        %v2792 = vpop.permute.xlu0 %2791
        %2795 = vset.pattern.permute.xlu0 0
        %2796 = vperm.xlu0 %2795, %v2778
        %v2797 = vpop.permute.xlu0 %2796
        %v2799 = vadd.f32 %v2753, %v2782
        %v2800 = vadd.f32 %v2755, %v2782
        %v2801 = vadd.f32 %v2759, %v2787
        %v2802 = vadd.f32 %v2761, %v2787
        %v2803 = vadd.f32 %v2765, %v2792
        %v2804 = vadd.f32 %v2767, %v2792
        %v2805 = vadd.f32 %v2771, %v2797
        %v2806 = vadd.f32 %v2773, %v2797
        %v2807 = vmax.f32 %v2799, 0.0
        %v2808 = vmax.f32 %v2800, 0.0
        %v2809 = vmax.f32 %v2801, 0.0
        %v2810 = vmax.f32 %v2802, 0.0
        %v2811 = vmax.f32 %v2803, 0.0
        %v2812 = vmax.f32 %v2804, 0.0
        %v2813 = vmax.f32 %v2805, 0.0
        %v2814 = vmax.f32 %v2806, 0.0
        %v2815 = vld [vmem:[%s2 + $0x160] sm:$0x7]
        %v2816 = vld [vmem:[%s3 + $0x160] sm:$0x7]
        %2818 = vset.pattern.permute.xlu0 0
        %2819 = vperm.xlu0 %2818, %v2816
        %v2820 = vpop.permute.xlu0 %2819
        %v2823 = vsel %vm1185, %v2815, 0
        %2825 = vmatprep.subr.mxu0 %v2808
        %2826 = vmatpush1.msra.mxu0 %v2807
        %2827 = vmatprep.subr.mxu0 %v2810
        %2828 = vmatpush1.msra.mxu0 %v2809
        %2829 = vmatprep.subr.mxu0 %v2812
        %2830 = vmatpush1.msra.mxu0 %v2811
        %2831 = vmatprep.subr.mxu0 %v2814
        %2832 = vmatpush1.msra.mxu0 %v2813
        %2833 = vmatprep.subr.mxu0 0.0
        %2834 = vmatpush1.msra.mxu0 0.0
        %2835 = vmatprep.subr.mxu0 0.0
        %2836 = vmatpush1.msra.mxu0 0.0
        %2837 = vmatprep.subr.mxu0 0.0
        %2838 = vmatpush1.msra.mxu0 0.0
        %2839 = vmatprep.subr.mxu0 0.0
        %2840 = vmatpush1.msra.mxu0 0.0
        %2841 = vmatprep.subr.mxu0 0.0
        %2842 = vmatpush1.msra.mxu0 0.0
        %2843 = vmatprep.subr.mxu0 0.0
        %2844 = vmatpush1.msra.mxu0 0.0
        %2845 = vmatprep.subr.mxu0 0.0
        %2846 = vmatpush1.msra.mxu0 0.0
        %2847 = vmatprep.subr.mxu0 0.0
        %2848 = vmatpush1.msra.mxu0 0.0
        %2849 = vmatprep.subr.mxu0 0.0
        %2850 = vmatpush1.msra.mxu0 0.0
        %2851 = vmatprep.subr.mxu0 0.0
        %2852 = vmatpush1.msra.mxu0 0.0
        %2853 = vmatprep.subr.mxu0 0.0
        %2854 = vmatpush1.msra.mxu0 0.0
        %2855 = vmatprep.subr.mxu0 0.0
        %2856 = vmatpush1.msra.mxu0 0.0
        %2857 = vmatprep.subr.mxu0 0.0
        %2858 = vmatpush1.msra.mxu0 0.0
        %2859 = vmatprep.subr.mxu0 0.0
        %2860 = vmatpush1.msra.mxu0 0.0
        %2861 = vmatprep.subr.mxu0 0.0
        %2862 = vmatpush1.msra.mxu0 0.0
        %2863 = vmatprep.subr.mxu0 0.0
        %2864 = vmatpush1.msra.mxu0 0.0
        %2865 = vmatprep.subr.mxu0 0.0
        %2866 = vmatpush1.msra.mxu0 0.0
        %2867 = vmatprep.subr.mxu0 0.0
        %2868 = vmatpush1.msra.mxu0 0.0
        %2869 = vmatprep.subr.mxu0 0.0
        %2870 = vmatpush1.msra.mxu0 0.0
        %2871 = vmatprep.subr.mxu0 0.0
        %2872 = vmatpush1.msra.mxu0 0.0
        %2873 = vmatprep.subr.mxu0 0.0
        %2874 = vmatpush1.msra.mxu0 0.0
        %2875 = vmatprep.subr.mxu0 0.0
        %2876 = vmatpush1.msra.mxu0 0.0
        %2877 = vmatprep.subr.mxu0 0.0
        %2878 = vmatpush1.msra.mxu0 0.0
        %2879 = vmatprep.subr.mxu0 0.0
        %2880 = vmatpush1.msra.mxu0 0.0
        %2881 = vmatprep.subr.mxu0 0.0
        %2882 = vmatpush1.msra.mxu0 0.0
        %2883 = vmatprep.subr.mxu0 0.0
        %2884 = vmatpush1.msra.mxu0 0.0
        %2885 = vmatprep.subr.mxu0 0.0
        %2886 = vmatpush1.msra.mxu0 0.0
        %2887 = vmatprep.subr.mxu0 0.0
        %2888 = vmatpush1.msra.mxu0 0.0
        %2889 = vmatprep.mubr.f32.mxu0 0.0
        %2890 = vmatmul.mubr.f32.gmra.mrb[0].mxu0 %v2823
        %v2891 = vpop.f32.mrb[0].mxu0
        %v2892 = vadd.f32 %v2820, %v2891
        %v2893 = vpop.f32.mrb[0].mxu0
        %v2894 = vadd.f32 %v2820, %v2893
        %2895 = vdwg.mxu0
        %v2896 = vxor.u32 %v2892, 2147483648
        %v2897 = vxor.u32 %v2894, 2147483648
        %v2898 = vmul.f32 %v2896, 1.442695
        %v2899 = vpow.pop %v2898
        %v2900 = vmul.f32 %v2897, 1.442695
        %v2901 = vpow.pop %v2900
        %v2902 = vadd.f32 %v2899, 1.0
        %v2903 = vadd.f32 %v2901, 1.0
        %v2904 = vrcp.pop %v2902
        %v2905 = vmul.f32 1.0, %v2904
        %v2906 = vrcp.pop %v2903
        %v2907 = vmul.f32 1.0, %v2906
        %v2908 = vsub.f32 0.0, %v2531
        %v2909 = vsub.f32 0.0, %v2532
        %v2912 = vrot.slane %v273, 1
        %v2913 = vrot.slane %v274, 1
        %v2916 = vmul.f32 %v2908, %v2912
        %v2917 = vmul.f32 %v2909, %v2913
        %v2918 = vmul.f32 %v2916, 1.442695
        %v2919 = vpow.pop %v2918
        %v2920 = vmul.f32 %v2917, 1.442695
        %v2921 = vpow.pop %v2920
        %v2922 = vsub.f32 1.0, %v2919
        %v2923 = vsub.f32 1.0, %v2921
        %v2924 = vld [vmem:[#allocation2] sm:$0x3]
        %v2926 = vlaneseq
        %v2927 = vshrl.u32 %v2926, 7
        %v2928 = vsub.s32 0, %v2927
        %v2929 = vrot.slane %v2924, %v2928
        %v2930 = vlaneseq
        %v2931 = vshrl.u32 %v2930, 7
        %v2932 = vsub.s32 1, %v2931
        %v2933 = vrot.slane %v2924, %v2932
        %v2936 = vmul.f32 %v2922, %v2929
        %v2937 = vmul.f32 %v2923, %v2933
        %v2938 = vsub.f32 1.0, %v2922
        %v2939 = vsub.f32 1.0, %v2923
        %v2940 = vadd.f32 %v2938, 1e-10
        %v2941 = vadd.f32 %v2939, 1e-10
        %v2944 = vcombine.low %v2940, %v2941
        %v2946 = vunpack.c.l.s4 1966171168
        %v2947 = vunpack.c.0.s8 %v2946
        %v2948 = vlaneseq
        %v2949 = vshrl.u32 %v2948, 7
        %v2950 = vsub.s32 %v2947, %v2949
        %v2951 = vrot.slane %v2944, %v2950
        %v2953 = vunpack.c.l.s4 1966171168
        %v2954 = vunpack.c.0.s8 %v2953
        %v2955 = vlaneseq
        %v2956 = vshrl.u32 %v2955, 7
        %v2957 = vsub.s32 %v2954, %v2956
        %v2958 = vrot.slane %v2951, %v2957
        %v2960 = vmul.f32 %v2924, %v2958
        %v2961 = vlaneseq
        %vm2962 = vcmp.ge.s32.totalorder %v2961, 0
        %vm2963 = vcmp.lt.s32.totalorder %v2961, 256
        %vm2964 = vmand %vm2962, %vm2963
        %2965 = vst.msk [vmem:[#allocation2] sm:$0x3] %vm2964, %v2960
        %v2966 = vld [vmem:[#allocation3] sm:$0x77]
        %v2967 = vlaneseq
        %v2968 = vshrl.u32 %v2967, 7
        %v2969 = vsub.s32 0, %v2968
        %v2970 = vrot.slane %v2936, %v2969
        %v2971 = vlaneseq
        %v2972 = vshrl.u32 %v2971, 7
        %v2973 = vsub.s32 0, %v2972
        %v2974 = vrot.slane %v2937, %v2973
        %v2975 = vmul.f32 %v2970, %v2905
        %v2976 = vmul.f32 %v2974, %v2907
        %v2979 = vcombine.low %v2975, %v2976
        %v2981 = vadd.f32 %v2966, %v2979
        %2982 = vst [vmem:[#allocation3] sm:$0x77] %v2981
        %v2983 = vld [vmem:[#allocation4] sm:$0x3]
        %v2984 = vmul.f32 %v2936, %v273
        %v2985 = vmul.f32 %v2937, %v274
        %v2988 = vcombine.low %v2984, %v2985
        %v2990 = vunpack.c.l.s4 1966171168
        %v2991 = vunpack.c.0.s8 %v2990
        %v2992 = vlaneseq
        %v2993 = vshrl.u32 %v2992, 7
        %v2994 = vsub.s32 %v2991, %v2993
        %v2995 = vrot.slane %v2988, %v2994
        %v2997 = vunpack.c.l.s4 1966171168
        %v2998 = vunpack.c.0.s8 %v2997
        %v2999 = vlaneseq
        %v3000 = vshrl.u32 %v2999, 7
        %v3001 = vsub.s32 %v2998, %v3000
        %v3002 = vrot.slane %v2995, %v3001
        %v3004 = vadd.f32 %v2983, %v3002
        %3005 = vst.msk [vmem:[#allocation4] sm:$0x3] %vm2964, %v3004
        %v3006 = vld [vmem:[#allocation5] sm:$0x3]
        %v3009 = vcombine.low %v2936, %v2937
        %v3011 = vunpack.c.l.s4 1966171168
        %v3012 = vunpack.c.0.s8 %v3011
        %v3013 = vlaneseq
        %v3014 = vshrl.u32 %v3013, 7
        %v3015 = vsub.s32 %v3012, %v3014
        %v3016 = vrot.slane %v3009, %v3015
        %v3018 = vunpack.c.l.s4 1966171168
        %v3019 = vunpack.c.0.s8 %v3018
        %v3020 = vlaneseq
        %v3021 = vshrl.u32 %v3020, 7
        %v3022 = vsub.s32 %v3019, %v3021
        %v3023 = vrot.slane %v3016, %v3022
        %v3025 = vadd.f32 %v3006, %v3023
        %3026 = vst.msk [vmem:[#allocation5] sm:$0x3] %vm2964, %v3025
        %p3027 = scmp.eq.s32.totalorder %s23, 7
        // Predicated region
        $region64: #{tpu_custom_call.1} parent=54 // pred_check
          %p3028 = pneg %p3027
        $region65: #{tpu_custom_call.1} parent=54 // pred_check_branch
          %3030 = sbr.rel (%p3028) target = $region67
        $region66: #{tpu_custom_call.1} parent=54 // pred_region
          %v3031 = vld [vmem:[#allocation4] sm:$0x3]
          %v3032 = vld [vmem:[%s256] sm:$0x3]
          %v3033 = vmul.f32 %v3031, %v3032
          %v3034 = vld [vmem:[#allocation5] sm:$0x3]
          %v3035 = vadd.f32 %v3034, 1e-06
          %v3036 = vrcp.pop %v3035
          %v3037 = vmul.f32 %v3033, %v3036
          %v3038 = vmax.f32 %v3037, 1e-10
          %v3039 = vrcp.pop %v3038
          %v3040 = vmul.f32 1.0, %v3039
          %v3041 = vadd.f32 %v3040, 1e-06
          %v3042 = vrcp.pop %v3041
          %v3043 = vmul.f32 1.0, %v3042
          %v3044 = vld [vmem:[#allocation3] sm:$0x77]
          %v3046 = vcombine.high %v3044, %v3044
          %v3049 = vlaneseq
          %v3050 = vshrl.u32 %v3049, 7
          %v3051 = vsub.s32 0, %v3050
          %v3052 = vrot.slane %v3043, %v3051
          %v3053 = vlaneseq
          %v3054 = vshrl.u32 %v3053, 7
          %v3055 = vsub.s32 1, %v3054
          %v3056 = vrot.slane %v3043, %v3055
          %v3059 = vsel %vm755, %v3044, %v3052
          %v3060 = vsel %vm755, %v3046, %v3056
          %v3063 = vcombine.low %v3059, %v3060
          %3065 = vst [vmem:[%s251] sm:$0xff] %v3063
        $region67: #{tpu_custom_call.1} parent=54 // pred_fallthru
          _
        %s3066 = sand.u32 %s134, 1
        %s3067 = scalar_lea.sflag [#allocation8], %s3066
        %s3068 = sand.u32 %s134, 1
        %s3069 = smul.addr %s3068, 8
        %s3070 = scalar_lea.vmem [#allocation7], %s3069
        // Predicated region
        $region68: #{tpu_custom_call.1} parent=54 // pred_check
          %p3071 = pneg %p144
        $region69: #{tpu_custom_call.1} parent=54 // pred_check_branch
          %3073 = sbr.rel (%p3071) target = $region71
        $region70: #{tpu_custom_call.1} parent=54 // pred_region
          %s3074 = smul.u32 2, %s22
          %s3076 = ssub.s32 128, 128
          %3077 = vsyncadd %s3067, %s3076
          %s3078 = smul.addr %s3074, 64
          %s3079 = scalar_lea.hbm %s4, %s3078
          %s3081 = sshll.u32 %s3070, 4
          %s3082 = int_to_ptr.vmem [resolvable:$true] %s3081
          %3084 = dma.vmem_to_hbm [thread:$0]  %s3082, 128, %s3079, %s3067
        $region71: #{tpu_custom_call.1} parent=54 // pred_fallthru
          _
      $region55: #{tpu_custom_call.1} parent=5 // pred_fallthru
        _
      %p3085 = scmp.le.s32.totalorder 2, %s13
      // Predicated region
      $region72: #{tpu_custom_call.1} parent=5 // pred_check
        %p3086 = pneg %p3085
      $region73: #{tpu_custom_call.1} parent=5 // pred_check_branch
        %3088 = sbr.rel (%p3086) target = $region75
      $region74: #{tpu_custom_call.1} parent=5 // pred_region
        %s3089 = ssub.s32 %s13, 2
        // Predicated region
        $region76: #{tpu_custom_call.1} parent=74 // pred_check
          %p3090 = pneg %p150
        $region77: #{tpu_custom_call.1} parent=74 // pred_check_branch
          %3092 = sbr.rel (%p3090) target = $region79
        $region78: #{tpu_custom_call.1} parent=74 // pred_region
          %s3093 = sand.u32 %s135, 1
          %s3094 = scalar_lea.sflag [#allocation8], %s3093
          %s3095 = sand.u32 %s135, 1
          %s3096 = smul.addr %s3095, 8
          %s3097 = scalar_lea.vmem [#allocation7], %s3096
          %3098 = dma.done %s3094, 128
        $region79: #{tpu_custom_call.1} parent=74 // pred_fallthru
          _
      $region75: #{tpu_custom_call.1} parent=5 // pred_fallthru
        _
    $region6: #{tpu_custom_call.1} parent=1 // loop_footer
      %s17 = sadd.s32 1, %s13
    $region7: #{tpu_custom_call.1} parent=1 // loop_footer_branch
      %12 = sbr.rel target = $region3
    $region8: #{tpu_custom_call.1} parent=1 // loop_exit
      _
    %3099 = vsyncpa [#allocation8], 1
    %s3100 = scalar_lea.sflag [#allocation8], 1
    %3101 = vsyncpa %s3100, 1

</llo_original>
